<compile_context>
chip_gen: v5e
topology: v5e:2x2
jax: 0.10.0
libtpu: 0.0.40
codegen_flags: <defaults>
</compile_context>

<pallas_src>
import functools

import jax
import jax.numpy as jnp
from jax.experimental import pallas as pl
from jax.experimental.pallas import tpu as pltpu

BN_EPS = 1e-5
VMEM_LIMIT = 32 * 1024 * 1024   # modest explicit budget; fits v5e/v6e/v7x scoped VMEM


# ---------------- Pallas kernels ----------------

def _conv_bn_relu_kernel(p_ref, w_ref, g_ref, be_ref, o_ref, *, n_rows, eps):
    """Fused  patches @ W  ->  training-mode BatchNorm (single pass stats)  ->  ReLU.

    p_ref: [M, K] bf16, w_ref: [K, N] bf16, g/be: [1, N] f32, o_ref: [M, N] bf16.
    All M rows are valid (no row padding).  Conv bias omitted (cancelled by BN mean).
    """
    y = jnp.dot(p_ref[...], w_ref[...], preferred_element_type=jnp.float32)   # [M, N] f32
    inv_m = 1.0 / n_rows
    mean = jnp.sum(y, axis=0, keepdims=True) * inv_m                          # E[y]
    ex2 = jnp.sum(y * y, axis=0, keepdims=True) * inv_m                       # E[y^2]
    var = ex2 - mean * mean                                                   # biased var
    scale = g_ref[...] * jax.lax.rsqrt(var + eps)                             # [1, N]
    shift = be_ref[...] - mean * scale                                        # [1, N]
    o_ref[...] = jnp.maximum(y * scale + shift, 0.0).astype(o_ref.dtype)      # one fused pass


def _conv_bn_relu_fc_kernel(p_ref, w_ref, g_ref, be_ref, wf_ref, bf_ref, o_ref,
                            *, n_rows, n_batch, eps):
    """conv3 (as patches @ W) + BN + ReLU + flatten + fc1, all in one kernel.

    p_ref: [M3, K3] bf16 with rows in (hw, b) order, w_ref: [K3, 128] bf16,
    g/be: [1, 128] f32, wf_ref: [n_hw, 128, L] bf16, bf_ref: [1, L] f32, o_ref: [B, L] f32.
    """
    y = jnp.dot(p_ref[...], w_ref[...], preferred_element_type=jnp.float32)   # [M3, 128] f32
    inv_m = 1.0 / n_rows
    mean = jnp.sum(y, axis=0, keepdims=True) * inv_m
    ex2 = jnp.sum(y * y, axis=0, keepdims=True) * inv_m
    var = ex2 - mean * mean
    scale = g_ref[...] * jax.lax.rsqrt(var + eps)
    shift = be_ref[...] - mean * scale
    y3 = jnp.maximum(y * scale + shift, 0.0).astype(jnp.bfloat16)             # [M3, 128]

    n_hw = n_rows // n_batch
    latent = wf_ref.shape[2]
    acc = jnp.zeros((n_batch, latent), jnp.float32)
    for hw in range(n_hw):                                   # static, fully unrolled (16 iters)
        blk = y3[hw * n_batch:(hw + 1) * n_batch, :]         # contiguous [B, 128] slab
        acc = acc + jnp.dot(blk, wf_ref[hw], preferred_element_type=jnp.float32)
    o_ref[...] = acc + bf_ref[...]


# ---------------- pallas_call wrappers (single full-array VMEM block) ----------------

def pallas_conv_bn_relu(patches, w, gamma, beta):
    M, K = patches.shape
    K2, N = w.shape
    assert K == K2, (K, K2)
    kern = functools.partial(_conv_bn_relu_kernel, n_rows=M, eps=BN_EPS)
    return pl.pallas_call(
        kern,
        out_shape=jax.ShapeDtypeStruct((M, N), jnp.bfloat16),
        grid=(1,),
        in_specs=[
            pl.BlockSpec((M, K), lambda i: (0, 0)),
            pl.BlockSpec((K, N), lambda i: (0, 0)),
            pl.BlockSpec((1, N), lambda i: (0, 0)),
            pl.BlockSpec((1, N), lambda i: (0, 0)),
        ],
        out_specs=pl.BlockSpec((M, N), lambda i: (0, 0)),
        compiler_params=pltpu.CompilerParams(
            dimension_semantics=("arbitrary",), vmem_limit_bytes=VMEM_LIMIT),
    )(patches, w, gamma, beta)


def pallas_conv_bn_relu_fc(patches, w, gamma, beta, wf, bf, n_batch):
    M, K = patches.shape
    K2, N = w.shape
    assert K == K2, (K, K2)
    n_hw, N2, latent = wf.shape
    assert N == N2 and n_hw * n_batch == M, (wf.shape, M, n_batch)
    kern = functools.partial(_conv_bn_relu_fc_kernel, n_rows=M, n_batch=n_batch, eps=BN_EPS)
    return pl.pallas_call(
        kern,
        out_shape=jax.ShapeDtypeStruct((n_batch, latent), jnp.float32),
        grid=(1,),
        in_specs=[
            pl.BlockSpec((M, K), lambda i: (0, 0)),
            pl.BlockSpec((K, N), lambda i: (0, 0)),
            pl.BlockSpec((1, N), lambda i: (0, 0)),
            pl.BlockSpec((1, N), lambda i: (0, 0)),
            pl.BlockSpec((n_hw, N, latent), lambda i: (0, 0, 0)),
            pl.BlockSpec((1, latent), lambda i: (0, 0)),
        ],
        out_specs=pl.BlockSpec((n_batch, latent), lambda i: (0, 0)),
        compiler_params=pltpu.CompilerParams(
            dimension_semantics=("arbitrary",), vmem_limit_bytes=VMEM_LIMIT),
    )(patches, w, gamma, beta, wf, bf)


# ---------------- host-side im2col (fused by XLA under jit) ----------------

def _im2col(x, k=5, s=2, p=2):
    # x: [B,H,W,C] -> [B*Ho*Wo, k*k*C]   (row order: b, oh, ow; patch order: kh, kw, c)
    B, H, W, C = x.shape
    xp = jnp.pad(x, ((0, 0), (p, p), (p, p), (0, 0)))
    Ho = (H + 2 * p - k) // s + 1
    Wo = (W + 2 * p - k) // s + 1
    cols = []
    for kh in range(k):
        for kw in range(k):
            cols.append(xp[:, kh:kh + s * Ho:s, kw:kw + s * Wo:s, :])
    patches = jnp.stack(cols, axis=3)                  # [B,Ho,Wo,k*k,C]
    return patches.reshape(B * Ho * Wo, k * k * C), (B, Ho, Wo)


# ---------------- one-time parameter preparation ----------------

def _prep_conv_w(w_oihw, in_pad, k_tail_pad=0):
    o, i, kh, kw = w_oihw.shape
    w = jnp.transpose(w_oihw, (2, 3, 1, 0))                       # (kh,kw,i,o)
    w = jnp.pad(w, ((0, 0), (0, 0), (0, in_pad - i), (0, 0)))
    w = w.reshape(kh * kw * in_pad, o)
    if k_tail_pad:
        w = jnp.pad(w, ((0, k_tail_pad), (0, 0)))
    return w.astype(jnp.bfloat16)


def _prep_vec(v):
    return jnp.asarray(v, jnp.float32).reshape(1, -1)


def _prep_fc_w(wf, c, h, w_sp):
    # PyTorch flatten order is (c,h,w); re-arrange to per-(h,w) [C, latent] slices.
    latent = wf.shape[0]
    w = wf.reshape(latent, c, h, w_sp).transpose(2, 3, 1, 0)      # (h, w, c, latent)
    return w.reshape(h * w_sp, c, latent).astype(jnp.bfloat16)    # (16, 128, latent)


def init_params(key, in_channels, latent_dim):
    """Generate PyTorch-layout params, then pad/transpose/cast them ONCE for the kernels."""
    ks = jax.random.split(key, 8)
    conv_w = lambda k, o, i: 0.05 * jax.random.normal(k, (o, i, 5, 5), jnp.float32)
    w1 = conv_w(ks[0], 32, in_channels)
    w2 = conv_w(ks[2], 64, 32)
    w3 = conv_w(ks[4], 128, 64)
    wf = 0.02 * jax.random.normal(ks[6], (latent_dim, 128 * 4 * 4), jnp.float32)
    bf = 0.02 * jax.random.normal(ks[7], (latent_dim,), jnp.float32)
    # Conv biases are intentionally omitted: exactly cancelled by training-mode BN mean subtraction.

    k1 = 25 * in_channels
    k1_tail = (-k1) % 8       # tail-pad layer-1 contraction dim to a sublane multiple
    return {
        # layer 1: K = 25*in_c (tail-padded to 8), N = 32 real channels
        "w1": _prep_conv_w(w1, in_pad=in_channels, k_tail_pad=k1_tail),
        "g1": _prep_vec(jnp.ones((32,), jnp.float32)),
        "be1": _prep_vec(jnp.zeros((32,), jnp.float32)),
        # layer 2: consumes 32 real channels -> K = 800 (no 128-lane inflation)
        "w2": _prep_conv_w(w2, in_pad=32),
        "g2": _prep_vec(jnp.ones((64,), jnp.float32)),
        "be2": _prep_vec(jnp.zeros((64,), jnp.float32)),
        # layer 3: consumes 64 real channels -> K = 1600
        "w3": _prep_conv_w(w3, in_pad=64),
        "g3": _prep_vec(jnp.ones((128,), jnp.float32)),
        "be3": _prep_vec(jnp.zeros((128,), jnp.float32)),
        # fc1: per-spatial-position weight slices (16, 128, latent)
        "wf": _prep_fc_w(wf, 128, 4, 4),
        "bf": _prep_vec(bf),
    }


# ---------------- forward pass ----------------

@jax.jit
def autoencoder_mnist_forward(x_nchw, params):
    # x_nchw: [B, in_channels, 28, 28] (PyTorch NCHW) -> NHWC, channels on lanes.
    x = jnp.transpose(x_nchw, (0, 2, 3, 1)).astype(jnp.float32)
    B = x.shape[0]

    # conv1 + BN + ReLU (fused)
    p1, (_, H1, W1) = _im2col(x)
    p1 = jnp.pad(p1, ((0, 0), (0, params["w1"].shape[0] - p1.shape[1]))).astype(jnp.bfloat16)
    y1 = pallas_conv_bn_relu(p1, params["w1"], params["g1"], params["be1"])
    y1 = y1.reshape(B, H1, W1, 32)               # [B,14,14,32] bf16 (real channel count)

    # conv2 + BN + ReLU (fused); K = 25*32 = 800, bf16 patches
    p2, (_, H2, W2) = _im2col(y1)
    y2 = pallas_conv_bn_relu(p2, params["w2"], params["g2"], params["be2"])
    y2 = y2.reshape(B, H2, W2, 64)               # [B,7,7,64] bf16

    # conv3 + BN + ReLU + flatten + fc1 (fused); K = 25*64 = 1600
    p3, (_, H3, W3) = _im2col(y2)                # rows in (b, hw) order
    n_hw = H3 * W3
    # reorder rows to (hw, b) so each spatial position is a contiguous [B, 128] slab in-kernel
    p3 = p3.reshape(B, n_hw, -1).transpose(1, 0, 2).reshape(B * n_hw, -1)
    z = pallas_conv_bn_relu_fc(p3, params["w3"], params["g3"], params["be3"],
                               params["wf"], params["bf"], n_batch=B)
    return z                                      # [B, latent_dim] f32


if __name__ == "__main__":
    in_channels = 1      # MNIST
    latent_dim = 32
    batch = 2
    key = jax.random.PRNGKey(0)
    k_x, k_p = jax.random.split(key)
    x = jax.random.normal(k_x, (batch, in_channels, 28, 28), jnp.float32)
    params = init_params(k_p, in_channels, latent_dim)

    z = autoencoder_mnist_forward(x, params)
    jax.block_until_ready(z)
    assert z.shape == (batch, latent_dim), z.shape
    print("KERNEL_OK")
</pallas_src>

<mosaic_0001>
module attributes {stable_mosaic.version = 11 : i64} {
  func.func @_conv_bn_relu_kernel(%arg0: i32, %arg1: memref<392x32xbf16, #tpu.memory_space<vmem>>, %arg2: memref<32x32xbf16, #tpu.memory_space<vmem>>, %arg3: memref<1x32xf32, #tpu.memory_space<vmem>>, %arg4: memref<1x32xf32, #tpu.memory_space<vmem>>, %arg5: memref<392x32xbf16, #tpu.memory_space<vmem>>) attributes {dimension_semantics = [#tpu.dimension_semantics<arbitrary>], iteration_bounds = array<i64: 1>, scalar_prefetch = 0 : i64, scratch_operands = 0 : i64, tpu.core_type = #tpu.core_type<tc>, window_params = [{pipeline_mode = #tpu.pipeline_mode<synchronous>, transform_indices = @transform_0, window_bounds = array<i64: 392, 32>}, {pipeline_mode = #tpu.pipeline_mode<synchronous>, transform_indices = @transform_1, window_bounds = array<i64: 32, 32>}, {pipeline_mode = #tpu.pipeline_mode<synchronous>, transform_indices = @transform_2, window_bounds = array<i64: 1, 32>}, {pipeline_mode = #tpu.pipeline_mode<synchronous>, transform_indices = @transform_3, window_bounds = array<i64: 1, 32>}, {pipeline_mode = #tpu.pipeline_mode<synchronous>, transform_indices = @transform_4, window_bounds = array<i64: 392, 32>}]} {
    %c0 = arith.constant 0 : index
    %c0_0 = arith.constant 0 : index
    %0 = vector.load %arg1[%c0, %c0_0] : memref<392x32xbf16, #tpu.memory_space<vmem>>, vector<392x32xbf16>
    %c0_1 = arith.constant 0 : index
    %c0_2 = arith.constant 0 : index
    %1 = vector.load %arg2[%c0_1, %c0_2] : memref<32x32xbf16, #tpu.memory_space<vmem>>, vector<32x32xbf16>
    %cst = arith.constant dense<0.000000e+00> : vector<392x32xf32>
    %2 = tpu.matmul %0, %1, %cst {dimension_numbers = #tpu.dot_dimension_numbers<[1], [0], [0], [1], [0, 0, 1, 1], [], []>} : vector<392x32xbf16>, vector<32x32xbf16>, vector<392x32xf32> -> vector<392x32xf32>
    %cst_3 = arith.constant dense<0.000000e+00> : vector<32xf32>
    %3 = vector.multi_reduction <add>, %2, %cst_3 [0] : vector<392x32xf32> to vector<32xf32>
    %4 = vector.shape_cast %3 : vector<32xf32> to vector<1x32xf32>
    %cst_4 = arith.constant 0.00255102036 : f32
    %5 = vector.broadcast %cst_4 : f32 to vector<1x32xf32>
    %6 = arith.mulf %4, %5 : vector<1x32xf32>
    %7 = arith.mulf %2, %2 : vector<392x32xf32>
    %cst_5 = arith.constant dense<0.000000e+00> : vector<32xf32>
    %8 = vector.multi_reduction <add>, %7, %cst_5 [0] : vector<392x32xf32> to vector<32xf32>
    %9 = vector.shape_cast %8 : vector<32xf32> to vector<1x32xf32>
    %cst_6 = arith.constant 0.00255102036 : f32
    %10 = vector.broadcast %cst_6 : f32 to vector<1x32xf32>
    %11 = arith.mulf %9, %10 : vector<1x32xf32>
    %12 = arith.mulf %6, %6 : vector<1x32xf32>
    %13 = arith.subf %11, %12 : vector<1x32xf32>
    %c0_7 = arith.constant 0 : index
    %c0_8 = arith.constant 0 : index
    %14 = vector.load %arg3[%c0_7, %c0_8] : memref<1x32xf32, #tpu.memory_space<vmem>>, vector<1x32xf32>
    %cst_9 = arith.constant 9.99999974E-6 : f32
    %15 = vector.broadcast %cst_9 : f32 to vector<1x32xf32>
    %16 = arith.addf %13, %15 : vector<1x32xf32>
    %17 = math.rsqrt %16 : vector<1x32xf32>
    %18 = arith.mulf %14, %17 : vector<1x32xf32>
    %c0_10 = arith.constant 0 : index
    %c0_11 = arith.constant 0 : index
    %19 = vector.load %arg4[%c0_10, %c0_11] : memref<1x32xf32, #tpu.memory_space<vmem>>, vector<1x32xf32>
    %20 = arith.mulf %6, %18 : vector<1x32xf32>
    %21 = arith.subf %19, %20 : vector<1x32xf32>
    %22 = vector.broadcast %18 : vector<1x32xf32> to vector<392x32xf32>
    %23 = arith.mulf %2, %22 : vector<392x32xf32>
    %24 = vector.broadcast %21 : vector<1x32xf32> to vector<392x32xf32>
    %25 = arith.addf %23, %24 : vector<392x32xf32>
    %cst_12 = arith.constant 0.000000e+00 : f32
    %26 = vector.broadcast %cst_12 : f32 to vector<392x32xf32>
    %27 = arith.maximumf %25, %26 : vector<392x32xf32>
    %28 = arith.truncf %27 : vector<392x32xf32> to vector<392x32xbf16>
    %c0_13 = arith.constant 0 : index
    %c0_14 = arith.constant 0 : index
    %29 = vector.load %arg5[%c0_13, %c0_14] : memref<392x32xbf16, #tpu.memory_space<vmem>>, vector<392x32xbf16>
    tpu.vector_store %arg5[%c0_13, %c0_14], %28 {strides = array<i32>} : memref<392x32xbf16, #tpu.memory_space<vmem>>, vector<392x32xbf16>,
    return
  }
  func.func @transform_0(%arg0: i32) -> (i32, i32) {
    %c0_i32 = arith.constant 0 : i32
    %c0_i32_0 = arith.constant 0 : i32
    %c0_i32_1 = arith.constant 0 : i32
    return %c0_i32, %c0_i32_0 : i32, i32
  }
  func.func @transform_1(%arg0: i32) -> (i32, i32) {
    %c0_i32 = arith.constant 0 : i32
    %c0_i32_0 = arith.constant 0 : i32
    %c0_i32_1 = arith.constant 0 : i32
    return %c0_i32, %c0_i32_0 : i32, i32
  }
  func.func @transform_2(%arg0: i32) -> (i32, i32) {
    %c0_i32 = arith.constant 0 : i32
    %c0_i32_0 = arith.constant 0 : i32
    %c0_i32_1 = arith.constant 0 : i32
    return %c0_i32, %c0_i32_0 : i32, i32
  }
  func.func @transform_3(%arg0: i32) -> (i32, i32) {
    %c0_i32 = arith.constant 0 : i32
    %c0_i32_0 = arith.constant 0 : i32
    %c0_i32_1 = arith.constant 0 : i32
    return %c0_i32, %c0_i32_0 : i32, i32
  }
  func.func @transform_4(%arg0: i32) -> (i32, i32) {
    %c0_i32 = arith.constant 0 : i32
    %c0_i32_0 = arith.constant 0 : i32
    %c0_i32_1 = arith.constant 0 : i32
    return %c0_i32, %c0_i32_0 : i32, i32
  }
}

module attributes {stable_mosaic.version = 11 : i64} {
  func.func @_conv_bn_relu_kernel(%arg0: i32, %arg1: memref<98x800xbf16, #tpu.memory_space<vmem>>, %arg2: memref<800x64xbf16, #tpu.memory_space<vmem>>, %arg3: memref<1x64xf32, #tpu.memory_space<vmem>>, %arg4: memref<1x64xf32, #tpu.memory_space<vmem>>, %arg5: memref<98x64xbf16, #tpu.memory_space<vmem>>) attributes {dimension_semantics = [#tpu.dimension_semantics<arbitrary>], iteration_bounds = array<i64: 1>, scalar_prefetch = 0 : i64, scratch_operands = 0 : i64, tpu.core_type = #tpu.core_type<tc>, window_params = [{pipeline_mode = #tpu.pipeline_mode<synchronous>, transform_indices = @transform_0, window_bounds = array<i64: 98, 800>}, {pipeline_mode = #tpu.pipeline_mode<synchronous>, transform_indices = @transform_1, window_bounds = array<i64: 800, 64>}, {pipeline_mode = #tpu.pipeline_mode<synchronous>, transform_indices = @transform_2, window_bounds = array<i64: 1, 64>}, {pipeline_mode = #tpu.pipeline_mode<synchronous>, transform_indices = @transform_3, window_bounds = array<i64: 1, 64>}, {pipeline_mode = #tpu.pipeline_mode<synchronous>, transform_indices = @transform_4, window_bounds = array<i64: 98, 64>}]} {
    %c0 = arith.constant 0 : index
    %c0_0 = arith.constant 0 : index
    %0 = vector.load %arg1[%c0, %c0_0] : memref<98x800xbf16, #tpu.memory_space<vmem>>, vector<98x800xbf16>
    %c0_1 = arith.constant 0 : index
    %c0_2 = arith.constant 0 : index
    %1 = vector.load %arg2[%c0_1, %c0_2] : memref<800x64xbf16, #tpu.memory_space<vmem>>, vector<800x64xbf16>
    %cst = arith.constant dense<0.000000e+00> : vector<98x64xf32>
    %2 = tpu.matmul %0, %1, %cst {dimension_numbers = #tpu.dot_dimension_numbers<[1], [0], [0], [1], [0, 0, 1, 1], [], []>} : vector<98x800xbf16>, vector<800x64xbf16>, vector<98x64xf32> -> vector<98x64xf32>
    %cst_3 = arith.constant dense<0.000000e+00> : vector<64xf32>
    %3 = vector.multi_reduction <add>, %2, %cst_3 [0] : vector<98x64xf32> to vector<64xf32>
    %4 = vector.shape_cast %3 : vector<64xf32> to vector<1x64xf32>
    %cst_4 = arith.constant 0.0102040814 : f32
    %5 = vector.broadcast %cst_4 : f32 to vector<1x64xf32>
    %6 = arith.mulf %4, %5 : vector<1x64xf32>
    %7 = arith.mulf %2, %2 : vector<98x64xf32>
    %cst_5 = arith.constant dense<0.000000e+00> : vector<64xf32>
    %8 = vector.multi_reduction <add>, %7, %cst_5 [0] : vector<98x64xf32> to vector<64xf32>
    %9 = vector.shape_cast %8 : vector<64xf32> to vector<1x64xf32>
    %cst_6 = arith.constant 0.0102040814 : f32
    %10 = vector.broadcast %cst_6 : f32 to vector<1x64xf32>
    %11 = arith.mulf %9, %10 : vector<1x64xf32>
    %12 = arith.mulf %6, %6 : vector<1x64xf32>
    %13 = arith.subf %11, %12 : vector<1x64xf32>
    %c0_7 = arith.constant 0 : index
    %c0_8 = arith.constant 0 : index
    %14 = vector.load %arg3[%c0_7, %c0_8] : memref<1x64xf32, #tpu.memory_space<vmem>>, vector<1x64xf32>
    %cst_9 = arith.constant 9.99999974E-6 : f32
    %15 = vector.broadcast %cst_9 : f32 to vector<1x64xf32>
    %16 = arith.addf %13, %15 : vector<1x64xf32>
    %17 = math.rsqrt %16 : vector<1x64xf32>
    %18 = arith.mulf %14, %17 : vector<1x64xf32>
    %c0_10 = arith.constant 0 : index
    %c0_11 = arith.constant 0 : index
    %19 = vector.load %arg4[%c0_10, %c0_11] : memref<1x64xf32, #tpu.memory_space<vmem>>, vector<1x64xf32>
    %20 = arith.mulf %6, %18 : vector<1x64xf32>
    %21 = arith.subf %19, %20 : vector<1x64xf32>
    %22 = vector.broadcast %18 : vector<1x64xf32> to vector<98x64xf32>
    %23 = arith.mulf %2, %22 : vector<98x64xf32>
    %24 = vector.broadcast %21 : vector<1x64xf32> to vector<98x64xf32>
    %25 = arith.addf %23, %24 : vector<98x64xf32>
    %cst_12 = arith.constant 0.000000e+00 : f32
    %26 = vector.broadcast %cst_12 : f32 to vector<98x64xf32>
    %27 = arith.maximumf %25, %26 : vector<98x64xf32>
    %28 = arith.truncf %27 : vector<98x64xf32> to vector<98x64xbf16>
    %c0_13 = arith.constant 0 : index
    %c0_14 = arith.constant 0 : index
    %29 = vector.load %arg5[%c0_13, %c0_14] : memref<98x64xbf16, #tpu.memory_space<vmem>>, vector<98x64xbf16>
    tpu.vector_store %arg5[%c0_13, %c0_14], %28 {strides = array<i32>} : memref<98x64xbf16, #tpu.memory_space<vmem>>, vector<98x64xbf16>,
    return
  }
  func.func @transform_0(%arg0: i32) -> (i32, i32) {
    %c0_i32 = arith.constant 0 : i32
    %c0_i32_0 = arith.constant 0 : i32
    %c0_i32_1 = arith.constant 0 : i32
    return %c0_i32, %c0_i32_0 : i32, i32
  }
  func.func @transform_1(%arg0: i32) -> (i32, i32) {
    %c0_i32 = arith.constant 0 : i32
    %c0_i32_0 = arith.constant 0 : i32
    %c0_i32_1 = arith.constant 0 : i32
    return %c0_i32, %c0_i32_0 : i32, i32
  }
  func.func @transform_2(%arg0: i32) -> (i32, i32) {
    %c0_i32 = arith.constant 0 : i32
    %c0_i32_0 = arith.constant 0 : i32
    %c0_i32_1 = arith.constant 0 : i32
    return %c0_i32, %c0_i32_0 : i32, i32
  }
  func.func @transform_3(%arg0: i32) -> (i32, i32) {
    %c0_i32 = arith.constant 0 : i32
    %c0_i32_0 = arith.constant 0 : i32
    %c0_i32_1 = arith.constant 0 : i32
    return %c0_i32, %c0_i32_0 : i32, i32
  }
  func.func @transform_4(%arg0: i32) -> (i32, i32) {
    %c0_i32 = arith.constant 0 : i32
    %c0_i32_0 = arith.constant 0 : i32
    %c0_i32_1 = arith.constant 0 : i32
    return %c0_i32, %c0_i32_0 : i32, i32
  }
}

module attributes {stable_mosaic.version = 11 : i64} {
  func.func @_conv_bn_relu_fc_kernel(%arg0: i32, %arg1: memref<32x1600xbf16, #tpu.memory_space<vmem>>, %arg2: memref<1600x128xbf16, #tpu.memory_space<vmem>>, %arg3: memref<1x128xf32, #tpu.memory_space<vmem>>, %arg4: memref<1x128xf32, #tpu.memory_space<vmem>>, %arg5: memref<16x128x32xbf16, #tpu.memory_space<vmem>>, %arg6: memref<1x32xf32, #tpu.memory_space<vmem>>, %arg7: memref<2x32xf32, #tpu.memory_space<vmem>>) attributes {dimension_semantics = [#tpu.dimension_semantics<arbitrary>], iteration_bounds = array<i64: 1>, scalar_prefetch = 0 : i64, scratch_operands = 0 : i64, tpu.core_type = #tpu.core_type<tc>, window_params = [{pipeline_mode = #tpu.pipeline_mode<synchronous>, transform_indices = @transform_0, window_bounds = array<i64: 32, 1600>}, {pipeline_mode = #tpu.pipeline_mode<synchronous>, transform_indices = @transform_1, window_bounds = array<i64: 1600, 128>}, {pipeline_mode = #tpu.pipeline_mode<synchronous>, transform_indices = @transform_2, window_bounds = array<i64: 1, 128>}, {pipeline_mode = #tpu.pipeline_mode<synchronous>, transform_indices = @transform_3, window_bounds = array<i64: 1, 128>}, {pipeline_mode = #tpu.pipeline_mode<synchronous>, transform_indices = @transform_4, window_bounds = array<i64: 16, 128, 32>}, {pipeline_mode = #tpu.pipeline_mode<synchronous>, transform_indices = @transform_5, window_bounds = array<i64: 1, 32>}, {pipeline_mode = #tpu.pipeline_mode<synchronous>, transform_indices = @transform_6, window_bounds = array<i64: 2, 32>}]} {
    %c0 = arith.constant 0 : index
    %c0_0 = arith.constant 0 : index
    %0 = vector.load %arg1[%c0, %c0_0] : memref<32x1600xbf16, #tpu.memory_space<vmem>>, vector<32x1600xbf16>
    %c0_1 = arith.constant 0 : index
    %c0_2 = arith.constant 0 : index
    %1 = vector.load %arg2[%c0_1, %c0_2] : memref<1600x128xbf16, #tpu.memory_space<vmem>>, vector<1600x128xbf16>
    %cst = arith.constant dense<0.000000e+00> : vector<32x128xf32>
    %2 = tpu.matmul %0, %1, %cst {dimension_numbers = #tpu.dot_dimension_numbers<[1], [0], [0], [1], [0, 0, 1, 1], [], []>} : vector<32x1600xbf16>, vector<1600x128xbf16>, vector<32x128xf32> -> vector<32x128xf32>
    %cst_3 = arith.constant dense<0.000000e+00> : vector<128xf32>
    %3 = vector.multi_reduction <add>, %2, %cst_3 [0] : vector<32x128xf32> to vector<128xf32>
    %4 = vector.shape_cast %3 : vector<128xf32> to vector<1x128xf32>
    %cst_4 = arith.constant 3.125000e-02 : f32
    %5 = vector.broadcast %cst_4 : f32 to vector<1x128xf32>
    %6 = arith.mulf %4, %5 : vector<1x128xf32>
    %7 = arith.mulf %2, %2 : vector<32x128xf32>
    %cst_5 = arith.constant dense<0.000000e+00> : vector<128xf32>
    %8 = vector.multi_reduction <add>, %7, %cst_5 [0] : vector<32x128xf32> to vector<128xf32>
    %9 = vector.shape_cast %8 : vector<128xf32> to vector<1x128xf32>
    %cst_6 = arith.constant 3.125000e-02 : f32
    %10 = vector.broadcast %cst_6 : f32 to vector<1x128xf32>
    %11 = arith.mulf %9, %10 : vector<1x128xf32>
    %12 = arith.mulf %6, %6 : vector<1x128xf32>
    %13 = arith.subf %11, %12 : vector<1x128xf32>
    %c0_7 = arith.constant 0 : index
    %c0_8 = arith.constant 0 : index
    %14 = vector.load %arg3[%c0_7, %c0_8] : memref<1x128xf32, #tpu.memory_space<vmem>>, vector<1x128xf32>
    %cst_9 = arith.constant 9.99999974E-6 : f32
    %15 = vector.broadcast %cst_9 : f32 to vector<1x128xf32>
    %16 = arith.addf %13, %15 : vector<1x128xf32>
    %17 = math.rsqrt %16 : vector<1x128xf32>
    %18 = arith.mulf %14, %17 : vector<1x128xf32>
    %c0_10 = arith.constant 0 : index
    %c0_11 = arith.constant 0 : index
    %19 = vector.load %arg4[%c0_10, %c0_11] : memref<1x128xf32, #tpu.memory_space<vmem>>, vector<1x128xf32>
    %20 = arith.mulf %6, %18 : vector<1x128xf32>
    %21 = arith.subf %19, %20 : vector<1x128xf32>
    %22 = vector.broadcast %18 : vector<1x128xf32> to vector<32x128xf32>
    %23 = arith.mulf %2, %22 : vector<32x128xf32>
    %24 = vector.broadcast %21 : vector<1x128xf32> to vector<32x128xf32>
    %25 = arith.addf %23, %24 : vector<32x128xf32>
    %cst_12 = arith.constant 0.000000e+00 : f32
    %26 = vector.broadcast %cst_12 : f32 to vector<32x128xf32>
    %27 = arith.maximumf %25, %26 : vector<32x128xf32>
    %28 = arith.truncf %27 : vector<32x128xf32> to vector<32x128xbf16>
    %cst_13 = arith.constant 0.000000e+00 : f32
    %29 = vector.broadcast %cst_13 : f32 to vector<2x32xf32>
    %30 = vector.extract_strided_slice %28 {offsets = [0, 0], sizes = [2, 128], strides = [1, 1]} : vector<32x128xbf16> to vector<2x128xbf16>
    %c0_14 = arith.constant 0 : index
    %c0_15 = arith.constant 0 : index
    %c0_16 = arith.constant 0 : index
    %31 = vector.load %arg5[%c0_14, %c0_15, %c0_16] : memref<16x128x32xbf16, #tpu.memory_space<vmem>>, vector<1x128x32xbf16>
    %32 = vector.shape_cast %31 : vector<1x128x32xbf16> to vector<128x32xbf16>
    %cst_17 = arith.constant dense<0.000000e+00> : vector<2x32xf32>
    %33 = tpu.matmul %30, %32, %cst_17 {dimension_numbers = #tpu.dot_dimension_numbers<[1], [0], [0], [1], [0, 0, 1, 1], [], []>} : vector<2x128xbf16>, vector<128x32xbf16>, vector<2x32xf32> -> vector<2x32xf32>
    %34 = arith.addf %29, %33 : vector<2x32xf32>
    %35 = vector.extract_strided_slice %28 {offsets = [2, 0], sizes = [2, 128], strides = [1, 1]} : vector<32x128xbf16> to vector<2x128xbf16>
    %c1 = arith.constant 1 : index
    %c0_18 = arith.constant 0 : index
    %c0_19 = arith.constant 0 : index
    %36 = vector.load %arg5[%c1, %c0_18, %c0_19] : memref<16x128x32xbf16, #tpu.memory_space<vmem>>, vector<1x128x32xbf16>
    %37 = vector.shape_cast %36 : vector<1x128x32xbf16> to vector<128x32xbf16>
    %cst_20 = arith.constant dense<0.000000e+00> : vector<2x32xf32>
    %38 = tpu.matmul %35, %37, %cst_20 {dimension_numbers = #tpu.dot_dimension_numbers<[1], [0], [0], [1], [0, 0, 1, 1], [], []>} : vector<2x128xbf16>, vector<128x32xbf16>, vector<2x32xf32> -> vector<2x32xf32>
    %39 = arith.addf %34, %38 : vector<2x32xf32>
    %40 = vector.extract_strided_slice %28 {offsets = [4, 0], sizes = [2, 128], strides = [1, 1]} : vector<32x128xbf16> to vector<2x128xbf16>
    %c2 = arith.constant 2 : index
    %c0_21 = arith.constant 0 : index
    %c0_22 = arith.constant 0 : index
    %41 = vector.load %arg5[%c2, %c0_21, %c0_22] : memref<16x128x32xbf16, #tpu.memory_space<vmem>>, vector<1x128x32xbf16>
    %42 = vector.shape_cast %41 : vector<1x128x32xbf16> to vector<128x32xbf16>
    %cst_23 = arith.constant dense<0.000000e+00> : vector<2x32xf32>
    %43 = tpu.matmul %40, %42, %cst_23 {dimension_numbers = #tpu.dot_dimension_numbers<[1], [0], [0], [1], [0, 0, 1, 1], [], []>} : vector<2x128xbf16>, vector<128x32xbf16>, vector<2x32xf32> -> vector<2x32xf32>
    %44 = arith.addf %39, %43 : vector<2x32xf32>
    %45 = vector.extract_strided_slice %28 {offsets = [6, 0], sizes = [2, 128], strides = [1, 1]} : vector<32x128xbf16> to vector<2x128xbf16>
    %c3 = arith.constant 3 : index
    %c0_24 = arith.constant 0 : index
    %c0_25 = arith.constant 0 : index
    %46 = vector.load %arg5[%c3, %c0_24, %c0_25] : memref<16x128x32xbf16, #tpu.memory_space<vmem>>, vector<1x128x32xbf16>
    %47 = vector.shape_cast %46 : vector<1x128x32xbf16> to vector<128x32xbf16>
    %cst_26 = arith.constant dense<0.000000e+00> : vector<2x32xf32>
    %48 = tpu.matmul %45, %47, %cst_26 {dimension_numbers = #tpu.dot_dimension_numbers<[1], [0], [0], [1], [0, 0, 1, 1], [], []>} : vector<2x128xbf16>, vector<128x32xbf16>, vector<2x32xf32> -> vector<2x32xf32>
    %49 = arith.addf %44, %48 : vector<2x32xf32>
    %50 = vector.extract_strided_slice %28 {offsets = [8, 0], sizes = [2, 128], strides = [1, 1]} : vector<32x128xbf16> to vector<2x128xbf16>
    %c4 = arith.constant 4 : index
    %c0_27 = arith.constant 0 : index
    %c0_28 = arith.constant 0 : index
    %51 = vector.load %arg5[%c4, %c0_27, %c0_28] : memref<16x128x32xbf16, #tpu.memory_space<vmem>>, vector<1x128x32xbf16>
    %52 = vector.shape_cast %51 : vector<1x128x32xbf16> to vector<128x32xbf16>
    %cst_29 = arith.constant dense<0.000000e+00> : vector<2x32xf32>
    %53 = tpu.matmul %50, %52, %cst_29 {dimension_numbers = #tpu.dot_dimension_numbers<[1], [0], [0], [1], [0, 0, 1, 1], [], []>} : vector<2x128xbf16>, vector<128x32xbf16>, vector<2x32xf32> -> vector<2x32xf32>
    %54 = arith.addf %49, %53 : vector<2x32xf32>
    %55 = vector.extract_strided_slice %28 {offsets = [10, 0], sizes = [2, 128], strides = [1, 1]} : vector<32x128xbf16> to vector<2x128xbf16>
    %c5 = arith.constant 5 : index
    %c0_30 = arith.constant 0 : index
    %c0_31 = arith.constant 0 : index
    %56 = vector.load %arg5[%c5, %c0_30, %c0_31] : memref<16x128x32xbf16, #tpu.memory_space<vmem>>, vector<1x128x32xbf16>
    %57 = vector.shape_cast %56 : vector<1x128x32xbf16> to vector<128x32xbf16>
    %cst_32 = arith.constant dense<0.000000e+00> : vector<2x32xf32>
    %58 = tpu.matmul %55, %57, %cst_32 {dimension_numbers = #tpu.dot_dimension_numbers<[1], [0], [0], [1], [0, 0, 1, 1], [], []>} : vector<2x128xbf16>, vector<128x32xbf16>, vector<2x32xf32> -> vector<2x32xf32>
    %59 = arith.addf %54, %58 : vector<2x32xf32>
    %60 = vector.extract_strided_slice %28 {offsets = [12, 0], sizes = [2, 128], strides = [1, 1]} : vector<32x128xbf16> to vector<2x128xbf16>
    %c6 = arith.constant 6 : index
    %c0_33 = arith.constant 0 : index
    %c0_34 = arith.constant 0 : index
    %61 = vector.load %arg5[%c6, %c0_33, %c0_34] : memref<16x128x32xbf16, #tpu.memory_space<vmem>>, vector<1x128x32xbf16>
    %62 = vector.shape_cast %61 : vector<1x128x32xbf16> to vector<128x32xbf16>
    %cst_35 = arith.constant dense<0.000000e+00> : vector<2x32xf32>
    %63 = tpu.matmul %60, %62, %cst_35 {dimension_numbers = #tpu.dot_dimension_numbers<[1], [0], [0], [1], [0, 0, 1, 1], [], []>} : vector<2x128xbf16>, vector<128x32xbf16>, vector<2x32xf32> -> vector<2x32xf32>
    %64 = arith.addf %59, %63 : vector<2x32xf32>
    %65 = vector.extract_strided_slice %28 {offsets = [14, 0], sizes = [2, 128], strides = [1, 1]} : vector<32x128xbf16> to vector<2x128xbf16>
    %c7 = arith.constant 7 : index
    %c0_36 = arith.constant 0 : index
    %c0_37 = arith.constant 0 : index
    %66 = vector.load %arg5[%c7, %c0_36, %c0_37] : memref<16x128x32xbf16, #tpu.memory_space<vmem>>, vector<1x128x32xbf16>
    %67 = vector.shape_cast %66 : vector<1x128x32xbf16> to vector<128x32xbf16>
    %cst_38 = arith.constant dense<0.000000e+00> : vector<2x32xf32>
    %68 = tpu.matmul %65, %67, %cst_38 {dimension_numbers = #tpu.dot_dimension_numbers<[1], [0], [0], [1], [0, 0, 1, 1], [], []>} : vector<2x128xbf16>, vector<128x32xbf16>, vector<2x32xf32> -> vector<2x32xf32>
    %69 = arith.addf %64, %68 : vector<2x32xf32>
    %70 = vector.extract_strided_slice %28 {offsets = [16, 0], sizes = [2, 128], strides = [1, 1]} : vector<32x128xbf16> to vector<2x128xbf16>
    %c8 = arith.constant 8 : index
    %c0_39 = arith.constant 0 : index
    %c0_40 = arith.constant 0 : index
    %71 = vector.load %arg5[%c8, %c0_39, %c0_40] : memref<16x128x32xbf16, #tpu.memory_space<vmem>>, vector<1x128x32xbf16>
    %72 = vector.shape_cast %71 : vector<1x128x32xbf16> to vector<128x32xbf16>
    %cst_41 = arith.constant dense<0.000000e+00> : vector<2x32xf32>
    %73 = tpu.matmul %70, %72, %cst_41 {dimension_numbers = #tpu.dot_dimension_numbers<[1], [0], [0], [1], [0, 0, 1, 1], [], []>} : vector<2x128xbf16>, vector<128x32xbf16>, vector<2x32xf32> -> vector<2x32xf32>
    %74 = arith.addf %69, %73 : vector<2x32xf32>
    %75 = vector.extract_strided_slice %28 {offsets = [18, 0], sizes = [2, 128], strides = [1, 1]} : vector<32x128xbf16> to vector<2x128xbf16>
    %c9 = arith.constant 9 : index
    %c0_42 = arith.constant 0 : index
    %c0_43 = arith.constant 0 : index
    %76 = vector.load %arg5[%c9, %c0_42, %c0_43] : memref<16x128x32xbf16, #tpu.memory_space<vmem>>, vector<1x128x32xbf16>
    %77 = vector.shape_cast %76 : vector<1x128x32xbf16> to vector<128x32xbf16>
    %cst_44 = arith.constant dense<0.000000e+00> : vector<2x32xf32>
    %78 = tpu.matmul %75, %77, %cst_44 {dimension_numbers = #tpu.dot_dimension_numbers<[1], [0], [0], [1], [0, 0, 1, 1], [], []>} : vector<2x128xbf16>, vector<128x32xbf16>, vector<2x32xf32> -> vector<2x32xf32>
    %79 = arith.addf %74, %78 : vector<2x32xf32>
    %80 = vector.extract_strided_slice %28 {offsets = [20, 0], sizes = [2, 128], strides = [1, 1]} : vector<32x128xbf16> to vector<2x128xbf16>
    %c10 = arith.constant 10 : index
    %c0_45 = arith.constant 0 : index
    %c0_46 = arith.constant 0 : index
    %81 = vector.load %arg5[%c10, %c0_45, %c0_46] : memref<16x128x32xbf16, #tpu.memory_space<vmem>>, vector<1x128x32xbf16>
    %82 = vector.shape_cast %81 : vector<1x128x32xbf16> to vector<128x32xbf16>
    %cst_47 = arith.constant dense<0.000000e+00> : vector<2x32xf32>
    %83 = tpu.matmul %80, %82, %cst_47 {dimension_numbers = #tpu.dot_dimension_numbers<[1], [0], [0], [1], [0, 0, 1, 1], [], []>} : vector<2x128xbf16>, vector<128x32xbf16>, vector<2x32xf32> -> vector<2x32xf32>
    %84 = arith.addf %79, %83 : vector<2x32xf32>
    %85 = vector.extract_strided_slice %28 {offsets = [22, 0], sizes = [2, 128], strides = [1, 1]} : vector<32x128xbf16> to vector<2x128xbf16>
    %c11 = arith.constant 11 : index
    %c0_48 = arith.constant 0 : index
    %c0_49 = arith.constant 0 : index
    %86 = vector.load %arg5[%c11, %c0_48, %c0_49] : memref<16x128x32xbf16, #tpu.memory_space<vmem>>, vector<1x128x32xbf16>
    %87 = vector.shape_cast %86 : vector<1x128x32xbf16> to vector<128x32xbf16>
    %cst_50 = arith.constant dense<0.000000e+00> : vector<2x32xf32>
    %88 = tpu.matmul %85, %87, %cst_50 {dimension_numbers = #tpu.dot_dimension_numbers<[1], [0], [0], [1], [0, 0, 1, 1], [], []>} : vector<2x128xbf16>, vector<128x32xbf16>, vector<2x32xf32> -> vector<2x32xf32>
    %89 = arith.addf %84, %88 : vector<2x32xf32>
    %90 = vector.extract_strided_slice %28 {offsets = [24, 0], sizes = [2, 128], strides = [1, 1]} : vector<32x128xbf16> to vector<2x128xbf16>
    %c12 = arith.constant 12 : index
    %c0_51 = arith.constant 0 : index
    %c0_52 = arith.constant 0 : index
    %91 = vector.load %arg5[%c12, %c0_51, %c0_52] : memref<16x128x32xbf16, #tpu.memory_space<vmem>>, vector<1x128x32xbf16>
    %92 = vector.shape_cast %91 : vector<1x128x32xbf16> to vector<128x32xbf16>
    %cst_53 = arith.constant dense<0.000000e+00> : vector<2x32xf32>
    %93 = tpu.matmul %90, %92, %cst_53 {dimension_numbers = #tpu.dot_dimension_numbers<[1], [0], [0], [1], [0, 0, 1, 1], [], []>} : vector<2x128xbf16>, vector<128x32xbf16>, vector<2x32xf32> -> vector<2x32xf32>
    %94 = arith.addf %89, %93 : vector<2x32xf32>
    %95 = vector.extract_strided_slice %28 {offsets = [26, 0], sizes = [2, 128], strides = [1, 1]} : vector<32x128xbf16> to vector<2x128xbf16>
    %c13 = arith.constant 13 : index
    %c0_54 = arith.constant 0 : index
    %c0_55 = arith.constant 0 : index
    %96 = vector.load %arg5[%c13, %c0_54, %c0_55] : memref<16x128x32xbf16, #tpu.memory_space<vmem>>, vector<1x128x32xbf16>
    %97 = vector.shape_cast %96 : vector<1x128x32xbf16> to vector<128x32xbf16>
    %cst_56 = arith.constant dense<0.000000e+00> : vector<2x32xf32>
    %98 = tpu.matmul %95, %97, %cst_56 {dimension_numbers = #tpu.dot_dimension_numbers<[1], [0], [0], [1], [0, 0, 1, 1], [], []>} : vector<2x128xbf16>, vector<128x32xbf16>, vector<2x32xf32> -> vector<2x32xf32>
    %99 = arith.addf %94, %98 : vector<2x32xf32>
    %100 = vector.extract_strided_slice %28 {offsets = [28, 0], sizes = [2, 128], strides = [1, 1]} : vector<32x128xbf16> to vector<2x128xbf16>
    %c14 = arith.constant 14 : index
    %c0_57 = arith.constant 0 : index
    %c0_58 = arith.constant 0 : index
    %101 = vector.load %arg5[%c14, %c0_57, %c0_58] : memref<16x128x32xbf16, #tpu.memory_space<vmem>>, vector<1x128x32xbf16>
    %102 = vector.shape_cast %101 : vector<1x128x32xbf16> to vector<128x32xbf16>
    %cst_59 = arith.constant dense<0.000000e+00> : vector<2x32xf32>
    %103 = tpu.matmul %100, %102, %cst_59 {dimension_numbers = #tpu.dot_dimension_numbers<[1], [0], [0], [1], [0, 0, 1, 1], [], []>} : vector<2x128xbf16>, vector<128x32xbf16>, vector<2x32xf32> -> vector<2x32xf32>
    %104 = arith.addf %99, %103 : vector<2x32xf32>
    %105 = vector.extract_strided_slice %28 {offsets = [30, 0], sizes = [2, 128], strides = [1, 1]} : vector<32x128xbf16> to vector<2x128xbf16>
    %c15 = arith.constant 15 : index
    %c0_60 = arith.constant 0 : index
    %c0_61 = arith.constant 0 : index
    %106 = vector.load %arg5[%c15, %c0_60, %c0_61] : memref<16x128x32xbf16, #tpu.memory_space<vmem>>, vector<1x128x32xbf16>
    %107 = vector.shape_cast %106 : vector<1x128x32xbf16> to vector<128x32xbf16>
    %cst_62 = arith.constant dense<0.000000e+00> : vector<2x32xf32>
    %108 = tpu.matmul %105, %107, %cst_62 {dimension_numbers = #tpu.dot_dimension_numbers<[1], [0], [0], [1], [0, 0, 1, 1], [], []>} : vector<2x128xbf16>, vector<128x32xbf16>, vector<2x32xf32> -> vector<2x32xf32>
    %109 = arith.addf %104, %108 : vector<2x32xf32>
    %c0_63 = arith.constant 0 : index
    %c0_64 = arith.constant 0 : index
    %110 = vector.load %arg6[%c0_63, %c0_64] : memref<1x32xf32, #tpu.memory_space<vmem>>, vector<1x32xf32>
    %111 = vector.broadcast %110 : vector<1x32xf32> to vector<2x32xf32>
    %112 = arith.addf %109, %111 : vector<2x32xf32>
    %c0_65 = arith.constant 0 : index
    %c0_66 = arith.constant 0 : index
    %113 = vector.load %arg7[%c0_65, %c0_66] : memref<2x32xf32, #tpu.memory_space<vmem>>, vector<2x32xf32>
    tpu.vector_store %arg7[%c0_65, %c0_66], %112 {strides = array<i32>} : memref<2x32xf32, #tpu.memory_space<vmem>>, vector<2x32xf32>,
    return
  }
  func.func @transform_0(%arg0: i32) -> (i32, i32) {
    %c0_i32 = arith.constant 0 : i32
    %c0_i32_0 = arith.constant 0 : i32
    %c0_i32_1 = arith.constant 0 : i32
    return %c0_i32, %c0_i32_0 : i32, i32
  }
  func.func @transform_1(%arg0: i32) -> (i32, i32) {
    %c0_i32 = arith.constant 0 : i32
    %c0_i32_0 = arith.constant 0 : i32
    %c0_i32_1 = arith.constant 0 : i32
    return %c0_i32, %c0_i32_0 : i32, i32
  }
  func.func @transform_2(%arg0: i32) -> (i32, i32) {
    %c0_i32 = arith.constant 0 : i32
    %c0_i32_0 = arith.constant 0 : i32
    %c0_i32_1 = arith.constant 0 : i32
    return %c0_i32, %c0_i32_0 : i32, i32
  }
  func.func @transform_3(%arg0: i32) -> (i32, i32) {
    %c0_i32 = arith.constant 0 : i32
    %c0_i32_0 = arith.constant 0 : i32
    %c0_i32_1 = arith.constant 0 : i32
    return %c0_i32, %c0_i32_0 : i32, i32
  }
  func.func @transform_4(%arg0: i32) -> (i32, i32, i32) {
    %c0_i32 = arith.constant 0 : i32
    %c0_i32_0 = arith.constant 0 : i32
    %c0_i32_1 = arith.constant 0 : i32
    %c0_i32_2 = arith.constant 0 : i32
    return %c0_i32, %c0_i32_0, %c0_i32_1 : i32, i32, i32
  }
  func.func @transform_5(%arg0: i32) -> (i32, i32) {
    %c0_i32 = arith.constant 0 : i32
    %c0_i32_0 = arith.constant 0 : i32
    %c0_i32_1 = arith.constant 0 : i32
    return %c0_i32, %c0_i32_0 : i32, i32
  }
  func.func @transform_6(%arg0: i32) -> (i32, i32) {
    %c0_i32 = arith.constant 0 : i32
    %c0_i32_0 = arith.constant 0 : i32
    %c0_i32_1 = arith.constant 0 : i32
    return %c0_i32, %c0_i32_0 : i32, i32
  }
}

</mosaic_0001>

<llo_original>
// kernel: autoencoder_mnist_forward.3
$region0: #{autoencoder_mnist_forward.3}
  #allocation0 [shape = 'u32[]', space=smem, size = 0x4, offset = 0x4, fixed_abs, tag = 'smem constant byte address 0x4 - core index']
  #allocation1 [shape = 'u32[72,128]{1,0:T(1,128)}', space=vmem, size = 0x9000, scoped, tag = 'internal scratch']
  %s0 = inlined_call_operand.vmem [shape: bf16[392,32], index: 0, kind: input, shape index: {}]
  %s1 = inlined_call_operand.vmem [shape: bf16[32,32], index: 1, kind: input, shape index: {}]
  %s2 = inlined_call_operand.vmem [shape: f32[1,32], index: 2, kind: input, shape index: {}]
  %s3 = inlined_call_operand.vmem [shape: f32[1,32], index: 3, kind: input, shape index: {}]
  %s4 = inlined_call_operand.vmem [shape: bf16[392,32], index: 4, kind: output, shape index: {}]
  %s5 = sld [smem:[#allocation0]]
  $region26: #{autoencoder_mnist_forward.3} parent=0
    _
  %s7 = ssub.s32 1, %s5
  %s8 = scalar_select 0, %s7, %s5
  // Predicated region
  $region2: #{autoencoder_mnist_forward.3} parent=0 // pred_check
    _
  $region3: #{autoencoder_mnist_forward.3} parent=0 // pred_check_branch
    %10 = sbr.rel (0) target = $region5
  $region4: #{autoencoder_mnist_forward.3} parent=0 // pred_region
    _
  $region5: #{autoencoder_mnist_forward.3} parent=0 // pred_fallthru
    _
  // Predicated region
  $region6: #{autoencoder_mnist_forward.3} parent=0 // pred_check
    _
  $region7: #{autoencoder_mnist_forward.3} parent=0 // pred_check_branch
    %12 = sbr.rel (0) target = $region9
  $region8: #{autoencoder_mnist_forward.3} parent=0 // pred_region
    _
  $region9: #{autoencoder_mnist_forward.3} parent=0 // pred_fallthru
    _
  // Predicated region
  $region10: #{autoencoder_mnist_forward.3} parent=0 // pred_check
    _
  $region11: #{autoencoder_mnist_forward.3} parent=0 // pred_check_branch
    %14 = sbr.rel (0) target = $region13
  $region12: #{autoencoder_mnist_forward.3} parent=0 // pred_region
    _
  $region13: #{autoencoder_mnist_forward.3} parent=0 // pred_fallthru
    _
  // Predicated region
  $region14: #{autoencoder_mnist_forward.3} parent=0 // pred_check
    _
  $region15: #{autoencoder_mnist_forward.3} parent=0 // pred_check_branch
    %16 = sbr.rel (0) target = $region17
  $region16: #{autoencoder_mnist_forward.3} parent=0 // pred_region
    _
  $region17: #{autoencoder_mnist_forward.3} parent=0 // pred_fallthru
    _
  %v18 = vld [vmem:[%s0] sm:$0xf]
  %v19 = vld [vmem:[%s0 + $0x4] sm:$0xf]
  %v20 = vld [vmem:[%s0 + $0x8] sm:$0xf]
  %v21 = vld [vmem:[%s0 + $0xc] sm:$0xf]
  %v22 = vld [vmem:[%s0 + $0x10] sm:$0xf]
  %v23 = vld [vmem:[%s0 + $0x14] sm:$0xf]
  %v24 = vld [vmem:[%s0 + $0x18] sm:$0xf]
  %v25 = vld [vmem:[%s0 + $0x1c] sm:$0xf]
  %v26 = vld [vmem:[%s0 + $0x20] sm:$0xf]
  %v27 = vld [vmem:[%s0 + $0x24] sm:$0xf]
  %v28 = vld [vmem:[%s0 + $0x28] sm:$0xf]
  %v29 = vld [vmem:[%s0 + $0x2c] sm:$0xf]
  %v30 = vld [vmem:[%s0 + $0x30] sm:$0xf]
  %v31 = vld [vmem:[%s0 + $0x34] sm:$0xf]
  %v32 = vld [vmem:[%s0 + $0x38] sm:$0xf]
  %v33 = vld [vmem:[%s0 + $0x3c] sm:$0xf]
  %v34 = vld [vmem:[%s0 + $0x40] sm:$0xf]
  %v35 = vld [vmem:[%s0 + $0x44] sm:$0xf]
  %v36 = vld [vmem:[%s0 + $0x48] sm:$0xf]
  %v37 = vld [vmem:[%s0 + $0x4c] sm:$0xf]
  %v38 = vld [vmem:[%s0 + $0x50] sm:$0xf]
  %v39 = vld [vmem:[%s0 + $0x54] sm:$0xf]
  %v40 = vld [vmem:[%s0 + $0x58] sm:$0xf]
  %v41 = vld [vmem:[%s0 + $0x5c] sm:$0xf]
  %v42 = vld [vmem:[%s0 + $0x60] sm:$0xf]
  %v43 = vld [vmem:[%s0 + $0x64] sm:$0xf]
  %v44 = vld [vmem:[%s0 + $0x68] sm:$0xf]
  %v45 = vld [vmem:[%s0 + $0x6c] sm:$0xf]
  %v46 = vld [vmem:[%s0 + $0x70] sm:$0xf]
  %v47 = vld [vmem:[%s0 + $0x74] sm:$0xf]
  %v48 = vld [vmem:[%s0 + $0x78] sm:$0xf]
  %v49 = vld [vmem:[%s0 + $0x7c] sm:$0xf]
  %v50 = vld [vmem:[%s0 + $0x80] sm:$0xf]
  %v51 = vld [vmem:[%s0 + $0x84] sm:$0xf]
  %v52 = vld [vmem:[%s0 + $0x88] sm:$0xf]
  %v53 = vld [vmem:[%s0 + $0x8c] sm:$0xf]
  %v54 = vld [vmem:[%s0 + $0x90] sm:$0xf]
  %v55 = vld [vmem:[%s0 + $0x94] sm:$0xf]
  %v56 = vld [vmem:[%s0 + $0x98] sm:$0xf]
  %v57 = vld [vmem:[%s0 + $0x9c] sm:$0xf]
  %v58 = vld [vmem:[%s0 + $0xa0] sm:$0xf]
  %v59 = vld [vmem:[%s0 + $0xa4] sm:$0xf]
  %v60 = vld [vmem:[%s0 + $0xa8] sm:$0xf]
  %v61 = vld [vmem:[%s0 + $0xac] sm:$0xf]
  %v62 = vld [vmem:[%s0 + $0xb0] sm:$0xf]
  %v63 = vld [vmem:[%s0 + $0xb4] sm:$0xf]
  %v64 = vld [vmem:[%s0 + $0xb8] sm:$0xf]
  %v65 = vld [vmem:[%s0 + $0xbc] sm:$0xf]
  %v66 = vld [vmem:[%s0 + $0xc0] sm:$0xf]
  %v67 = vld [vmem:[%s1] sm:$0xf]
  %v68 = vld [vmem:[%s1 + $0x4] sm:$0xf]
  %v69 = vld [vmem:[%s1 + $0x8] sm:$0xf]
  %v70 = vld [vmem:[%s1 + $0xc] sm:$0xf]
  %v120 = vunpack.c.l.b16 %v18
  %v121 = vunpack.c.l.b16 %v19
  %v122 = vunpack.c.l.b16 %v20
  %v123 = vunpack.c.l.b16 %v21
  %v124 = vunpack.c.l.b16 %v22
  %v125 = vunpack.c.l.b16 %v23
  %v126 = vunpack.c.l.b16 %v24
  %v127 = vunpack.c.l.b16 %v25
  %v128 = vunpack.c.l.b16 %v26
  %v129 = vunpack.c.l.b16 %v27
  %v130 = vunpack.c.l.b16 %v28
  %v131 = vunpack.c.l.b16 %v29
  %v132 = vunpack.c.l.b16 %v30
  %v133 = vunpack.c.l.b16 %v31
  %v134 = vunpack.c.l.b16 %v32
  %v135 = vunpack.c.l.b16 %v33
  %v136 = vunpack.c.l.b16 %v34
  %v137 = vunpack.c.l.b16 %v35
  %v138 = vunpack.c.l.b16 %v36
  %v139 = vunpack.c.l.b16 %v37
  %v140 = vunpack.c.l.b16 %v38
  %v141 = vunpack.c.l.b16 %v39
  %v142 = vunpack.c.l.b16 %v40
  %v143 = vunpack.c.l.b16 %v41
  %v144 = vunpack.c.l.b16 %v42
  %v145 = vunpack.c.l.b16 %v43
  %v146 = vunpack.c.l.b16 %v44
  %v147 = vunpack.c.l.b16 %v45
  %v148 = vunpack.c.l.b16 %v46
  %v149 = vunpack.c.l.b16 %v47
  %v150 = vunpack.c.l.b16 %v48
  %v151 = vunpack.c.l.b16 %v49
  %v152 = vunpack.c.l.b16 %v50
  %v153 = vunpack.c.l.b16 %v51
  %v154 = vunpack.c.l.b16 %v52
  %v155 = vunpack.c.l.b16 %v53
  %v156 = vunpack.c.l.b16 %v54
  %v157 = vunpack.c.l.b16 %v55
  %v158 = vunpack.c.l.b16 %v56
  %v159 = vunpack.c.l.b16 %v57
  %v160 = vunpack.c.l.b16 %v58
  %v161 = vunpack.c.l.b16 %v59
  %v162 = vunpack.c.l.b16 %v60
  %v163 = vunpack.c.l.b16 %v61
  %v164 = vunpack.c.l.b16 %v62
  %v165 = vunpack.c.l.b16 %v63
  %v166 = vunpack.c.l.b16 %v64
  %v167 = vunpack.c.l.b16 %v65
  %v168 = vunpack.c.l.b16 %v66
  %v169 = vpack.c.b16 %v121, %v120
  %v170 = vpack.c.b16 %v123, %v122
  %v171 = vpack.c.b16 %v125, %v124
  %v172 = vpack.c.b16 %v127, %v126
  %v173 = vpack.c.b16 %v129, %v128
  %v174 = vpack.c.b16 %v131, %v130
  %v175 = vpack.c.b16 %v133, %v132
  %v176 = vpack.c.b16 %v135, %v134
  %v177 = vpack.c.b16 %v137, %v136
  %v178 = vpack.c.b16 %v139, %v138
  %v179 = vpack.c.b16 %v141, %v140
  %v180 = vpack.c.b16 %v143, %v142
  %v181 = vpack.c.b16 %v145, %v144
  %v182 = vpack.c.b16 %v147, %v146
  %v183 = vpack.c.b16 %v149, %v148
  %v184 = vpack.c.b16 %v151, %v150
  %v185 = vpack.c.b16 %v153, %v152
  %v186 = vpack.c.b16 %v155, %v154
  %v187 = vpack.c.b16 %v157, %v156
  %v188 = vpack.c.b16 %v159, %v158
  %v189 = vpack.c.b16 %v161, %v160
  %v190 = vpack.c.b16 %v163, %v162
  %v191 = vpack.c.b16 %v165, %v164
  %v192 = vpack.c.b16 %v167, %v166
  %v193 = vpack.c.b16 %v168, %v168
  %v198 = vunpack.c.l.b16 %v67
  %v199 = vunpack.c.l.b16 %v68
  %v200 = vunpack.c.l.b16 %v69
  %v201 = vunpack.c.l.b16 %v70
  %v202 = vpack.c.b16 %v199, %v198
  %v203 = vpack.c.b16 %v201, %v200
  %vm206 = vcmask 261120
  %v208 = vsel %vm206, %v169, 0
  %v211 = vsel %vm206, %v170, 0
  %v214 = vsel %vm206, %v171, 0
  %v217 = vsel %vm206, %v172, 0
  %v220 = vsel %vm206, %v173, 0
  %v223 = vsel %vm206, %v174, 0
  %v226 = vsel %vm206, %v175, 0
  %v229 = vsel %vm206, %v176, 0
  %v232 = vsel %vm206, %v177, 0
  %v235 = vsel %vm206, %v178, 0
  %v238 = vsel %vm206, %v179, 0
  %v241 = vsel %vm206, %v180, 0
  %v244 = vsel %vm206, %v181, 0
  %v247 = vsel %vm206, %v182, 0
  %v250 = vsel %vm206, %v183, 0
  %v253 = vsel %vm206, %v184, 0
  %v256 = vsel %vm206, %v185, 0
  %v259 = vsel %vm206, %v186, 0
  %v262 = vsel %vm206, %v187, 0
  %v265 = vsel %vm206, %v188, 0
  %v268 = vsel %vm206, %v189, 0
  %v271 = vsel %vm206, %v190, 0
  %v274 = vsel %vm206, %v191, 0
  %v277 = vsel %vm206, %v192, 0
  %v280 = vsel %vm206, %v193, 0
  %282 = vmatpush.bf16.msra.mxu0 0
  %283 = vmatpush.bf16.msra.mxu0 0
  %284 = vmatpush.bf16.msra.mxu0 0
  %285 = vmatpush.bf16.msra.mxu0 0
  %286 = vmatpush.bf16.msra.mxu0 0
  %287 = vmatpush.bf16.msra.mxu0 0
  %288 = vmatpush.bf16.msra.mxu0 %v203
  %289 = vmatpush.bf16.msra.mxu0 %v202
  %290 = vmatmul.bf16.gmra.mxu0 %v208
  %v291 = vpop.f32.mrf.mxu0
  %v292 = vadd.f32 0.0, %v291
  %v293 = vpop.f32.mrf.mxu0
  %v294 = vadd.f32 0.0, %v293
  %295 = vmatmul.bf16.gmra.mxu0 %v211
  %v296 = vpop.f32.mrf.mxu0
  %v297 = vadd.f32 0.0, %v296
  %v298 = vpop.f32.mrf.mxu0
  %v299 = vadd.f32 0.0, %v298
  %300 = vmatmul.bf16.gmra.mxu0 %v214
  %v301 = vpop.f32.mrf.mxu0
  %v302 = vadd.f32 0.0, %v301
  %v303 = vpop.f32.mrf.mxu0
  %v304 = vadd.f32 0.0, %v303
  %305 = vmatmul.bf16.gmra.mxu0 %v217
  %v306 = vpop.f32.mrf.mxu0
  %v307 = vadd.f32 0.0, %v306
  %v308 = vpop.f32.mrf.mxu0
  %v309 = vadd.f32 0.0, %v308
  %310 = vmatmul.bf16.gmra.mxu0 %v220
  %v311 = vpop.f32.mrf.mxu0
  %v312 = vadd.f32 0.0, %v311
  %v313 = vpop.f32.mrf.mxu0
  %v314 = vadd.f32 0.0, %v313
  %315 = vmatmul.bf16.gmra.mxu0 %v223
  %v316 = vpop.f32.mrf.mxu0
  %v317 = vadd.f32 0.0, %v316
  %v318 = vpop.f32.mrf.mxu0
  %v319 = vadd.f32 0.0, %v318
  %320 = vmatmul.bf16.gmra.mxu0 %v226
  %v321 = vpop.f32.mrf.mxu0
  %v322 = vadd.f32 0.0, %v321
  %v323 = vpop.f32.mrf.mxu0
  %v324 = vadd.f32 0.0, %v323
  %325 = vmatmul.bf16.gmra.mxu0 %v229
  %v326 = vpop.f32.mrf.mxu0
  %v327 = vadd.f32 0.0, %v326
  %v328 = vpop.f32.mrf.mxu0
  %v329 = vadd.f32 0.0, %v328
  %330 = vmatmul.bf16.gmra.mxu0 %v232
  %v331 = vpop.f32.mrf.mxu0
  %v332 = vadd.f32 0.0, %v331
  %v333 = vpop.f32.mrf.mxu0
  %v334 = vadd.f32 0.0, %v333
  %335 = vmatmul.bf16.gmra.mxu0 %v235
  %v336 = vpop.f32.mrf.mxu0
  %v337 = vadd.f32 0.0, %v336
  %v338 = vpop.f32.mrf.mxu0
  %v339 = vadd.f32 0.0, %v338
  %340 = vmatmul.bf16.gmra.mxu0 %v238
  %v341 = vpop.f32.mrf.mxu0
  %v342 = vadd.f32 0.0, %v341
  %v343 = vpop.f32.mrf.mxu0
  %v344 = vadd.f32 0.0, %v343
  %345 = vmatmul.bf16.gmra.mxu0 %v241
  %v346 = vpop.f32.mrf.mxu0
  %v347 = vadd.f32 0.0, %v346
  %v348 = vpop.f32.mrf.mxu0
  %v349 = vadd.f32 0.0, %v348
  %350 = vmatmul.bf16.gmra.mxu0 %v244
  %v351 = vpop.f32.mrf.mxu0
  %v352 = vadd.f32 0.0, %v351
  %v353 = vpop.f32.mrf.mxu0
  %v354 = vadd.f32 0.0, %v353
  %355 = vmatmul.bf16.gmra.mxu0 %v247
  %v356 = vpop.f32.mrf.mxu0
  %v357 = vadd.f32 0.0, %v356
  %v358 = vpop.f32.mrf.mxu0
  %v359 = vadd.f32 0.0, %v358
  %360 = vmatmul.bf16.gmra.mxu0 %v250
  %v361 = vpop.f32.mrf.mxu0
  %v362 = vadd.f32 0.0, %v361
  %v363 = vpop.f32.mrf.mxu0
  %v364 = vadd.f32 0.0, %v363
  %365 = vmatmul.bf16.gmra.mxu0 %v253
  %v366 = vpop.f32.mrf.mxu0
  %v367 = vadd.f32 0.0, %v366
  %v368 = vpop.f32.mrf.mxu0
  %v369 = vadd.f32 0.0, %v368
  %370 = vmatmul.bf16.gmra.mxu0 %v256
  %v371 = vpop.f32.mrf.mxu0
  %v372 = vadd.f32 0.0, %v371
  %v373 = vpop.f32.mrf.mxu0
  %v374 = vadd.f32 0.0, %v373
  %375 = vmatmul.bf16.gmra.mxu0 %v259
  %v376 = vpop.f32.mrf.mxu0
  %v377 = vadd.f32 0.0, %v376
  %v378 = vpop.f32.mrf.mxu0
  %v379 = vadd.f32 0.0, %v378
  %380 = vmatmul.bf16.gmra.mxu0 %v262
  %v381 = vpop.f32.mrf.mxu0
  %v382 = vadd.f32 0.0, %v381
  %v383 = vpop.f32.mrf.mxu0
  %v384 = vadd.f32 0.0, %v383
  %385 = vmatmul.bf16.gmra.mxu0 %v265
  %v386 = vpop.f32.mrf.mxu0
  %v387 = vadd.f32 0.0, %v386
  %v388 = vpop.f32.mrf.mxu0
  %v389 = vadd.f32 0.0, %v388
  %390 = vmatmul.bf16.gmra.mxu0 %v268
  %v391 = vpop.f32.mrf.mxu0
  %v392 = vadd.f32 0.0, %v391
  %v393 = vpop.f32.mrf.mxu0
  %v394 = vadd.f32 0.0, %v393
  %395 = vmatmul.bf16.gmra.mxu0 %v271
  %v396 = vpop.f32.mrf.mxu0
  %v397 = vadd.f32 0.0, %v396
  %v398 = vpop.f32.mrf.mxu0
  %v399 = vadd.f32 0.0, %v398
  %400 = vmatmul.bf16.gmra.mxu0 %v274
  %v401 = vpop.f32.mrf.mxu0
  %v402 = vadd.f32 0.0, %v401
  %v403 = vpop.f32.mrf.mxu0
  %v404 = vadd.f32 0.0, %v403
  %405 = vmatmul.bf16.gmra.mxu0 %v277
  %v406 = vpop.f32.mrf.mxu0
  %v407 = vadd.f32 0.0, %v406
  %v408 = vpop.f32.mrf.mxu0
  %v409 = vadd.f32 0.0, %v408
  %410 = vmatmul.bf16.gmra.mxu0 %v280
  %v411 = vpop.f32.mrf.mxu0
  %v412 = vadd.f32 0.0, %v411
  %v413 = vpop.f32.mrf.mxu0
  %414 = vdwg.mxu0
  %v415 = vsel %vm206, %v292, 0.0
  %v416 = vsel %vm206, %v294, 0.0
  %v417 = vadd.f32 %v415, %v416
  %v418 = vsel %vm206, %v297, 0.0
  %v419 = vadd.f32 %v417, %v418
  %v420 = vsel %vm206, %v299, 0.0
  %v421 = vadd.f32 %v419, %v420
  %v422 = vsel %vm206, %v302, 0.0
  %v423 = vadd.f32 %v421, %v422
  %v424 = vsel %vm206, %v304, 0.0
  %v425 = vadd.f32 %v423, %v424
  %v426 = vsel %vm206, %v307, 0.0
  %v427 = vadd.f32 %v425, %v426
  %v428 = vsel %vm206, %v309, 0.0
  %v429 = vadd.f32 %v427, %v428
  %v430 = vsel %vm206, %v312, 0.0
  %v431 = vadd.f32 %v429, %v430
  %v432 = vsel %vm206, %v314, 0.0
  %v433 = vadd.f32 %v431, %v432
  %v434 = vsel %vm206, %v317, 0.0
  %v435 = vadd.f32 %v433, %v434
  %v436 = vsel %vm206, %v319, 0.0
  %v437 = vadd.f32 %v435, %v436
  %v438 = vsel %vm206, %v322, 0.0
  %v439 = vadd.f32 %v437, %v438
  %v440 = vsel %vm206, %v324, 0.0
  %v441 = vadd.f32 %v439, %v440
  %v442 = vsel %vm206, %v327, 0.0
  %v443 = vadd.f32 %v441, %v442
  %v444 = vsel %vm206, %v329, 0.0
  %v445 = vadd.f32 %v443, %v444
  %v446 = vsel %vm206, %v332, 0.0
  %v447 = vadd.f32 %v445, %v446
  %v448 = vsel %vm206, %v334, 0.0
  %v449 = vadd.f32 %v447, %v448
  %v450 = vsel %vm206, %v337, 0.0
  %v451 = vadd.f32 %v449, %v450
  %v452 = vsel %vm206, %v339, 0.0
  %v453 = vadd.f32 %v451, %v452
  %v454 = vsel %vm206, %v342, 0.0
  %v455 = vadd.f32 %v453, %v454
  %v456 = vsel %vm206, %v344, 0.0
  %v457 = vadd.f32 %v455, %v456
  %v458 = vsel %vm206, %v347, 0.0
  %v459 = vadd.f32 %v457, %v458
  %v460 = vsel %vm206, %v349, 0.0
  %v461 = vadd.f32 %v459, %v460
  %v462 = vsel %vm206, %v352, 0.0
  %v463 = vadd.f32 %v461, %v462
  %v464 = vsel %vm206, %v354, 0.0
  %v465 = vadd.f32 %v463, %v464
  %v466 = vsel %vm206, %v357, 0.0
  %v467 = vadd.f32 %v465, %v466
  %v468 = vsel %vm206, %v359, 0.0
  %v469 = vadd.f32 %v467, %v468
  %v470 = vsel %vm206, %v362, 0.0
  %v471 = vadd.f32 %v469, %v470
  %v472 = vsel %vm206, %v364, 0.0
  %v473 = vadd.f32 %v471, %v472
  %v474 = vsel %vm206, %v367, 0.0
  %v475 = vadd.f32 %v473, %v474
  %v476 = vsel %vm206, %v369, 0.0
  %v477 = vadd.f32 %v475, %v476
  %v478 = vsel %vm206, %v372, 0.0
  %v479 = vadd.f32 %v477, %v478
  %v480 = vsel %vm206, %v374, 0.0
  %v481 = vadd.f32 %v479, %v480
  %v482 = vsel %vm206, %v377, 0.0
  %v483 = vadd.f32 %v481, %v482
  %v484 = vsel %vm206, %v379, 0.0
  %v485 = vadd.f32 %v483, %v484
  %v486 = vsel %vm206, %v382, 0.0
  %v487 = vadd.f32 %v485, %v486
  %v488 = vsel %vm206, %v384, 0.0
  %v489 = vadd.f32 %v487, %v488
  %v490 = vsel %vm206, %v387, 0.0
  %v491 = vadd.f32 %v489, %v490
  %v492 = vsel %vm206, %v389, 0.0
  %v493 = vadd.f32 %v491, %v492
  %v494 = vsel %vm206, %v392, 0.0
  %v495 = vadd.f32 %v493, %v494
  %v496 = vsel %vm206, %v394, 0.0
  %v497 = vadd.f32 %v495, %v496
  %v498 = vsel %vm206, %v397, 0.0
  %v499 = vadd.f32 %v497, %v498
  %v500 = vsel %vm206, %v399, 0.0
  %v501 = vadd.f32 %v499, %v500
  %v502 = vsel %vm206, %v402, 0.0
  %v503 = vadd.f32 %v501, %v502
  %v504 = vsel %vm206, %v404, 0.0
  %v505 = vadd.f32 %v503, %v504
  %v506 = vsel %vm206, %v407, 0.0
  %v507 = vadd.f32 %v505, %v506
  %v508 = vsel %vm206, %v409, 0.0
  %v509 = vadd.f32 %v507, %v508
  %v510 = vsel %vm206, %v412, 0.0
  %v511 = vadd.f32 %v509, %v510
  %v512 = vrot.slane %v511, 4
  %v513 = vadd.f32 %v511, %v512
  %v514 = vrot.slane %v513, 2
  %v515 = vadd.f32 %v513, %v514
  %v516 = vrot.slane %v515, 1
  %v517 = vadd.f32 %v515, %v516
  %v518 = vmul.f32 %v517, 0.0025510204
  %v519 = vmul.f32 %v292, %v292
  %v520 = vmul.f32 %v294, %v294
  %v521 = vmul.f32 %v297, %v297
  %v522 = vmul.f32 %v299, %v299
  %v523 = vmul.f32 %v302, %v302
  %v524 = vmul.f32 %v304, %v304
  %v525 = vmul.f32 %v307, %v307
  %v526 = vmul.f32 %v309, %v309
  %v527 = vmul.f32 %v312, %v312
  %v528 = vmul.f32 %v314, %v314
  %v529 = vmul.f32 %v317, %v317
  %v530 = vmul.f32 %v319, %v319
  %v531 = vmul.f32 %v322, %v322
  %v532 = vmul.f32 %v324, %v324
  %v533 = vmul.f32 %v327, %v327
  %v534 = vmul.f32 %v329, %v329
  %v535 = vmul.f32 %v332, %v332
  %v536 = vmul.f32 %v334, %v334
  %v537 = vmul.f32 %v337, %v337
  %v538 = vmul.f32 %v339, %v339
  %v539 = vmul.f32 %v342, %v342
  %v540 = vmul.f32 %v344, %v344
  %v541 = vmul.f32 %v347, %v347
  %v542 = vmul.f32 %v349, %v349
  %v543 = vmul.f32 %v352, %v352
  %v544 = vmul.f32 %v354, %v354
  %v545 = vmul.f32 %v357, %v357
  %v546 = vmul.f32 %v359, %v359
  %v547 = vmul.f32 %v362, %v362
  %v548 = vmul.f32 %v364, %v364
  %v549 = vmul.f32 %v367, %v367
  %v550 = vmul.f32 %v369, %v369
  %v551 = vmul.f32 %v372, %v372
  %v552 = vmul.f32 %v374, %v374
  %v553 = vmul.f32 %v377, %v377
  %v554 = vmul.f32 %v379, %v379
  %v555 = vmul.f32 %v382, %v382
  %v556 = vmul.f32 %v384, %v384
  %v557 = vmul.f32 %v387, %v387
  %v558 = vmul.f32 %v389, %v389
  %v559 = vmul.f32 %v392, %v392
  %v560 = vmul.f32 %v394, %v394
  %v561 = vmul.f32 %v397, %v397
  %v562 = vmul.f32 %v399, %v399
  %v563 = vmul.f32 %v402, %v402
  %v564 = vmul.f32 %v404, %v404
  %v565 = vmul.f32 %v407, %v407
  %v566 = vmul.f32 %v409, %v409
  %v567 = vmul.f32 %v412, %v412
  %v568 = vsel %vm206, %v519, 0.0
  %v569 = vsel %vm206, %v520, 0.0
  %v570 = vadd.f32 %v568, %v569
  %v571 = vsel %vm206, %v521, 0.0
  %v572 = vadd.f32 %v570, %v571
  %v573 = vsel %vm206, %v522, 0.0
  %v574 = vadd.f32 %v572, %v573
  %v575 = vsel %vm206, %v523, 0.0
  %v576 = vadd.f32 %v574, %v575
  %v577 = vsel %vm206, %v524, 0.0
  %v578 = vadd.f32 %v576, %v577
  %v579 = vsel %vm206, %v525, 0.0
  %v580 = vadd.f32 %v578, %v579
  %v581 = vsel %vm206, %v526, 0.0
  %v582 = vadd.f32 %v580, %v581
  %v583 = vsel %vm206, %v527, 0.0
  %v584 = vadd.f32 %v582, %v583
  %v585 = vsel %vm206, %v528, 0.0
  %v586 = vadd.f32 %v584, %v585
  %v587 = vsel %vm206, %v529, 0.0
  %v588 = vadd.f32 %v586, %v587
  %v589 = vsel %vm206, %v530, 0.0
  %v590 = vadd.f32 %v588, %v589
  %v591 = vsel %vm206, %v531, 0.0
  %v592 = vadd.f32 %v590, %v591
  %v593 = vsel %vm206, %v532, 0.0
  %v594 = vadd.f32 %v592, %v593
  %v595 = vsel %vm206, %v533, 0.0
  %v596 = vadd.f32 %v594, %v595
  %v597 = vsel %vm206, %v534, 0.0
  %v598 = vadd.f32 %v596, %v597
  %v599 = vsel %vm206, %v535, 0.0
  %v600 = vadd.f32 %v598, %v599
  %v601 = vsel %vm206, %v536, 0.0
  %v602 = vadd.f32 %v600, %v601
  %v603 = vsel %vm206, %v537, 0.0
  %v604 = vadd.f32 %v602, %v603
  %v605 = vsel %vm206, %v538, 0.0
  %v606 = vadd.f32 %v604, %v605
  %v607 = vsel %vm206, %v539, 0.0
  %v608 = vadd.f32 %v606, %v607
  %v609 = vsel %vm206, %v540, 0.0
  %v610 = vadd.f32 %v608, %v609
  %v611 = vsel %vm206, %v541, 0.0
  %v612 = vadd.f32 %v610, %v611
  %v613 = vsel %vm206, %v542, 0.0
  %v614 = vadd.f32 %v612, %v613
  %v615 = vsel %vm206, %v543, 0.0
  %v616 = vadd.f32 %v614, %v615
  %v617 = vsel %vm206, %v544, 0.0
  %v618 = vadd.f32 %v616, %v617
  %v619 = vsel %vm206, %v545, 0.0
  %v620 = vadd.f32 %v618, %v619
  %v621 = vsel %vm206, %v546, 0.0
  %v622 = vadd.f32 %v620, %v621
  %v623 = vsel %vm206, %v547, 0.0
  %v624 = vadd.f32 %v622, %v623
  %v625 = vsel %vm206, %v548, 0.0
  %v626 = vadd.f32 %v624, %v625
  %v627 = vsel %vm206, %v549, 0.0
  %v628 = vadd.f32 %v626, %v627
  %v629 = vsel %vm206, %v550, 0.0
  %v630 = vadd.f32 %v628, %v629
  %v631 = vsel %vm206, %v551, 0.0
  %v632 = vadd.f32 %v630, %v631
  %v633 = vsel %vm206, %v552, 0.0
  %v634 = vadd.f32 %v632, %v633
  %v635 = vsel %vm206, %v553, 0.0
  %v636 = vadd.f32 %v634, %v635
  %v637 = vsel %vm206, %v554, 0.0
  %v638 = vadd.f32 %v636, %v637
  %v639 = vsel %vm206, %v555, 0.0
  %v640 = vadd.f32 %v638, %v639
  %v641 = vsel %vm206, %v556, 0.0
  %v642 = vadd.f32 %v640, %v641
  %v643 = vsel %vm206, %v557, 0.0
  %v644 = vadd.f32 %v642, %v643
  %v645 = vsel %vm206, %v558, 0.0
  %v646 = vadd.f32 %v644, %v645
  %v647 = vsel %vm206, %v559, 0.0
  %v648 = vadd.f32 %v646, %v647
  %v649 = vsel %vm206, %v560, 0.0
  %v650 = vadd.f32 %v648, %v649
  %v651 = vsel %vm206, %v561, 0.0
  %v652 = vadd.f32 %v650, %v651
  %v653 = vsel %vm206, %v562, 0.0
  %v654 = vadd.f32 %v652, %v653
  %v655 = vsel %vm206, %v563, 0.0
  %v656 = vadd.f32 %v654, %v655
  %v657 = vsel %vm206, %v564, 0.0
  %v658 = vadd.f32 %v656, %v657
  %v659 = vsel %vm206, %v565, 0.0
  %v660 = vadd.f32 %v658, %v659
  %v661 = vsel %vm206, %v566, 0.0
  %v662 = vadd.f32 %v660, %v661
  %v663 = vsel %vm206, %v567, 0.0
  %v664 = vadd.f32 %v662, %v663
  %v665 = vrot.slane %v664, 4
  %v666 = vadd.f32 %v664, %v665
  %v667 = vrot.slane %v666, 2
  %v668 = vadd.f32 %v666, %v667
  %v669 = vrot.slane %v668, 1
  %v670 = vadd.f32 %v668, %v669
  %v671 = vmul.f32 %v670, 0.0025510204
  %v672 = vmul.f32 %v518, %v518
  %v673 = vsub.f32 %v671, %v672
  %v674 = vld [vmem:[%s2] sm:$0x1]
  %v675 = vadd.f32 %v673, 1e-05
  %v676 = vrsqrt.pop %v675
  %v677 = vmul.f32 %v676, %v675
  %v678 = vmul.f32 %v677, %v676
  %v679 = vmul.f32 0.5, %v678
  %v680 = vsub.f32 1.5, %v679
  %v681 = vmul.f32 %v676, %v680
  %vm682 = vweird.f32 %v675
  %vm683 = vweird.f32 %v676
  %vm684 = vmor %vm682, %vm683
  %v685 = vsel %vm684, %v676, %v681
  %v686 = vmul.f32 %v674, %v685
  %v687 = vld [vmem:[%s3] sm:$0x1]
  %v688 = vmul.f32 %v518, %v686
  %v689 = vsub.f32 %v687, %v688
  %v691 = vperm.slane %v686, 0
  %v693 = vmul.f32 %v292, %v691
  %v694 = vmul.f32 %v294, %v691
  %v695 = vmul.f32 %v297, %v691
  %v696 = vmul.f32 %v299, %v691
  %v697 = vmul.f32 %v302, %v691
  %v698 = vmul.f32 %v304, %v691
  %v699 = vmul.f32 %v307, %v691
  %v700 = vmul.f32 %v309, %v691
  %v701 = vmul.f32 %v312, %v691
  %v702 = vmul.f32 %v314, %v691
  %v703 = vmul.f32 %v317, %v691
  %v704 = vmul.f32 %v319, %v691
  %v705 = vmul.f32 %v322, %v691
  %v706 = vmul.f32 %v324, %v691
  %v707 = vmul.f32 %v327, %v691
  %v708 = vmul.f32 %v329, %v691
  %v709 = vmul.f32 %v332, %v691
  %v710 = vmul.f32 %v334, %v691
  %v711 = vmul.f32 %v337, %v691
  %v712 = vmul.f32 %v339, %v691
  %v713 = vmul.f32 %v342, %v691
  %v714 = vmul.f32 %v344, %v691
  %v715 = vmul.f32 %v347, %v691
  %v716 = vmul.f32 %v349, %v691
  %v717 = vmul.f32 %v352, %v691
  %v718 = vmul.f32 %v354, %v691
  %v719 = vmul.f32 %v357, %v691
  %v720 = vmul.f32 %v359, %v691
  %v721 = vmul.f32 %v362, %v691
  %v722 = vmul.f32 %v364, %v691
  %v723 = vmul.f32 %v367, %v691
  %v724 = vmul.f32 %v369, %v691
  %v725 = vmul.f32 %v372, %v691
  %v726 = vmul.f32 %v374, %v691
  %v727 = vmul.f32 %v377, %v691
  %v728 = vmul.f32 %v379, %v691
  %v729 = vmul.f32 %v382, %v691
  %v730 = vmul.f32 %v384, %v691
  %v731 = vmul.f32 %v387, %v691
  %v732 = vmul.f32 %v389, %v691
  %v733 = vmul.f32 %v392, %v691
  %v734 = vmul.f32 %v394, %v691
  %v735 = vmul.f32 %v397, %v691
  %v736 = vmul.f32 %v399, %v691
  %v737 = vmul.f32 %v402, %v691
  %v738 = vmul.f32 %v404, %v691
  %v739 = vmul.f32 %v407, %v691
  %v740 = vmul.f32 %v409, %v691
  %v741 = vmul.f32 %v412, %v691
  %v743 = vperm.slane %v689, 0
  %v745 = vadd.f32 %v693, %v743
  %v746 = vadd.f32 %v694, %v743
  %v747 = vadd.f32 %v695, %v743
  %v748 = vadd.f32 %v696, %v743
  %v749 = vadd.f32 %v697, %v743
  %v750 = vadd.f32 %v698, %v743
  %v751 = vadd.f32 %v699, %v743
  %v752 = vadd.f32 %v700, %v743
  %v753 = vadd.f32 %v701, %v743
  %v754 = vadd.f32 %v702, %v743
  %v755 = vadd.f32 %v703, %v743
  %v756 = vadd.f32 %v704, %v743
  %v757 = vadd.f32 %v705, %v743
  %v758 = vadd.f32 %v706, %v743
  %v759 = vadd.f32 %v707, %v743
  %v760 = vadd.f32 %v708, %v743
  %v761 = vadd.f32 %v709, %v743
  %v762 = vadd.f32 %v710, %v743
  %v763 = vadd.f32 %v711, %v743
  %v764 = vadd.f32 %v712, %v743
  %v765 = vadd.f32 %v713, %v743
  %v766 = vadd.f32 %v714, %v743
  %v767 = vadd.f32 %v715, %v743
  %v768 = vadd.f32 %v716, %v743
  %v769 = vadd.f32 %v717, %v743
  %v770 = vadd.f32 %v718, %v743
  %v771 = vadd.f32 %v719, %v743
  %v772 = vadd.f32 %v720, %v743
  %v773 = vadd.f32 %v721, %v743
  %v774 = vadd.f32 %v722, %v743
  %v775 = vadd.f32 %v723, %v743
  %v776 = vadd.f32 %v724, %v743
  %v777 = vadd.f32 %v725, %v743
  %v778 = vadd.f32 %v726, %v743
  %v779 = vadd.f32 %v727, %v743
  %v780 = vadd.f32 %v728, %v743
  %v781 = vadd.f32 %v729, %v743
  %v782 = vadd.f32 %v730, %v743
  %v783 = vadd.f32 %v731, %v743
  %v784 = vadd.f32 %v732, %v743
  %v785 = vadd.f32 %v733, %v743
  %v786 = vadd.f32 %v734, %v743
  %v787 = vadd.f32 %v735, %v743
  %v788 = vadd.f32 %v736, %v743
  %v789 = vadd.f32 %v737, %v743
  %v790 = vadd.f32 %v738, %v743
  %v791 = vadd.f32 %v739, %v743
  %v792 = vadd.f32 %v740, %v743
  %v793 = vadd.f32 %v741, %v743
  %v794 = vmax.f32 %v745, 0.0
  %v795 = vmax.f32 %v746, 0.0
  %v796 = vmax.f32 %v747, 0.0
  %v797 = vmax.f32 %v748, 0.0
  %v798 = vmax.f32 %v749, 0.0
  %v799 = vmax.f32 %v750, 0.0
  %v800 = vmax.f32 %v751, 0.0
  %v801 = vmax.f32 %v752, 0.0
  %v802 = vmax.f32 %v753, 0.0
  %v803 = vmax.f32 %v754, 0.0
  %v804 = vmax.f32 %v755, 0.0
  %v805 = vmax.f32 %v756, 0.0
  %v806 = vmax.f32 %v757, 0.0
  %v807 = vmax.f32 %v758, 0.0
  %v808 = vmax.f32 %v759, 0.0
  %v809 = vmax.f32 %v760, 0.0
  %v810 = vmax.f32 %v761, 0.0
  %v811 = vmax.f32 %v762, 0.0
  %v812 = vmax.f32 %v763, 0.0
  %v813 = vmax.f32 %v764, 0.0
  %v814 = vmax.f32 %v765, 0.0
  %v815 = vmax.f32 %v766, 0.0
  %v816 = vmax.f32 %v767, 0.0
  %v817 = vmax.f32 %v768, 0.0
  %v818 = vmax.f32 %v769, 0.0
  %v819 = vmax.f32 %v770, 0.0
  %v820 = vmax.f32 %v771, 0.0
  %v821 = vmax.f32 %v772, 0.0
  %v822 = vmax.f32 %v773, 0.0
  %v823 = vmax.f32 %v774, 0.0
  %v824 = vmax.f32 %v775, 0.0
  %v825 = vmax.f32 %v776, 0.0
  %v826 = vmax.f32 %v777, 0.0
  %v827 = vmax.f32 %v778, 0.0
  %v828 = vmax.f32 %v779, 0.0
  %v829 = vmax.f32 %v780, 0.0
  %v830 = vmax.f32 %v781, 0.0
  %v831 = vmax.f32 %v782, 0.0
  %v832 = vmax.f32 %v783, 0.0
  %v833 = vmax.f32 %v784, 0.0
  %v834 = vmax.f32 %v785, 0.0
  %v835 = vmax.f32 %v786, 0.0
  %v836 = vmax.f32 %v787, 0.0
  %v837 = vmax.f32 %v788, 0.0
  %v838 = vmax.f32 %v789, 0.0
  %v839 = vmax.f32 %v790, 0.0
  %v840 = vmax.f32 %v791, 0.0
  %v841 = vmax.f32 %v792, 0.0
  %v842 = vmax.f32 %v793, 0.0
  %v843 = vpack.c.bf16 %v794, %v794
  %v844 = vpack.c.bf16 %v795, %v795
  %v845 = vpack.c.bf16 %v796, %v796
  %v846 = vpack.c.bf16 %v797, %v797
  %v847 = vpack.c.bf16 %v798, %v798
  %v848 = vpack.c.bf16 %v799, %v799
  %v849 = vpack.c.bf16 %v800, %v800
  %v850 = vpack.c.bf16 %v801, %v801
  %v851 = vpack.c.bf16 %v802, %v802
  %v852 = vpack.c.bf16 %v803, %v803
  %v853 = vpack.c.bf16 %v804, %v804
  %v854 = vpack.c.bf16 %v805, %v805
  %v855 = vpack.c.bf16 %v806, %v806
  %v856 = vpack.c.bf16 %v807, %v807
  %v857 = vpack.c.bf16 %v808, %v808
  %v858 = vpack.c.bf16 %v809, %v809
  %v859 = vpack.c.bf16 %v810, %v810
  %v860 = vpack.c.bf16 %v811, %v811
  %v861 = vpack.c.bf16 %v812, %v812
  %v862 = vpack.c.bf16 %v813, %v813
  %v863 = vpack.c.bf16 %v814, %v814
  %v864 = vpack.c.bf16 %v815, %v815
  %v865 = vpack.c.bf16 %v816, %v816
  %v866 = vpack.c.bf16 %v817, %v817
  %v867 = vpack.c.bf16 %v818, %v818
  %v868 = vpack.c.bf16 %v819, %v819
  %v869 = vpack.c.bf16 %v820, %v820
  %v870 = vpack.c.bf16 %v821, %v821
  %v871 = vpack.c.bf16 %v822, %v822
  %v872 = vpack.c.bf16 %v823, %v823
  %v873 = vpack.c.bf16 %v824, %v824
  %v874 = vpack.c.bf16 %v825, %v825
  %v875 = vpack.c.bf16 %v826, %v826
  %v876 = vpack.c.bf16 %v827, %v827
  %v877 = vpack.c.bf16 %v828, %v828
  %v878 = vpack.c.bf16 %v829, %v829
  %v879 = vpack.c.bf16 %v830, %v830
  %v880 = vpack.c.bf16 %v831, %v831
  %v881 = vpack.c.bf16 %v832, %v832
  %v882 = vpack.c.bf16 %v833, %v833
  %v883 = vpack.c.bf16 %v834, %v834
  %v884 = vpack.c.bf16 %v835, %v835
  %v885 = vpack.c.bf16 %v836, %v836
  %v886 = vpack.c.bf16 %v837, %v837
  %v887 = vpack.c.bf16 %v838, %v838
  %v888 = vpack.c.bf16 %v839, %v839
  %v889 = vpack.c.bf16 %v840, %v840
  %v890 = vpack.c.bf16 %v841, %v841
  %v891 = vpack.c.bf16 %v842, %v842
  %vm892 = vcmask 257024
  %893 = vst.msk [vmem:[%s4] sm:$0xf] %vm892, %v843
  %894 = vst.msk [vmem:[%s4 + $0x4] sm:$0xf] %vm892, %v844
  %895 = vst.msk [vmem:[%s4 + $0x8] sm:$0xf] %vm892, %v845
  %896 = vst.msk [vmem:[%s4 + $0xc] sm:$0xf] %vm892, %v846
  %897 = vst.msk [vmem:[%s4 + $0x10] sm:$0xf] %vm892, %v847
  %898 = vst.msk [vmem:[%s4 + $0x14] sm:$0xf] %vm892, %v848
  %899 = vst.msk [vmem:[%s4 + $0x18] sm:$0xf] %vm892, %v849
  %900 = vst.msk [vmem:[%s4 + $0x1c] sm:$0xf] %vm892, %v850
  %901 = vst.msk [vmem:[%s4 + $0x20] sm:$0xf] %vm892, %v851
  %902 = vst.msk [vmem:[%s4 + $0x24] sm:$0xf] %vm892, %v852
  %903 = vst.msk [vmem:[%s4 + $0x28] sm:$0xf] %vm892, %v853
  %904 = vst.msk [vmem:[%s4 + $0x2c] sm:$0xf] %vm892, %v854
  %905 = vst.msk [vmem:[%s4 + $0x30] sm:$0xf] %vm892, %v855
  %906 = vst.msk [vmem:[%s4 + $0x34] sm:$0xf] %vm892, %v856
  %907 = vst.msk [vmem:[%s4 + $0x38] sm:$0xf] %vm892, %v857
  %908 = vst.msk [vmem:[%s4 + $0x3c] sm:$0xf] %vm892, %v858
  %909 = vst.msk [vmem:[%s4 + $0x40] sm:$0xf] %vm892, %v859
  %910 = vst.msk [vmem:[%s4 + $0x44] sm:$0xf] %vm892, %v860
  %911 = vst.msk [vmem:[%s4 + $0x48] sm:$0xf] %vm892, %v861
  %912 = vst.msk [vmem:[%s4 + $0x4c] sm:$0xf] %vm892, %v862
  %913 = vst.msk [vmem:[%s4 + $0x50] sm:$0xf] %vm892, %v863
  %914 = vst.msk [vmem:[%s4 + $0x54] sm:$0xf] %vm892, %v864
  %915 = vst.msk [vmem:[%s4 + $0x58] sm:$0xf] %vm892, %v865
  %916 = vst.msk [vmem:[%s4 + $0x5c] sm:$0xf] %vm892, %v866
  %917 = vst.msk [vmem:[%s4 + $0x60] sm:$0xf] %vm892, %v867
  %918 = vst.msk [vmem:[%s4 + $0x64] sm:$0xf] %vm892, %v868
  %919 = vst.msk [vmem:[%s4 + $0x68] sm:$0xf] %vm892, %v869
  %920 = vst.msk [vmem:[%s4 + $0x6c] sm:$0xf] %vm892, %v870
  %921 = vst.msk [vmem:[%s4 + $0x70] sm:$0xf] %vm892, %v871
  %922 = vst.msk [vmem:[%s4 + $0x74] sm:$0xf] %vm892, %v872
  %923 = vst.msk [vmem:[%s4 + $0x78] sm:$0xf] %vm892, %v873
  %924 = vst.msk [vmem:[%s4 + $0x7c] sm:$0xf] %vm892, %v874
  %925 = vst.msk [vmem:[%s4 + $0x80] sm:$0xf] %vm892, %v875
  %926 = vst.msk [vmem:[%s4 + $0x84] sm:$0xf] %vm892, %v876
  %927 = vst.msk [vmem:[%s4 + $0x88] sm:$0xf] %vm892, %v877
  %928 = vst.msk [vmem:[%s4 + $0x8c] sm:$0xf] %vm892, %v878
  %929 = vst.msk [vmem:[%s4 + $0x90] sm:$0xf] %vm892, %v879
  %930 = vst.msk [vmem:[%s4 + $0x94] sm:$0xf] %vm892, %v880
  %931 = vst.msk [vmem:[%s4 + $0x98] sm:$0xf] %vm892, %v881
  %932 = vst.msk [vmem:[%s4 + $0x9c] sm:$0xf] %vm892, %v882
  %933 = vst.msk [vmem:[%s4 + $0xa0] sm:$0xf] %vm892, %v883
  %934 = vst.msk [vmem:[%s4 + $0xa4] sm:$0xf] %vm892, %v884
  %935 = vst.msk [vmem:[%s4 + $0xa8] sm:$0xf] %vm892, %v885
  %936 = vst.msk [vmem:[%s4 + $0xac] sm:$0xf] %vm892, %v886
  %937 = vst.msk [vmem:[%s4 + $0xb0] sm:$0xf] %vm892, %v887
  %938 = vst.msk [vmem:[%s4 + $0xb4] sm:$0xf] %vm892, %v888
  %939 = vst.msk [vmem:[%s4 + $0xb8] sm:$0xf] %vm892, %v889
  %940 = vst.msk [vmem:[%s4 + $0xbc] sm:$0xf] %vm892, %v890
  %941 = vst.msk [vmem:[%s4 + $0xc0] sm:$0xf] %vm892, %v891
  // Predicated region
  $region18: #{autoencoder_mnist_forward.3} parent=0 // pred_check
    _
  $region19: #{autoencoder_mnist_forward.3} parent=0 // pred_check_branch
    %943 = sbr.rel (0) target = $region21
  $region20: #{autoencoder_mnist_forward.3} parent=0 // pred_region
    _
  $region21: #{autoencoder_mnist_forward.3} parent=0 // pred_fallthru
    _
  // Predicated region
  $region22: #{autoencoder_mnist_forward.3} parent=0 // pred_check
    _
  $region23: #{autoencoder_mnist_forward.3} parent=0 // pred_check_branch
    %945 = sbr.rel (0) target = $region25
  $region24: #{autoencoder_mnist_forward.3} parent=0 // pred_region
    _
  $region25: #{autoencoder_mnist_forward.3} parent=0 // pred_fallthru
    _

// kernel: autoencoder_mnist_forward.4
$region0: #{autoencoder_mnist_forward.4}
  #allocation0 [shape = 'u32[]', space=smem, size = 0x4, offset = 0x4, fixed_abs, tag = 'smem constant byte address 0x4 - core index']
  #allocation1 [shape = 'u32[72,128]{1,0:T(1,128)}', space=vmem, size = 0x9000, scoped, tag = 'internal scratch']
  %s0 = inlined_call_operand.vmem [shape: bf16[98,800], index: 0, kind: input, shape index: {}]
  %s1 = inlined_call_operand.vmem [shape: bf16[800,64], index: 1, kind: input, shape index: {}]
  %s2 = inlined_call_operand.vmem [shape: f32[1,64], index: 2, kind: input, shape index: {}]
  %s3 = inlined_call_operand.vmem [shape: f32[1,64], index: 3, kind: input, shape index: {}]
  %s4 = inlined_call_operand.vmem [shape: bf16[98,64], index: 4, kind: output, shape index: {}]
  %s5 = sld [smem:[#allocation0]]
  $region26: #{autoencoder_mnist_forward.4} parent=0
    _
  %s7 = ssub.s32 1, %s5
  %s8 = scalar_select 0, %s7, %s5
  // Predicated region
  $region2: #{autoencoder_mnist_forward.4} parent=0 // pred_check
    _
  $region3: #{autoencoder_mnist_forward.4} parent=0 // pred_check_branch
    %10 = sbr.rel (0) target = $region5
  $region4: #{autoencoder_mnist_forward.4} parent=0 // pred_region
    _
  $region5: #{autoencoder_mnist_forward.4} parent=0 // pred_fallthru
    _
  // Predicated region
  $region6: #{autoencoder_mnist_forward.4} parent=0 // pred_check
    _
  $region7: #{autoencoder_mnist_forward.4} parent=0 // pred_check_branch
    %12 = sbr.rel (0) target = $region9
  $region8: #{autoencoder_mnist_forward.4} parent=0 // pred_region
    _
  $region9: #{autoencoder_mnist_forward.4} parent=0 // pred_fallthru
    _
  // Predicated region
  $region10: #{autoencoder_mnist_forward.4} parent=0 // pred_check
    _
  $region11: #{autoencoder_mnist_forward.4} parent=0 // pred_check_branch
    %14 = sbr.rel (0) target = $region13
  $region12: #{autoencoder_mnist_forward.4} parent=0 // pred_region
    _
  $region13: #{autoencoder_mnist_forward.4} parent=0 // pred_fallthru
    _
  // Predicated region
  $region14: #{autoencoder_mnist_forward.4} parent=0 // pred_check
    _
  $region15: #{autoencoder_mnist_forward.4} parent=0 // pred_check_branch
    %16 = sbr.rel (0) target = $region17
  $region16: #{autoencoder_mnist_forward.4} parent=0 // pred_region
    _
  $region17: #{autoencoder_mnist_forward.4} parent=0 // pred_fallthru
    _
  %v18 = vld [vmem:[%s0] sm:$0xff]
  %v19 = vld [vmem:[%s0 + $0x8] sm:$0xff]
  %v20 = vld [vmem:[%s0 + $0x10] sm:$0xff]
  %v21 = vld [vmem:[%s0 + $0x18] sm:$0xf]
  %v22 = vld [vmem:[%s0 + $0x1c] sm:$0xff]
  %v23 = vld [vmem:[%s0 + $0x24] sm:$0xff]
  %v24 = vld [vmem:[%s0 + $0x2c] sm:$0xff]
  %v25 = vld [vmem:[%s0 + $0x34] sm:$0xf]
  %v26 = vld [vmem:[%s0 + $0x38] sm:$0xff]
  %v27 = vld [vmem:[%s0 + $0x40] sm:$0xff]
  %v28 = vld [vmem:[%s0 + $0x48] sm:$0xff]
  %v29 = vld [vmem:[%s0 + $0x50] sm:$0xf]
  %v30 = vld [vmem:[%s0 + $0x54] sm:$0xff]
  %v31 = vld [vmem:[%s0 + $0x5c] sm:$0xff]
  %v32 = vld [vmem:[%s0 + $0x64] sm:$0xff]
  %v33 = vld [vmem:[%s0 + $0x6c] sm:$0xf]
  %v34 = vld [vmem:[%s0 + $0x70] sm:$0xff]
  %v35 = vld [vmem:[%s0 + $0x78] sm:$0xff]
  %v36 = vld [vmem:[%s0 + $0x80] sm:$0xff]
  %v37 = vld [vmem:[%s0 + $0x88] sm:$0xf]
  %v38 = vld [vmem:[%s0 + $0x8c] sm:$0xff]
  %v39 = vld [vmem:[%s0 + $0x94] sm:$0xff]
  %v40 = vld [vmem:[%s0 + $0x9c] sm:$0xff]
  %v41 = vld [vmem:[%s0 + $0xa4] sm:$0xf]
  %v42 = vld [vmem:[%s0 + $0xa8] sm:$0xff]
  %v43 = vld [vmem:[%s0 + $0xb0] sm:$0xff]
  %v44 = vld [vmem:[%s0 + $0xb8] sm:$0xff]
  %v45 = vld [vmem:[%s0 + $0xc0] sm:$0xf]
  %v46 = vld [vmem:[%s0 + $0xc4] sm:$0xff]
  %v47 = vld [vmem:[%s0 + $0xcc] sm:$0xff]
  %v48 = vld [vmem:[%s0 + $0xd4] sm:$0xff]
  %v49 = vld [vmem:[%s0 + $0xdc] sm:$0xf]
  %v50 = vld [vmem:[%s0 + $0xe0] sm:$0xff]
  %v51 = vld [vmem:[%s0 + $0xe8] sm:$0xff]
  %v52 = vld [vmem:[%s0 + $0xf0] sm:$0xff]
  %v53 = vld [vmem:[%s0 + $0xf8] sm:$0xf]
  %v54 = vld [vmem:[%s0 + $0xfc] sm:$0xff]
  %v55 = vld [vmem:[%s0 + $0x104] sm:$0xff]
  %v56 = vld [vmem:[%s0 + $0x10c] sm:$0xff]
  %v57 = vld [vmem:[%s0 + $0x114] sm:$0xf]
  %v58 = vld [vmem:[%s0 + $0x118] sm:$0xff]
  %v59 = vld [vmem:[%s0 + $0x120] sm:$0xff]
  %v60 = vld [vmem:[%s0 + $0x128] sm:$0xff]
  %v61 = vld [vmem:[%s0 + $0x130] sm:$0xf]
  %v62 = vld [vmem:[%s0 + $0x134] sm:$0xff]
  %v63 = vld [vmem:[%s0 + $0x13c] sm:$0xff]
  %v64 = vld [vmem:[%s0 + $0x144] sm:$0xff]
  %v65 = vld [vmem:[%s0 + $0x14c] sm:$0xf]
  %v66 = vld [vmem:[%s0 + $0x150] sm:$0x11]
  %v67 = vld [vmem:[%s0 + $0x158] sm:$0x11]
  %v68 = vld [vmem:[%s0 + $0x160] sm:$0x11]
  %v69 = vld [vmem:[%s0 + $0x168] sm:$0x1]
  %v70 = vld [vmem:[%s1] sm:$0xf]
  %v71 = vld [vmem:[%s1 + $0x4] sm:$0xf]
  %v72 = vld [vmem:[%s1 + $0x8] sm:$0xf]
  %v73 = vld [vmem:[%s1 + $0xc] sm:$0xf]
  %v74 = vld [vmem:[%s1 + $0x10] sm:$0xf]
  %v75 = vld [vmem:[%s1 + $0x14] sm:$0xf]
  %v76 = vld [vmem:[%s1 + $0x18] sm:$0xf]
  %v77 = vld [vmem:[%s1 + $0x1c] sm:$0xf]
  %v78 = vld [vmem:[%s1 + $0x20] sm:$0xf]
  %v79 = vld [vmem:[%s1 + $0x24] sm:$0xf]
  %v80 = vld [vmem:[%s1 + $0x28] sm:$0xf]
  %v81 = vld [vmem:[%s1 + $0x2c] sm:$0xf]
  %v82 = vld [vmem:[%s1 + $0x30] sm:$0xf]
  %v83 = vld [vmem:[%s1 + $0x34] sm:$0xf]
  %v84 = vld [vmem:[%s1 + $0x38] sm:$0xf]
  %v85 = vld [vmem:[%s1 + $0x3c] sm:$0xf]
  %v86 = vld [vmem:[%s1 + $0x40] sm:$0xf]
  %v87 = vld [vmem:[%s1 + $0x44] sm:$0xf]
  %v88 = vld [vmem:[%s1 + $0x48] sm:$0xf]
  %v89 = vld [vmem:[%s1 + $0x4c] sm:$0xf]
  %v90 = vld [vmem:[%s1 + $0x50] sm:$0xf]
  %v91 = vld [vmem:[%s1 + $0x54] sm:$0xf]
  %v92 = vld [vmem:[%s1 + $0x58] sm:$0xf]
  %v93 = vld [vmem:[%s1 + $0x5c] sm:$0xf]
  %v94 = vld [vmem:[%s1 + $0x60] sm:$0xf]
  %v95 = vld [vmem:[%s1 + $0x64] sm:$0xf]
  %v96 = vld [vmem:[%s1 + $0x68] sm:$0xf]
  %v97 = vld [vmem:[%s1 + $0x6c] sm:$0xf]
  %v98 = vld [vmem:[%s1 + $0x70] sm:$0xf]
  %v99 = vld [vmem:[%s1 + $0x74] sm:$0xf]
  %v100 = vld [vmem:[%s1 + $0x78] sm:$0xf]
  %v101 = vld [vmem:[%s1 + $0x7c] sm:$0xf]
  %v102 = vld [vmem:[%s1 + $0x80] sm:$0xf]
  %v103 = vld [vmem:[%s1 + $0x84] sm:$0xf]
  %v104 = vld [vmem:[%s1 + $0x88] sm:$0xf]
  %v105 = vld [vmem:[%s1 + $0x8c] sm:$0xf]
  %v106 = vld [vmem:[%s1 + $0x90] sm:$0xf]
  %v107 = vld [vmem:[%s1 + $0x94] sm:$0xf]
  %v108 = vld [vmem:[%s1 + $0x98] sm:$0xf]
  %v109 = vld [vmem:[%s1 + $0x9c] sm:$0xf]
  %v110 = vld [vmem:[%s1 + $0xa0] sm:$0xf]
  %v111 = vld [vmem:[%s1 + $0xa4] sm:$0xf]
  %v112 = vld [vmem:[%s1 + $0xa8] sm:$0xf]
  %v113 = vld [vmem:[%s1 + $0xac] sm:$0xf]
  %v114 = vld [vmem:[%s1 + $0xb0] sm:$0xf]
  %v115 = vld [vmem:[%s1 + $0xb4] sm:$0xf]
  %v116 = vld [vmem:[%s1 + $0xb8] sm:$0xf]
  %v117 = vld [vmem:[%s1 + $0xbc] sm:$0xf]
  %v118 = vld [vmem:[%s1 + $0xc0] sm:$0xf]
  %v119 = vld [vmem:[%s1 + $0xc4] sm:$0xf]
  %v120 = vld [vmem:[%s1 + $0xc8] sm:$0xf]
  %v121 = vld [vmem:[%s1 + $0xcc] sm:$0xf]
  %v122 = vld [vmem:[%s1 + $0xd0] sm:$0xf]
  %v123 = vld [vmem:[%s1 + $0xd4] sm:$0xf]
  %v124 = vld [vmem:[%s1 + $0xd8] sm:$0xf]
  %v125 = vld [vmem:[%s1 + $0xdc] sm:$0xf]
  %v126 = vld [vmem:[%s1 + $0xe0] sm:$0xf]
  %v127 = vld [vmem:[%s1 + $0xe4] sm:$0xf]
  %v128 = vld [vmem:[%s1 + $0xe8] sm:$0xf]
  %v129 = vld [vmem:[%s1 + $0xec] sm:$0xf]
  %v130 = vld [vmem:[%s1 + $0xf0] sm:$0xf]
  %v131 = vld [vmem:[%s1 + $0xf4] sm:$0xf]
  %v132 = vld [vmem:[%s1 + $0xf8] sm:$0xf]
  %v133 = vld [vmem:[%s1 + $0xfc] sm:$0xf]
  %v134 = vld [vmem:[%s1 + $0x100] sm:$0xf]
  %v135 = vld [vmem:[%s1 + $0x104] sm:$0xf]
  %v136 = vld [vmem:[%s1 + $0x108] sm:$0xf]
  %v137 = vld [vmem:[%s1 + $0x10c] sm:$0xf]
  %v138 = vld [vmem:[%s1 + $0x110] sm:$0xf]
  %v139 = vld [vmem:[%s1 + $0x114] sm:$0xf]
  %v140 = vld [vmem:[%s1 + $0x118] sm:$0xf]
  %v141 = vld [vmem:[%s1 + $0x11c] sm:$0xf]
  %v142 = vld [vmem:[%s1 + $0x120] sm:$0xf]
  %v143 = vld [vmem:[%s1 + $0x124] sm:$0xf]
  %v144 = vld [vmem:[%s1 + $0x128] sm:$0xf]
  %v145 = vld [vmem:[%s1 + $0x12c] sm:$0xf]
  %v146 = vld [vmem:[%s1 + $0x130] sm:$0xf]
  %v147 = vld [vmem:[%s1 + $0x134] sm:$0xf]
  %v148 = vld [vmem:[%s1 + $0x138] sm:$0xf]
  %v149 = vld [vmem:[%s1 + $0x13c] sm:$0xf]
  %v150 = vld [vmem:[%s1 + $0x140] sm:$0xf]
  %v151 = vld [vmem:[%s1 + $0x144] sm:$0xf]
  %v152 = vld [vmem:[%s1 + $0x148] sm:$0xf]
  %v153 = vld [vmem:[%s1 + $0x14c] sm:$0xf]
  %v154 = vld [vmem:[%s1 + $0x150] sm:$0xf]
  %v155 = vld [vmem:[%s1 + $0x154] sm:$0xf]
  %v156 = vld [vmem:[%s1 + $0x158] sm:$0xf]
  %v157 = vld [vmem:[%s1 + $0x15c] sm:$0xf]
  %v158 = vld [vmem:[%s1 + $0x160] sm:$0xf]
  %v159 = vld [vmem:[%s1 + $0x164] sm:$0xf]
  %v160 = vld [vmem:[%s1 + $0x168] sm:$0xf]
  %v161 = vld [vmem:[%s1 + $0x16c] sm:$0xf]
  %v162 = vld [vmem:[%s1 + $0x170] sm:$0xf]
  %v163 = vld [vmem:[%s1 + $0x174] sm:$0xf]
  %v164 = vld [vmem:[%s1 + $0x178] sm:$0xf]
  %v165 = vld [vmem:[%s1 + $0x17c] sm:$0xf]
  %v166 = vld [vmem:[%s1 + $0x180] sm:$0xf]
  %v167 = vld [vmem:[%s1 + $0x184] sm:$0xf]
  %v168 = vld [vmem:[%s1 + $0x188] sm:$0xf]
  %v169 = vld [vmem:[%s1 + $0x18c] sm:$0xf]
  %v222 = vunpack.c.l.b16 %v18
  %v223 = vunpack.c.h.b16 %v18
  %v224 = vunpack.c.l.b16 %v19
  %v225 = vunpack.c.h.b16 %v19
  %v226 = vunpack.c.l.b16 %v20
  %v227 = vunpack.c.h.b16 %v20
  %v228 = vunpack.c.l.b16 %v21
  %v229 = vunpack.c.l.b16 %v22
  %v230 = vunpack.c.h.b16 %v22
  %v231 = vunpack.c.l.b16 %v23
  %v232 = vunpack.c.h.b16 %v23
  %v233 = vunpack.c.l.b16 %v24
  %v234 = vunpack.c.h.b16 %v24
  %v235 = vunpack.c.l.b16 %v25
  %v236 = vunpack.c.l.b16 %v26
  %v237 = vunpack.c.h.b16 %v26
  %v238 = vunpack.c.l.b16 %v27
  %v239 = vunpack.c.h.b16 %v27
  %v240 = vunpack.c.l.b16 %v28
  %v241 = vunpack.c.h.b16 %v28
  %v242 = vunpack.c.l.b16 %v29
  %v243 = vunpack.c.l.b16 %v30
  %v244 = vunpack.c.h.b16 %v30
  %v245 = vunpack.c.l.b16 %v31
  %v246 = vunpack.c.h.b16 %v31
  %v247 = vunpack.c.l.b16 %v32
  %v248 = vunpack.c.h.b16 %v32
  %v249 = vunpack.c.l.b16 %v33
  %v250 = vunpack.c.l.b16 %v34
  %v251 = vunpack.c.h.b16 %v34
  %v252 = vunpack.c.l.b16 %v35
  %v253 = vunpack.c.h.b16 %v35
  %v254 = vunpack.c.l.b16 %v36
  %v255 = vunpack.c.h.b16 %v36
  %v256 = vunpack.c.l.b16 %v37
  %v257 = vunpack.c.l.b16 %v38
  %v258 = vunpack.c.h.b16 %v38
  %v259 = vunpack.c.l.b16 %v39
  %v260 = vunpack.c.h.b16 %v39
  %v261 = vunpack.c.l.b16 %v40
  %v262 = vunpack.c.h.b16 %v40
  %v263 = vunpack.c.l.b16 %v41
  %v264 = vunpack.c.l.b16 %v42
  %v265 = vunpack.c.h.b16 %v42
  %v266 = vunpack.c.l.b16 %v43
  %v267 = vunpack.c.h.b16 %v43
  %v268 = vunpack.c.l.b16 %v44
  %v269 = vunpack.c.h.b16 %v44
  %v270 = vunpack.c.l.b16 %v45
  %v271 = vunpack.c.l.b16 %v46
  %v272 = vunpack.c.h.b16 %v46
  %v273 = vunpack.c.l.b16 %v47
  %v274 = vunpack.c.h.b16 %v47
  %v275 = vunpack.c.l.b16 %v48
  %v276 = vunpack.c.h.b16 %v48
  %v277 = vunpack.c.l.b16 %v49
  %v278 = vunpack.c.l.b16 %v50
  %v279 = vunpack.c.h.b16 %v50
  %v280 = vunpack.c.l.b16 %v51
  %v281 = vunpack.c.h.b16 %v51
  %v282 = vunpack.c.l.b16 %v52
  %v283 = vunpack.c.h.b16 %v52
  %v284 = vunpack.c.l.b16 %v53
  %v285 = vunpack.c.l.b16 %v54
  %v286 = vunpack.c.h.b16 %v54
  %v287 = vunpack.c.l.b16 %v55
  %v288 = vunpack.c.h.b16 %v55
  %v289 = vunpack.c.l.b16 %v56
  %v290 = vunpack.c.h.b16 %v56
  %v291 = vunpack.c.l.b16 %v57
  %v292 = vunpack.c.l.b16 %v58
  %v293 = vunpack.c.h.b16 %v58
  %v294 = vunpack.c.l.b16 %v59
  %v295 = vunpack.c.h.b16 %v59
  %v296 = vunpack.c.l.b16 %v60
  %v297 = vunpack.c.h.b16 %v60
  %v298 = vunpack.c.l.b16 %v61
  %v299 = vunpack.c.l.b16 %v62
  %v300 = vunpack.c.h.b16 %v62
  %v301 = vunpack.c.l.b16 %v63
  %v302 = vunpack.c.h.b16 %v63
  %v303 = vunpack.c.l.b16 %v64
  %v304 = vunpack.c.h.b16 %v64
  %v305 = vunpack.c.l.b16 %v65
  %v306 = vunpack.c.l.b16 %v66
  %v307 = vunpack.c.h.b16 %v66
  %v308 = vunpack.c.l.b16 %v67
  %v309 = vunpack.c.h.b16 %v67
  %v310 = vunpack.c.l.b16 %v68
  %v311 = vunpack.c.h.b16 %v68
  %v312 = vunpack.c.l.b16 %v69
  %v313 = vpack.c.b16 %v229, %v222
  %v314 = vpack.c.b16 %v230, %v223
  %v315 = vpack.c.b16 %v231, %v224
  %v316 = vpack.c.b16 %v232, %v225
  %v317 = vpack.c.b16 %v233, %v226
  %v318 = vpack.c.b16 %v234, %v227
  %v319 = vpack.c.b16 %v235, %v228
  %v320 = vpack.c.b16 %v243, %v236
  %v321 = vpack.c.b16 %v244, %v237
  %v322 = vpack.c.b16 %v245, %v238
  %v323 = vpack.c.b16 %v246, %v239
  %v324 = vpack.c.b16 %v247, %v240
  %v325 = vpack.c.b16 %v248, %v241
  %v326 = vpack.c.b16 %v249, %v242
  %v327 = vpack.c.b16 %v257, %v250
  %v328 = vpack.c.b16 %v258, %v251
  %v329 = vpack.c.b16 %v259, %v252
  %v330 = vpack.c.b16 %v260, %v253
  %v331 = vpack.c.b16 %v261, %v254
  %v332 = vpack.c.b16 %v262, %v255
  %v333 = vpack.c.b16 %v263, %v256
  %v334 = vpack.c.b16 %v271, %v264
  %v335 = vpack.c.b16 %v272, %v265
  %v336 = vpack.c.b16 %v273, %v266
  %v337 = vpack.c.b16 %v274, %v267
  %v338 = vpack.c.b16 %v275, %v268
  %v339 = vpack.c.b16 %v276, %v269
  %v340 = vpack.c.b16 %v277, %v270
  %v341 = vpack.c.b16 %v285, %v278
  %v342 = vpack.c.b16 %v286, %v279
  %v343 = vpack.c.b16 %v287, %v280
  %v344 = vpack.c.b16 %v288, %v281
  %v345 = vpack.c.b16 %v289, %v282
  %v346 = vpack.c.b16 %v290, %v283
  %v347 = vpack.c.b16 %v291, %v284
  %v348 = vpack.c.b16 %v299, %v292
  %v349 = vpack.c.b16 %v300, %v293
  %v350 = vpack.c.b16 %v301, %v294
  %v351 = vpack.c.b16 %v302, %v295
  %v352 = vpack.c.b16 %v303, %v296
  %v353 = vpack.c.b16 %v304, %v297
  %v354 = vpack.c.b16 %v305, %v298
  %v355 = vpack.c.b16 %v306, %v306
  %v356 = vpack.c.b16 %v307, %v307
  %v357 = vpack.c.b16 %v308, %v308
  %v358 = vpack.c.b16 %v309, %v309
  %v359 = vpack.c.b16 %v310, %v310
  %v360 = vpack.c.b16 %v311, %v311
  %v361 = vpack.c.b16 %v312, %v312
  %v504 = vunpack.c.l.b16 %v70
  %v505 = vunpack.c.l.b16 %v71
  %v506 = vunpack.c.l.b16 %v72
  %v507 = vunpack.c.l.b16 %v73
  %v508 = vunpack.c.l.b16 %v74
  %v509 = vunpack.c.l.b16 %v75
  %v510 = vunpack.c.l.b16 %v76
  %v511 = vunpack.c.l.b16 %v77
  %v512 = vunpack.c.l.b16 %v78
  %v513 = vunpack.c.l.b16 %v79
  %v514 = vunpack.c.l.b16 %v80
  %v515 = vunpack.c.l.b16 %v81
  %v516 = vunpack.c.l.b16 %v82
  %v517 = vunpack.c.l.b16 %v83
  %v518 = vunpack.c.l.b16 %v84
  %v519 = vunpack.c.l.b16 %v85
  %v520 = vunpack.c.l.b16 %v86
  %v521 = vunpack.c.l.b16 %v87
  %v522 = vunpack.c.l.b16 %v88
  %v523 = vunpack.c.l.b16 %v89
  %v524 = vunpack.c.l.b16 %v90
  %v525 = vunpack.c.l.b16 %v91
  %v526 = vunpack.c.l.b16 %v92
  %v527 = vunpack.c.l.b16 %v93
  %v528 = vunpack.c.l.b16 %v94
  %v529 = vunpack.c.l.b16 %v95
  %v530 = vunpack.c.l.b16 %v96
  %v531 = vunpack.c.l.b16 %v97
  %v532 = vunpack.c.l.b16 %v98
  %v533 = vunpack.c.l.b16 %v99
  %v534 = vunpack.c.l.b16 %v100
  %v535 = vunpack.c.l.b16 %v101
  %v536 = vunpack.c.l.b16 %v102
  %v537 = vunpack.c.l.b16 %v103
  %v538 = vunpack.c.l.b16 %v104
  %v539 = vunpack.c.l.b16 %v105
  %v540 = vunpack.c.l.b16 %v106
  %v541 = vunpack.c.l.b16 %v107
  %v542 = vunpack.c.l.b16 %v108
  %v543 = vunpack.c.l.b16 %v109
  %v544 = vunpack.c.l.b16 %v110
  %v545 = vunpack.c.l.b16 %v111
  %v546 = vunpack.c.l.b16 %v112
  %v547 = vunpack.c.l.b16 %v113
  %v548 = vunpack.c.l.b16 %v114
  %v549 = vunpack.c.l.b16 %v115
  %v550 = vunpack.c.l.b16 %v116
  %v551 = vunpack.c.l.b16 %v117
  %v552 = vunpack.c.l.b16 %v118
  %v553 = vunpack.c.l.b16 %v119
  %v554 = vunpack.c.l.b16 %v120
  %v555 = vunpack.c.l.b16 %v121
  %v556 = vunpack.c.l.b16 %v122
  %v557 = vunpack.c.l.b16 %v123
  %v558 = vunpack.c.l.b16 %v124
  %v559 = vunpack.c.l.b16 %v125
  %v560 = vunpack.c.l.b16 %v126
  %v561 = vunpack.c.l.b16 %v127
  %v562 = vunpack.c.l.b16 %v128
  %v563 = vunpack.c.l.b16 %v129
  %v564 = vunpack.c.l.b16 %v130
  %v565 = vunpack.c.l.b16 %v131
  %v566 = vunpack.c.l.b16 %v132
  %v567 = vunpack.c.l.b16 %v133
  %v568 = vunpack.c.l.b16 %v134
  %v569 = vunpack.c.l.b16 %v135
  %v570 = vunpack.c.l.b16 %v136
  %v571 = vunpack.c.l.b16 %v137
  %v572 = vunpack.c.l.b16 %v138
  %v573 = vunpack.c.l.b16 %v139
  %v574 = vunpack.c.l.b16 %v140
  %v575 = vunpack.c.l.b16 %v141
  %v576 = vunpack.c.l.b16 %v142
  %v577 = vunpack.c.l.b16 %v143
  %v578 = vunpack.c.l.b16 %v144
  %v579 = vunpack.c.l.b16 %v145
  %v580 = vunpack.c.l.b16 %v146
  %v581 = vunpack.c.l.b16 %v147
  %v582 = vunpack.c.l.b16 %v148
  %v583 = vunpack.c.l.b16 %v149
  %v584 = vunpack.c.l.b16 %v150
  %v585 = vunpack.c.l.b16 %v151
  %v586 = vunpack.c.l.b16 %v152
  %v587 = vunpack.c.l.b16 %v153
  %v588 = vunpack.c.l.b16 %v154
  %v589 = vunpack.c.l.b16 %v155
  %v590 = vunpack.c.l.b16 %v156
  %v591 = vunpack.c.l.b16 %v157
  %v592 = vunpack.c.l.b16 %v158
  %v593 = vunpack.c.l.b16 %v159
  %v594 = vunpack.c.l.b16 %v160
  %v595 = vunpack.c.l.b16 %v161
  %v596 = vunpack.c.l.b16 %v162
  %v597 = vunpack.c.l.b16 %v163
  %v598 = vunpack.c.l.b16 %v164
  %v599 = vunpack.c.l.b16 %v165
  %v600 = vunpack.c.l.b16 %v166
  %v601 = vunpack.c.l.b16 %v167
  %v602 = vunpack.c.l.b16 %v168
  %v603 = vunpack.c.l.b16 %v169
  %v604 = vpack.c.b16 %v505, %v504
  %v605 = vpack.c.b16 %v507, %v506
  %v606 = vpack.c.b16 %v509, %v508
  %v607 = vpack.c.b16 %v511, %v510
  %v608 = vpack.c.b16 %v513, %v512
  %v609 = vpack.c.b16 %v515, %v514
  %v610 = vpack.c.b16 %v517, %v516
  %v611 = vpack.c.b16 %v519, %v518
  %v612 = vpack.c.b16 %v521, %v520
  %v613 = vpack.c.b16 %v523, %v522
  %v614 = vpack.c.b16 %v525, %v524
  %v615 = vpack.c.b16 %v527, %v526
  %v616 = vpack.c.b16 %v529, %v528
  %v617 = vpack.c.b16 %v531, %v530
  %v618 = vpack.c.b16 %v533, %v532
  %v619 = vpack.c.b16 %v535, %v534
  %v620 = vpack.c.b16 %v537, %v536
  %v621 = vpack.c.b16 %v539, %v538
  %v622 = vpack.c.b16 %v541, %v540
  %v623 = vpack.c.b16 %v543, %v542
  %v624 = vpack.c.b16 %v545, %v544
  %v625 = vpack.c.b16 %v547, %v546
  %v626 = vpack.c.b16 %v549, %v548
  %v627 = vpack.c.b16 %v551, %v550
  %v628 = vpack.c.b16 %v553, %v552
  %v629 = vpack.c.b16 %v555, %v554
  %v630 = vpack.c.b16 %v557, %v556
  %v631 = vpack.c.b16 %v559, %v558
  %v632 = vpack.c.b16 %v561, %v560
  %v633 = vpack.c.b16 %v563, %v562
  %v634 = vpack.c.b16 %v565, %v564
  %v635 = vpack.c.b16 %v567, %v566
  %v636 = vpack.c.b16 %v569, %v568
  %v637 = vpack.c.b16 %v571, %v570
  %v638 = vpack.c.b16 %v573, %v572
  %v639 = vpack.c.b16 %v575, %v574
  %v640 = vpack.c.b16 %v577, %v576
  %v641 = vpack.c.b16 %v579, %v578
  %v642 = vpack.c.b16 %v581, %v580
  %v643 = vpack.c.b16 %v583, %v582
  %v644 = vpack.c.b16 %v585, %v584
  %v645 = vpack.c.b16 %v587, %v586
  %v646 = vpack.c.b16 %v589, %v588
  %v647 = vpack.c.b16 %v591, %v590
  %v648 = vpack.c.b16 %v593, %v592
  %v649 = vpack.c.b16 %v595, %v594
  %v650 = vpack.c.b16 %v597, %v596
  %v651 = vpack.c.b16 %v599, %v598
  %v652 = vpack.c.b16 %v601, %v600
  %v653 = vpack.c.b16 %v603, %v602
  %vm704 = vcmask 261120
  %v706 = vsel %vm704, %v319, 0
  %v709 = vsel %vm704, %v326, 0
  %v712 = vsel %vm704, %v333, 0
  %v715 = vsel %vm704, %v340, 0
  %v718 = vsel %vm704, %v347, 0
  %v721 = vsel %vm704, %v354, 0
  %v724 = vsel %vm704, %v361, 0
  %726 = vmatpush.bf16.msra.mxu0 %v611
  %727 = vmatpush.bf16.msra.mxu0 %v610
  %728 = vmatpush.bf16.msra.mxu0 %v609
  %729 = vmatpush.bf16.msra.mxu0 %v608
  %730 = vmatpush.bf16.msra.mxu0 %v607
  %731 = vmatpush.bf16.msra.mxu0 %v606
  %732 = vmatpush.bf16.msra.mxu0 %v605
  %733 = vmatpush.bf16.msra.mxu0 %v604
  %734 = vmatmul.bf16.gmra.mxu0 %v313
  %v735 = vpop.f32.mrf.mxu0
  %v736 = vadd.f32 0.0, %v735
  %v737 = vpop.f32.mrf.mxu0
  %v738 = vadd.f32 0.0, %v737
  %739 = vmatmul.bf16.gmra.mxu0 %v320
  %v740 = vpop.f32.mrf.mxu0
  %v741 = vadd.f32 0.0, %v740
  %v742 = vpop.f32.mrf.mxu0
  %v743 = vadd.f32 0.0, %v742
  %744 = vmatmul.bf16.gmra.mxu0 %v327
  %v745 = vpop.f32.mrf.mxu0
  %v746 = vadd.f32 0.0, %v745
  %v747 = vpop.f32.mrf.mxu0
  %v748 = vadd.f32 0.0, %v747
  %749 = vmatmul.bf16.gmra.mxu0 %v334
  %v750 = vpop.f32.mrf.mxu0
  %v751 = vadd.f32 0.0, %v750
  %v752 = vpop.f32.mrf.mxu0
  %v753 = vadd.f32 0.0, %v752
  %754 = vmatmul.bf16.gmra.mxu0 %v341
  %v755 = vpop.f32.mrf.mxu0
  %v756 = vadd.f32 0.0, %v755
  %v757 = vpop.f32.mrf.mxu0
  %v758 = vadd.f32 0.0, %v757
  %759 = vmatmul.bf16.gmra.mxu0 %v348
  %v760 = vpop.f32.mrf.mxu0
  %v761 = vadd.f32 0.0, %v760
  %v762 = vpop.f32.mrf.mxu0
  %v763 = vadd.f32 0.0, %v762
  %764 = vmatmul.bf16.gmra.mxu0 %v355
  %v765 = vpop.f32.mrf.mxu0
  %v766 = vadd.f32 0.0, %v765
  %v767 = vpop.f32.mrf.mxu0
  %768 = vdwg.mxu0
  %769 = vmatpush.bf16.msra.mxu0 %v619
  %770 = vmatpush.bf16.msra.mxu0 %v618
  %771 = vmatpush.bf16.msra.mxu0 %v617
  %772 = vmatpush.bf16.msra.mxu0 %v616
  %773 = vmatpush.bf16.msra.mxu0 %v615
  %774 = vmatpush.bf16.msra.mxu0 %v614
  %775 = vmatpush.bf16.msra.mxu0 %v613
  %776 = vmatpush.bf16.msra.mxu0 %v612
  %777 = vmatmul.bf16.gmra.mxu0 %v314
  %v778 = vpop.f32.mrf.mxu0
  %v779 = vadd.f32 %v736, %v778
  %v780 = vpop.f32.mrf.mxu0
  %v781 = vadd.f32 %v738, %v780
  %782 = vmatmul.bf16.gmra.mxu0 %v321
  %v783 = vpop.f32.mrf.mxu0
  %v784 = vadd.f32 %v741, %v783
  %v785 = vpop.f32.mrf.mxu0
  %v786 = vadd.f32 %v743, %v785
  %787 = vmatmul.bf16.gmra.mxu0 %v328
  %v788 = vpop.f32.mrf.mxu0
  %v789 = vadd.f32 %v746, %v788
  %v790 = vpop.f32.mrf.mxu0
  %v791 = vadd.f32 %v748, %v790
  %792 = vmatmul.bf16.gmra.mxu0 %v335
  %v793 = vpop.f32.mrf.mxu0
  %v794 = vadd.f32 %v751, %v793
  %v795 = vpop.f32.mrf.mxu0
  %v796 = vadd.f32 %v753, %v795
  %797 = vmatmul.bf16.gmra.mxu0 %v342
  %v798 = vpop.f32.mrf.mxu0
  %v799 = vadd.f32 %v756, %v798
  %v800 = vpop.f32.mrf.mxu0
  %v801 = vadd.f32 %v758, %v800
  %802 = vmatmul.bf16.gmra.mxu0 %v349
  %v803 = vpop.f32.mrf.mxu0
  %v804 = vadd.f32 %v761, %v803
  %v805 = vpop.f32.mrf.mxu0
  %v806 = vadd.f32 %v763, %v805
  %807 = vmatmul.bf16.gmra.mxu0 %v356
  %v808 = vpop.f32.mrf.mxu0
  %v809 = vadd.f32 %v766, %v808
  %v810 = vpop.f32.mrf.mxu0
  %811 = vdwg.mxu0
  %812 = vmatpush.bf16.msra.mxu0 %v627
  %813 = vmatpush.bf16.msra.mxu0 %v626
  %814 = vmatpush.bf16.msra.mxu0 %v625
  %815 = vmatpush.bf16.msra.mxu0 %v624
  %816 = vmatpush.bf16.msra.mxu0 %v623
  %817 = vmatpush.bf16.msra.mxu0 %v622
  %818 = vmatpush.bf16.msra.mxu0 %v621
  %819 = vmatpush.bf16.msra.mxu0 %v620
  %820 = vmatmul.bf16.gmra.mxu0 %v315
  %v821 = vpop.f32.mrf.mxu0
  %v822 = vadd.f32 %v779, %v821
  %v823 = vpop.f32.mrf.mxu0
  %v824 = vadd.f32 %v781, %v823
  %825 = vmatmul.bf16.gmra.mxu0 %v322
  %v826 = vpop.f32.mrf.mxu0
  %v827 = vadd.f32 %v784, %v826
  %v828 = vpop.f32.mrf.mxu0
  %v829 = vadd.f32 %v786, %v828
  %830 = vmatmul.bf16.gmra.mxu0 %v329
  %v831 = vpop.f32.mrf.mxu0
  %v832 = vadd.f32 %v789, %v831
  %v833 = vpop.f32.mrf.mxu0
  %v834 = vadd.f32 %v791, %v833
  %835 = vmatmul.bf16.gmra.mxu0 %v336
  %v836 = vpop.f32.mrf.mxu0
  %v837 = vadd.f32 %v794, %v836
  %v838 = vpop.f32.mrf.mxu0
  %v839 = vadd.f32 %v796, %v838
  %840 = vmatmul.bf16.gmra.mxu0 %v343
  %v841 = vpop.f32.mrf.mxu0
  %v842 = vadd.f32 %v799, %v841
  %v843 = vpop.f32.mrf.mxu0
  %v844 = vadd.f32 %v801, %v843
  %845 = vmatmul.bf16.gmra.mxu0 %v350
  %v846 = vpop.f32.mrf.mxu0
  %v847 = vadd.f32 %v804, %v846
  %v848 = vpop.f32.mrf.mxu0
  %v849 = vadd.f32 %v806, %v848
  %850 = vmatmul.bf16.gmra.mxu0 %v357
  %v851 = vpop.f32.mrf.mxu0
  %v852 = vadd.f32 %v809, %v851
  %v853 = vpop.f32.mrf.mxu0
  %854 = vdwg.mxu0
  %855 = vmatpush.bf16.msra.mxu0 %v635
  %856 = vmatpush.bf16.msra.mxu0 %v634
  %857 = vmatpush.bf16.msra.mxu0 %v633
  %858 = vmatpush.bf16.msra.mxu0 %v632
  %859 = vmatpush.bf16.msra.mxu0 %v631
  %860 = vmatpush.bf16.msra.mxu0 %v630
  %861 = vmatpush.bf16.msra.mxu0 %v629
  %862 = vmatpush.bf16.msra.mxu0 %v628
  %863 = vmatmul.bf16.gmra.mxu0 %v316
  %v864 = vpop.f32.mrf.mxu0
  %v865 = vadd.f32 %v822, %v864
  %v866 = vpop.f32.mrf.mxu0
  %v867 = vadd.f32 %v824, %v866
  %868 = vmatmul.bf16.gmra.mxu0 %v323
  %v869 = vpop.f32.mrf.mxu0
  %v870 = vadd.f32 %v827, %v869
  %v871 = vpop.f32.mrf.mxu0
  %v872 = vadd.f32 %v829, %v871
  %873 = vmatmul.bf16.gmra.mxu0 %v330
  %v874 = vpop.f32.mrf.mxu0
  %v875 = vadd.f32 %v832, %v874
  %v876 = vpop.f32.mrf.mxu0
  %v877 = vadd.f32 %v834, %v876
  %878 = vmatmul.bf16.gmra.mxu0 %v337
  %v879 = vpop.f32.mrf.mxu0
  %v880 = vadd.f32 %v837, %v879
  %v881 = vpop.f32.mrf.mxu0
  %v882 = vadd.f32 %v839, %v881
  %883 = vmatmul.bf16.gmra.mxu0 %v344
  %v884 = vpop.f32.mrf.mxu0
  %v885 = vadd.f32 %v842, %v884
  %v886 = vpop.f32.mrf.mxu0
  %v887 = vadd.f32 %v844, %v886
  %888 = vmatmul.bf16.gmra.mxu0 %v351
  %v889 = vpop.f32.mrf.mxu0
  %v890 = vadd.f32 %v847, %v889
  %v891 = vpop.f32.mrf.mxu0
  %v892 = vadd.f32 %v849, %v891
  %893 = vmatmul.bf16.gmra.mxu0 %v358
  %v894 = vpop.f32.mrf.mxu0
  %v895 = vadd.f32 %v852, %v894
  %v896 = vpop.f32.mrf.mxu0
  %897 = vdwg.mxu0
  %898 = vmatpush.bf16.msra.mxu0 %v643
  %899 = vmatpush.bf16.msra.mxu0 %v642
  %900 = vmatpush.bf16.msra.mxu0 %v641
  %901 = vmatpush.bf16.msra.mxu0 %v640
  %902 = vmatpush.bf16.msra.mxu0 %v639
  %903 = vmatpush.bf16.msra.mxu0 %v638
  %904 = vmatpush.bf16.msra.mxu0 %v637
  %905 = vmatpush.bf16.msra.mxu0 %v636
  %906 = vmatmul.bf16.gmra.mxu0 %v317
  %v907 = vpop.f32.mrf.mxu0
  %v908 = vadd.f32 %v865, %v907
  %v909 = vpop.f32.mrf.mxu0
  %v910 = vadd.f32 %v867, %v909
  %911 = vmatmul.bf16.gmra.mxu0 %v324
  %v912 = vpop.f32.mrf.mxu0
  %v913 = vadd.f32 %v870, %v912
  %v914 = vpop.f32.mrf.mxu0
  %v915 = vadd.f32 %v872, %v914
  %916 = vmatmul.bf16.gmra.mxu0 %v331
  %v917 = vpop.f32.mrf.mxu0
  %v918 = vadd.f32 %v875, %v917
  %v919 = vpop.f32.mrf.mxu0
  %v920 = vadd.f32 %v877, %v919
  %921 = vmatmul.bf16.gmra.mxu0 %v338
  %v922 = vpop.f32.mrf.mxu0
  %v923 = vadd.f32 %v880, %v922
  %v924 = vpop.f32.mrf.mxu0
  %v925 = vadd.f32 %v882, %v924
  %926 = vmatmul.bf16.gmra.mxu0 %v345
  %v927 = vpop.f32.mrf.mxu0
  %v928 = vadd.f32 %v885, %v927
  %v929 = vpop.f32.mrf.mxu0
  %v930 = vadd.f32 %v887, %v929
  %931 = vmatmul.bf16.gmra.mxu0 %v352
  %v932 = vpop.f32.mrf.mxu0
  %v933 = vadd.f32 %v890, %v932
  %v934 = vpop.f32.mrf.mxu0
  %v935 = vadd.f32 %v892, %v934
  %936 = vmatmul.bf16.gmra.mxu0 %v359
  %v937 = vpop.f32.mrf.mxu0
  %v938 = vadd.f32 %v895, %v937
  %v939 = vpop.f32.mrf.mxu0
  %940 = vdwg.mxu0
  %941 = vmatpush.bf16.msra.mxu0 %v651
  %942 = vmatpush.bf16.msra.mxu0 %v650
  %943 = vmatpush.bf16.msra.mxu0 %v649
  %944 = vmatpush.bf16.msra.mxu0 %v648
  %945 = vmatpush.bf16.msra.mxu0 %v647
  %946 = vmatpush.bf16.msra.mxu0 %v646
  %947 = vmatpush.bf16.msra.mxu0 %v645
  %948 = vmatpush.bf16.msra.mxu0 %v644
  %949 = vmatmul.bf16.gmra.mxu0 %v318
  %v950 = vpop.f32.mrf.mxu0
  %v951 = vadd.f32 %v908, %v950
  %v952 = vpop.f32.mrf.mxu0
  %v953 = vadd.f32 %v910, %v952
  %954 = vmatmul.bf16.gmra.mxu0 %v325
  %v955 = vpop.f32.mrf.mxu0
  %v956 = vadd.f32 %v913, %v955
  %v957 = vpop.f32.mrf.mxu0
  %v958 = vadd.f32 %v915, %v957
  %959 = vmatmul.bf16.gmra.mxu0 %v332
  %v960 = vpop.f32.mrf.mxu0
  %v961 = vadd.f32 %v918, %v960
  %v962 = vpop.f32.mrf.mxu0
  %v963 = vadd.f32 %v920, %v962
  %964 = vmatmul.bf16.gmra.mxu0 %v339
  %v965 = vpop.f32.mrf.mxu0
  %v966 = vadd.f32 %v923, %v965
  %v967 = vpop.f32.mrf.mxu0
  %v968 = vadd.f32 %v925, %v967
  %969 = vmatmul.bf16.gmra.mxu0 %v346
  %v970 = vpop.f32.mrf.mxu0
  %v971 = vadd.f32 %v928, %v970
  %v972 = vpop.f32.mrf.mxu0
  %v973 = vadd.f32 %v930, %v972
  %974 = vmatmul.bf16.gmra.mxu0 %v353
  %v975 = vpop.f32.mrf.mxu0
  %v976 = vadd.f32 %v933, %v975
  %v977 = vpop.f32.mrf.mxu0
  %v978 = vadd.f32 %v935, %v977
  %979 = vmatmul.bf16.gmra.mxu0 %v360
  %v980 = vpop.f32.mrf.mxu0
  %v981 = vadd.f32 %v938, %v980
  %v982 = vpop.f32.mrf.mxu0
  %983 = vdwg.mxu0
  %984 = vmatpush.bf16.msra.mxu0 0
  %985 = vmatpush.bf16.msra.mxu0 0
  %986 = vmatpush.bf16.msra.mxu0 0
  %987 = vmatpush.bf16.msra.mxu0 0
  %988 = vmatpush.bf16.msra.mxu0 0
  %989 = vmatpush.bf16.msra.mxu0 0
  %990 = vmatpush.bf16.msra.mxu0 %v653
  %991 = vmatpush.bf16.msra.mxu0 %v652
  %992 = vmatmul.bf16.gmra.mxu0 %v706
  %v993 = vpop.f32.mrf.mxu0
  %v994 = vadd.f32 %v951, %v993
  %v995 = vpop.f32.mrf.mxu0
  %v996 = vadd.f32 %v953, %v995
  %997 = vmatmul.bf16.gmra.mxu0 %v709
  %v998 = vpop.f32.mrf.mxu0
  %v999 = vadd.f32 %v956, %v998
  %v1000 = vpop.f32.mrf.mxu0
  %v1001 = vadd.f32 %v958, %v1000
  %1002 = vmatmul.bf16.gmra.mxu0 %v712
  %v1003 = vpop.f32.mrf.mxu0
  %v1004 = vadd.f32 %v961, %v1003
  %v1005 = vpop.f32.mrf.mxu0
  %v1006 = vadd.f32 %v963, %v1005
  %1007 = vmatmul.bf16.gmra.mxu0 %v715
  %v1008 = vpop.f32.mrf.mxu0
  %v1009 = vadd.f32 %v966, %v1008
  %v1010 = vpop.f32.mrf.mxu0
  %v1011 = vadd.f32 %v968, %v1010
  %1012 = vmatmul.bf16.gmra.mxu0 %v718
  %v1013 = vpop.f32.mrf.mxu0
  %v1014 = vadd.f32 %v971, %v1013
  %v1015 = vpop.f32.mrf.mxu0
  %v1016 = vadd.f32 %v973, %v1015
  %1017 = vmatmul.bf16.gmra.mxu0 %v721
  %v1018 = vpop.f32.mrf.mxu0
  %v1019 = vadd.f32 %v976, %v1018
  %v1020 = vpop.f32.mrf.mxu0
  %v1021 = vadd.f32 %v978, %v1020
  %1022 = vmatmul.bf16.gmra.mxu0 %v724
  %v1023 = vpop.f32.mrf.mxu0
  %v1024 = vadd.f32 %v981, %v1023
  %v1025 = vpop.f32.mrf.mxu0
  %1026 = vdwg.mxu0
  %vm1027 = vcmask 523264
  %v1028 = vsel %vm1027, %v994, 0.0
  %v1029 = vsel %vm1027, %v996, 0.0
  %v1030 = vadd.f32 %v1028, %v1029
  %v1031 = vsel %vm1027, %v999, 0.0
  %v1032 = vadd.f32 %v1030, %v1031
  %v1033 = vsel %vm1027, %v1001, 0.0
  %v1034 = vadd.f32 %v1032, %v1033
  %v1035 = vsel %vm1027, %v1004, 0.0
  %v1036 = vadd.f32 %v1034, %v1035
  %v1037 = vsel %vm1027, %v1006, 0.0
  %v1038 = vadd.f32 %v1036, %v1037
  %v1039 = vsel %vm1027, %v1009, 0.0
  %v1040 = vadd.f32 %v1038, %v1039
  %v1041 = vsel %vm1027, %v1011, 0.0
  %v1042 = vadd.f32 %v1040, %v1041
  %v1043 = vsel %vm1027, %v1014, 0.0
  %v1044 = vadd.f32 %v1042, %v1043
  %v1045 = vsel %vm1027, %v1016, 0.0
  %v1046 = vadd.f32 %v1044, %v1045
  %v1047 = vsel %vm1027, %v1019, 0.0
  %v1048 = vadd.f32 %v1046, %v1047
  %v1049 = vsel %vm1027, %v1021, 0.0
  %v1050 = vadd.f32 %v1048, %v1049
  %vm1051 = vcmask 517120
  %v1052 = vsel %vm1051, %v1024, 0.0
  %v1053 = vadd.f32 %v1050, %v1052
  %v1054 = vrot.slane %v1053, 4
  %v1055 = vadd.f32 %v1053, %v1054
  %v1056 = vrot.slane %v1055, 2
  %v1057 = vadd.f32 %v1055, %v1056
  %v1058 = vrot.slane %v1057, 1
  %v1059 = vadd.f32 %v1057, %v1058
  %v1060 = vmul.f32 %v1059, 0.010204081
  %v1061 = vmul.f32 %v994, %v994
  %v1062 = vmul.f32 %v996, %v996
  %v1063 = vmul.f32 %v999, %v999
  %v1064 = vmul.f32 %v1001, %v1001
  %v1065 = vmul.f32 %v1004, %v1004
  %v1066 = vmul.f32 %v1006, %v1006
  %v1067 = vmul.f32 %v1009, %v1009
  %v1068 = vmul.f32 %v1011, %v1011
  %v1069 = vmul.f32 %v1014, %v1014
  %v1070 = vmul.f32 %v1016, %v1016
  %v1071 = vmul.f32 %v1019, %v1019
  %v1072 = vmul.f32 %v1021, %v1021
  %v1073 = vmul.f32 %v1024, %v1024
  %v1074 = vsel %vm1027, %v1061, 0.0
  %v1075 = vsel %vm1027, %v1062, 0.0
  %v1076 = vadd.f32 %v1074, %v1075
  %v1077 = vsel %vm1027, %v1063, 0.0
  %v1078 = vadd.f32 %v1076, %v1077
  %v1079 = vsel %vm1027, %v1064, 0.0
  %v1080 = vadd.f32 %v1078, %v1079
  %v1081 = vsel %vm1027, %v1065, 0.0
  %v1082 = vadd.f32 %v1080, %v1081
  %v1083 = vsel %vm1027, %v1066, 0.0
  %v1084 = vadd.f32 %v1082, %v1083
  %v1085 = vsel %vm1027, %v1067, 0.0
  %v1086 = vadd.f32 %v1084, %v1085
  %v1087 = vsel %vm1027, %v1068, 0.0
  %v1088 = vadd.f32 %v1086, %v1087
  %v1089 = vsel %vm1027, %v1069, 0.0
  %v1090 = vadd.f32 %v1088, %v1089
  %v1091 = vsel %vm1027, %v1070, 0.0
  %v1092 = vadd.f32 %v1090, %v1091
  %v1093 = vsel %vm1027, %v1071, 0.0
  %v1094 = vadd.f32 %v1092, %v1093
  %v1095 = vsel %vm1027, %v1072, 0.0
  %v1096 = vadd.f32 %v1094, %v1095
  %v1097 = vsel %vm1051, %v1073, 0.0
  %v1098 = vadd.f32 %v1096, %v1097
  %v1099 = vrot.slane %v1098, 4
  %v1100 = vadd.f32 %v1098, %v1099
  %v1101 = vrot.slane %v1100, 2
  %v1102 = vadd.f32 %v1100, %v1101
  %v1103 = vrot.slane %v1102, 1
  %v1104 = vadd.f32 %v1102, %v1103
  %v1105 = vmul.f32 %v1104, 0.010204081
  %v1106 = vmul.f32 %v1060, %v1060
  %v1107 = vsub.f32 %v1105, %v1106
  %v1108 = vld [vmem:[%s2] sm:$0x1]
  %v1109 = vadd.f32 %v1107, 1e-05
  %v1110 = vrsqrt.pop %v1109
  %v1111 = vmul.f32 %v1110, %v1109
  %v1112 = vmul.f32 %v1111, %v1110
  %v1113 = vmul.f32 0.5, %v1112
  %v1114 = vsub.f32 1.5, %v1113
  %v1115 = vmul.f32 %v1110, %v1114
  %vm1116 = vweird.f32 %v1109
  %vm1117 = vweird.f32 %v1110
  %vm1118 = vmor %vm1116, %vm1117
  %v1119 = vsel %vm1118, %v1110, %v1115
  %v1120 = vmul.f32 %v1108, %v1119
  %v1121 = vld [vmem:[%s3] sm:$0x1]
  %v1122 = vmul.f32 %v1060, %v1120
  %v1123 = vsub.f32 %v1121, %v1122
  %v1125 = vperm.slane %v1120, 0
  %v1127 = vmul.f32 %v994, %v1125
  %v1128 = vmul.f32 %v996, %v1125
  %v1129 = vmul.f32 %v999, %v1125
  %v1130 = vmul.f32 %v1001, %v1125
  %v1131 = vmul.f32 %v1004, %v1125
  %v1132 = vmul.f32 %v1006, %v1125
  %v1133 = vmul.f32 %v1009, %v1125
  %v1134 = vmul.f32 %v1011, %v1125
  %v1135 = vmul.f32 %v1014, %v1125
  %v1136 = vmul.f32 %v1016, %v1125
  %v1137 = vmul.f32 %v1019, %v1125
  %v1138 = vmul.f32 %v1021, %v1125
  %v1139 = vmul.f32 %v1024, %v1125
  %v1141 = vperm.slane %v1123, 0
  %v1143 = vadd.f32 %v1127, %v1141
  %v1144 = vadd.f32 %v1128, %v1141
  %v1145 = vadd.f32 %v1129, %v1141
  %v1146 = vadd.f32 %v1130, %v1141
  %v1147 = vadd.f32 %v1131, %v1141
  %v1148 = vadd.f32 %v1132, %v1141
  %v1149 = vadd.f32 %v1133, %v1141
  %v1150 = vadd.f32 %v1134, %v1141
  %v1151 = vadd.f32 %v1135, %v1141
  %v1152 = vadd.f32 %v1136, %v1141
  %v1153 = vadd.f32 %v1137, %v1141
  %v1154 = vadd.f32 %v1138, %v1141
  %v1155 = vadd.f32 %v1139, %v1141
  %v1156 = vmax.f32 %v1143, 0.0
  %v1157 = vmax.f32 %v1144, 0.0
  %v1158 = vmax.f32 %v1145, 0.0
  %v1159 = vmax.f32 %v1146, 0.0
  %v1160 = vmax.f32 %v1147, 0.0
  %v1161 = vmax.f32 %v1148, 0.0
  %v1162 = vmax.f32 %v1149, 0.0
  %v1163 = vmax.f32 %v1150, 0.0
  %v1164 = vmax.f32 %v1151, 0.0
  %v1165 = vmax.f32 %v1152, 0.0
  %v1166 = vmax.f32 %v1153, 0.0
  %v1167 = vmax.f32 %v1154, 0.0
  %v1168 = vmax.f32 %v1155, 0.0
  %v1169 = vpack.c.bf16 %v1156, %v1156
  %v1170 = vpack.c.bf16 %v1157, %v1157
  %v1171 = vpack.c.bf16 %v1158, %v1158
  %v1172 = vpack.c.bf16 %v1159, %v1159
  %v1173 = vpack.c.bf16 %v1160, %v1160
  %v1174 = vpack.c.bf16 %v1161, %v1161
  %v1175 = vpack.c.bf16 %v1162, %v1162
  %v1176 = vpack.c.bf16 %v1163, %v1163
  %v1177 = vpack.c.bf16 %v1164, %v1164
  %v1178 = vpack.c.bf16 %v1165, %v1165
  %v1179 = vpack.c.bf16 %v1166, %v1166
  %v1180 = vpack.c.bf16 %v1167, %v1167
  %v1181 = vpack.c.bf16 %v1168, %v1168
  %vm1182 = vcmask 519168
  %1183 = vst.msk [vmem:[%s4] sm:$0xf] %vm1182, %v1169
  %1184 = vst.msk [vmem:[%s4 + $0x4] sm:$0xf] %vm1182, %v1170
  %1185 = vst.msk [vmem:[%s4 + $0x8] sm:$0xf] %vm1182, %v1171
  %1186 = vst.msk [vmem:[%s4 + $0xc] sm:$0xf] %vm1182, %v1172
  %1187 = vst.msk [vmem:[%s4 + $0x10] sm:$0xf] %vm1182, %v1173
  %1188 = vst.msk [vmem:[%s4 + $0x14] sm:$0xf] %vm1182, %v1174
  %1189 = vst.msk [vmem:[%s4 + $0x18] sm:$0xf] %vm1182, %v1175
  %1190 = vst.msk [vmem:[%s4 + $0x1c] sm:$0xf] %vm1182, %v1176
  %1191 = vst.msk [vmem:[%s4 + $0x20] sm:$0xf] %vm1182, %v1177
  %1192 = vst.msk [vmem:[%s4 + $0x24] sm:$0xf] %vm1182, %v1178
  %1193 = vst.msk [vmem:[%s4 + $0x28] sm:$0xf] %vm1182, %v1179
  %1194 = vst.msk [vmem:[%s4 + $0x2c] sm:$0xf] %vm1182, %v1180
  %vm1195 = vcmask 516096
  %1196 = vst.msk [vmem:[%s4 + $0x30] sm:$0x1] %vm1195, %v1181
  // Predicated region
  $region18: #{autoencoder_mnist_forward.4} parent=0 // pred_check
    _
  $region19: #{autoencoder_mnist_forward.4} parent=0 // pred_check_branch
    %1198 = sbr.rel (0) target = $region21
  $region20: #{autoencoder_mnist_forward.4} parent=0 // pred_region
    _
  $region21: #{autoencoder_mnist_forward.4} parent=0 // pred_fallthru
    _
  // Predicated region
  $region22: #{autoencoder_mnist_forward.4} parent=0 // pred_check
    _
  $region23: #{autoencoder_mnist_forward.4} parent=0 // pred_check_branch
    %1200 = sbr.rel (0) target = $region25
  $region24: #{autoencoder_mnist_forward.4} parent=0 // pred_region
    _
  $region25: #{autoencoder_mnist_forward.4} parent=0 // pred_fallthru
    _

// kernel: autoencoder_mnist_forward.5
$region0: #{autoencoder_mnist_forward.5}
  #allocation0 [shape = 'u32[]', space=smem, size = 0x4, offset = 0x4, fixed_abs, tag = 'smem constant byte address 0x4 - core index']
  #allocation1 [shape = 'u32[72,128]{1,0:T(1,128)}', space=vmem, size = 0x9000, scoped, tag = 'internal scratch']
  %s0 = inlined_call_operand.vmem [shape: bf16[32,1600], index: 0, kind: input, shape index: {}]
  %s1 = inlined_call_operand.vmem [shape: bf16[1600,128], index: 1, kind: input, shape index: {}]
  %s2 = inlined_call_operand.vmem [shape: f32[1,128], index: 2, kind: input, shape index: {}]
  %s3 = inlined_call_operand.vmem [shape: f32[1,128], index: 3, kind: input, shape index: {}]
  %s4 = inlined_call_operand.vmem [shape: bf16[16,128,32], index: 4, kind: input, shape index: {}]
  %s5 = inlined_call_operand.vmem [shape: f32[1,32], index: 5, kind: input, shape index: {}]
  %s6 = inlined_call_operand.hbm [shape: f32[2,32], index: 6, kind: output, shape index: {}]
  %s7 = sld [smem:[#allocation0]]
  $region34: #{autoencoder_mnist_forward.5} parent=0
    _
  %s9 = ssub.s32 1, %s7
  %s10 = scalar_select 0, %s9, %s7
  $region1: #{autoencoder_mnist_forward.5} parent=0
    #allocation2 [shape = 'u8[1024]{0}', space=vmem, size = 0x400, scoped, tag = 'output window, operand 0, single buffered']
    #allocation3 [shape = 's32[1]{0}', space=sflag, size = 0x4, scoped, tag = 'scoped memory for autoencoder_mnist_forward.5']
    %11 = vsyncpa [#allocation3], 0
    // Predicated region
    $region2: #{autoencoder_mnist_forward.5} parent=1 // pred_check
      _
    $region3: #{autoencoder_mnist_forward.5} parent=1 // pred_check_branch
      %13 = sbr.rel (0) target = $region5
    $region4: #{autoencoder_mnist_forward.5} parent=1 // pred_region
      _
    $region5: #{autoencoder_mnist_forward.5} parent=1 // pred_fallthru
      _
    // Predicated region
    $region6: #{autoencoder_mnist_forward.5} parent=1 // pred_check
      _
    $region7: #{autoencoder_mnist_forward.5} parent=1 // pred_check_branch
      %15 = sbr.rel (0) target = $region9
    $region8: #{autoencoder_mnist_forward.5} parent=1 // pred_region
      _
    $region9: #{autoencoder_mnist_forward.5} parent=1 // pred_fallthru
      _
    // Predicated region
    $region10: #{autoencoder_mnist_forward.5} parent=1 // pred_check
      _
    $region11: #{autoencoder_mnist_forward.5} parent=1 // pred_check_branch
      %17 = sbr.rel (0) target = $region13
    $region12: #{autoencoder_mnist_forward.5} parent=1 // pred_region
      _
    $region13: #{autoencoder_mnist_forward.5} parent=1 // pred_fallthru
      _
    // Predicated region
    $region14: #{autoencoder_mnist_forward.5} parent=1 // pred_check
      _
    $region15: #{autoencoder_mnist_forward.5} parent=1 // pred_check_branch
      %19 = sbr.rel (0) target = $region17
    $region16: #{autoencoder_mnist_forward.5} parent=1 // pred_region
      _
    $region17: #{autoencoder_mnist_forward.5} parent=1 // pred_fallthru
      _
    // Predicated region
    $region18: #{autoencoder_mnist_forward.5} parent=1 // pred_check
      _
    $region19: #{autoencoder_mnist_forward.5} parent=1 // pred_check_branch
      %21 = sbr.rel (0) target = $region21
    $region20: #{autoencoder_mnist_forward.5} parent=1 // pred_region
      _
    $region21: #{autoencoder_mnist_forward.5} parent=1 // pred_fallthru
      _
    // Predicated region
    $region22: #{autoencoder_mnist_forward.5} parent=1 // pred_check
      _
    $region23: #{autoencoder_mnist_forward.5} parent=1 // pred_check_branch
      %23 = sbr.rel (0) target = $region25
    $region24: #{autoencoder_mnist_forward.5} parent=1 // pred_region
      _
    $region25: #{autoencoder_mnist_forward.5} parent=1 // pred_fallthru
      _
    %v25 = vld [vmem:[%s0] sm:$0xff]
    %v26 = vld [vmem:[%s0 + $0x8] sm:$0xff]
    %v27 = vld [vmem:[%s0 + $0x10] sm:$0xff]
    %v28 = vld [vmem:[%s0 + $0x18] sm:$0xff]
    %v29 = vld [vmem:[%s0 + $0x20] sm:$0xff]
    %v30 = vld [vmem:[%s0 + $0x28] sm:$0xff]
    %v31 = vld [vmem:[%s0 + $0x30] sm:$0xf]
    %v32 = vld [vmem:[%s0 + $0x34] sm:$0xff]
    %v33 = vld [vmem:[%s0 + $0x3c] sm:$0xff]
    %v34 = vld [vmem:[%s0 + $0x44] sm:$0xff]
    %v35 = vld [vmem:[%s0 + $0x4c] sm:$0xff]
    %v36 = vld [vmem:[%s0 + $0x54] sm:$0xff]
    %v37 = vld [vmem:[%s0 + $0x5c] sm:$0xff]
    %v38 = vld [vmem:[%s0 + $0x64] sm:$0xf]
    %v39 = vld [vmem:[%s0 + $0x68] sm:$0xff]
    %v40 = vld [vmem:[%s0 + $0x70] sm:$0xff]
    %v41 = vld [vmem:[%s0 + $0x78] sm:$0xff]
    %v42 = vld [vmem:[%s0 + $0x80] sm:$0xff]
    %v43 = vld [vmem:[%s0 + $0x88] sm:$0xff]
    %v44 = vld [vmem:[%s0 + $0x90] sm:$0xff]
    %v45 = vld [vmem:[%s0 + $0x98] sm:$0xf]
    %v46 = vld [vmem:[%s0 + $0x9c] sm:$0xff]
    %v47 = vld [vmem:[%s0 + $0xa4] sm:$0xff]
    %v48 = vld [vmem:[%s0 + $0xac] sm:$0xff]
    %v49 = vld [vmem:[%s0 + $0xb4] sm:$0xff]
    %v50 = vld [vmem:[%s0 + $0xbc] sm:$0xff]
    %v51 = vld [vmem:[%s0 + $0xc4] sm:$0xff]
    %v52 = vld [vmem:[%s0 + $0xcc] sm:$0xf]
    %v53 = vld [vmem:[%s1] sm:$0xf]
    %v54 = vld [vmem:[%s1 + $0x4] sm:$0xf]
    %v55 = vld [vmem:[%s1 + $0x8] sm:$0xf]
    %v56 = vld [vmem:[%s1 + $0xc] sm:$0xf]
    %v57 = vld [vmem:[%s1 + $0x10] sm:$0xf]
    %v58 = vld [vmem:[%s1 + $0x14] sm:$0xf]
    %v59 = vld [vmem:[%s1 + $0x18] sm:$0xf]
    %v60 = vld [vmem:[%s1 + $0x1c] sm:$0xf]
    %v61 = vld [vmem:[%s1 + $0x20] sm:$0xf]
    %v62 = vld [vmem:[%s1 + $0x24] sm:$0xf]
    %v63 = vld [vmem:[%s1 + $0x28] sm:$0xf]
    %v64 = vld [vmem:[%s1 + $0x2c] sm:$0xf]
    %v65 = vld [vmem:[%s1 + $0x30] sm:$0xf]
    %v66 = vld [vmem:[%s1 + $0x34] sm:$0xf]
    %v67 = vld [vmem:[%s1 + $0x38] sm:$0xf]
    %v68 = vld [vmem:[%s1 + $0x3c] sm:$0xf]
    %v69 = vld [vmem:[%s1 + $0x40] sm:$0xf]
    %v70 = vld [vmem:[%s1 + $0x44] sm:$0xf]
    %v71 = vld [vmem:[%s1 + $0x48] sm:$0xf]
    %v72 = vld [vmem:[%s1 + $0x4c] sm:$0xf]
    %v73 = vld [vmem:[%s1 + $0x50] sm:$0xf]
    %v74 = vld [vmem:[%s1 + $0x54] sm:$0xf]
    %v75 = vld [vmem:[%s1 + $0x58] sm:$0xf]
    %v76 = vld [vmem:[%s1 + $0x5c] sm:$0xf]
    %v77 = vld [vmem:[%s1 + $0x60] sm:$0xf]
    %v78 = vld [vmem:[%s1 + $0x64] sm:$0xf]
    %v79 = vld [vmem:[%s1 + $0x68] sm:$0xf]
    %v80 = vld [vmem:[%s1 + $0x6c] sm:$0xf]
    %v81 = vld [vmem:[%s1 + $0x70] sm:$0xf]
    %v82 = vld [vmem:[%s1 + $0x74] sm:$0xf]
    %v83 = vld [vmem:[%s1 + $0x78] sm:$0xf]
    %v84 = vld [vmem:[%s1 + $0x7c] sm:$0xf]
    %v85 = vld [vmem:[%s1 + $0x80] sm:$0xf]
    %v86 = vld [vmem:[%s1 + $0x84] sm:$0xf]
    %v87 = vld [vmem:[%s1 + $0x88] sm:$0xf]
    %v88 = vld [vmem:[%s1 + $0x8c] sm:$0xf]
    %v89 = vld [vmem:[%s1 + $0x90] sm:$0xf]
    %v90 = vld [vmem:[%s1 + $0x94] sm:$0xf]
    %v91 = vld [vmem:[%s1 + $0x98] sm:$0xf]
    %v92 = vld [vmem:[%s1 + $0x9c] sm:$0xf]
    %v93 = vld [vmem:[%s1 + $0xa0] sm:$0xf]
    %v94 = vld [vmem:[%s1 + $0xa4] sm:$0xf]
    %v95 = vld [vmem:[%s1 + $0xa8] sm:$0xf]
    %v96 = vld [vmem:[%s1 + $0xac] sm:$0xf]
    %v97 = vld [vmem:[%s1 + $0xb0] sm:$0xf]
    %v98 = vld [vmem:[%s1 + $0xb4] sm:$0xf]
    %v99 = vld [vmem:[%s1 + $0xb8] sm:$0xf]
    %v100 = vld [vmem:[%s1 + $0xbc] sm:$0xf]
    %v101 = vld [vmem:[%s1 + $0xc0] sm:$0xf]
    %v102 = vld [vmem:[%s1 + $0xc4] sm:$0xf]
    %v103 = vld [vmem:[%s1 + $0xc8] sm:$0xf]
    %v104 = vld [vmem:[%s1 + $0xcc] sm:$0xf]
    %v105 = vld [vmem:[%s1 + $0xd0] sm:$0xf]
    %v106 = vld [vmem:[%s1 + $0xd4] sm:$0xf]
    %v107 = vld [vmem:[%s1 + $0xd8] sm:$0xf]
    %v108 = vld [vmem:[%s1 + $0xdc] sm:$0xf]
    %v109 = vld [vmem:[%s1 + $0xe0] sm:$0xf]
    %v110 = vld [vmem:[%s1 + $0xe4] sm:$0xf]
    %v111 = vld [vmem:[%s1 + $0xe8] sm:$0xf]
    %v112 = vld [vmem:[%s1 + $0xec] sm:$0xf]
    %v113 = vld [vmem:[%s1 + $0xf0] sm:$0xf]
    %v114 = vld [vmem:[%s1 + $0xf4] sm:$0xf]
    %v115 = vld [vmem:[%s1 + $0xf8] sm:$0xf]
    %v116 = vld [vmem:[%s1 + $0xfc] sm:$0xf]
    %v117 = vld [vmem:[%s1 + $0x100] sm:$0xf]
    %v118 = vld [vmem:[%s1 + $0x104] sm:$0xf]
    %v119 = vld [vmem:[%s1 + $0x108] sm:$0xf]
    %v120 = vld [vmem:[%s1 + $0x10c] sm:$0xf]
    %v121 = vld [vmem:[%s1 + $0x110] sm:$0xf]
    %v122 = vld [vmem:[%s1 + $0x114] sm:$0xf]
    %v123 = vld [vmem:[%s1 + $0x118] sm:$0xf]
    %v124 = vld [vmem:[%s1 + $0x11c] sm:$0xf]
    %v125 = vld [vmem:[%s1 + $0x120] sm:$0xf]
    %v126 = vld [vmem:[%s1 + $0x124] sm:$0xf]
    %v127 = vld [vmem:[%s1 + $0x128] sm:$0xf]
    %v128 = vld [vmem:[%s1 + $0x12c] sm:$0xf]
    %v129 = vld [vmem:[%s1 + $0x130] sm:$0xf]
    %v130 = vld [vmem:[%s1 + $0x134] sm:$0xf]
    %v131 = vld [vmem:[%s1 + $0x138] sm:$0xf]
    %v132 = vld [vmem:[%s1 + $0x13c] sm:$0xf]
    %v133 = vld [vmem:[%s1 + $0x140] sm:$0xf]
    %v134 = vld [vmem:[%s1 + $0x144] sm:$0xf]
    %v135 = vld [vmem:[%s1 + $0x148] sm:$0xf]
    %v136 = vld [vmem:[%s1 + $0x14c] sm:$0xf]
    %v137 = vld [vmem:[%s1 + $0x150] sm:$0xf]
    %v138 = vld [vmem:[%s1 + $0x154] sm:$0xf]
    %v139 = vld [vmem:[%s1 + $0x158] sm:$0xf]
    %v140 = vld [vmem:[%s1 + $0x15c] sm:$0xf]
    %v141 = vld [vmem:[%s1 + $0x160] sm:$0xf]
    %v142 = vld [vmem:[%s1 + $0x164] sm:$0xf]
    %v143 = vld [vmem:[%s1 + $0x168] sm:$0xf]
    %v144 = vld [vmem:[%s1 + $0x16c] sm:$0xf]
    %v145 = vld [vmem:[%s1 + $0x170] sm:$0xf]
    %v146 = vld [vmem:[%s1 + $0x174] sm:$0xf]
    %v147 = vld [vmem:[%s1 + $0x178] sm:$0xf]
    %v148 = vld [vmem:[%s1 + $0x17c] sm:$0xf]
    %v149 = vld [vmem:[%s1 + $0x180] sm:$0xf]
    %v150 = vld [vmem:[%s1 + $0x184] sm:$0xf]
    %v151 = vld [vmem:[%s1 + $0x188] sm:$0xf]
    %v152 = vld [vmem:[%s1 + $0x18c] sm:$0xf]
    %v153 = vld [vmem:[%s1 + $0x190] sm:$0xf]
    %v154 = vld [vmem:[%s1 + $0x194] sm:$0xf]
    %v155 = vld [vmem:[%s1 + $0x198] sm:$0xf]
    %v156 = vld [vmem:[%s1 + $0x19c] sm:$0xf]
    %v157 = vld [vmem:[%s1 + $0x1a0] sm:$0xf]
    %v158 = vld [vmem:[%s1 + $0x1a4] sm:$0xf]
    %v159 = vld [vmem:[%s1 + $0x1a8] sm:$0xf]
    %v160 = vld [vmem:[%s1 + $0x1ac] sm:$0xf]
    %v161 = vld [vmem:[%s1 + $0x1b0] sm:$0xf]
    %v162 = vld [vmem:[%s1 + $0x1b4] sm:$0xf]
    %v163 = vld [vmem:[%s1 + $0x1b8] sm:$0xf]
    %v164 = vld [vmem:[%s1 + $0x1bc] sm:$0xf]
    %v165 = vld [vmem:[%s1 + $0x1c0] sm:$0xf]
    %v166 = vld [vmem:[%s1 + $0x1c4] sm:$0xf]
    %v167 = vld [vmem:[%s1 + $0x1c8] sm:$0xf]
    %v168 = vld [vmem:[%s1 + $0x1cc] sm:$0xf]
    %v169 = vld [vmem:[%s1 + $0x1d0] sm:$0xf]
    %v170 = vld [vmem:[%s1 + $0x1d4] sm:$0xf]
    %v171 = vld [vmem:[%s1 + $0x1d8] sm:$0xf]
    %v172 = vld [vmem:[%s1 + $0x1dc] sm:$0xf]
    %v173 = vld [vmem:[%s1 + $0x1e0] sm:$0xf]
    %v174 = vld [vmem:[%s1 + $0x1e4] sm:$0xf]
    %v175 = vld [vmem:[%s1 + $0x1e8] sm:$0xf]
    %v176 = vld [vmem:[%s1 + $0x1ec] sm:$0xf]
    %v177 = vld [vmem:[%s1 + $0x1f0] sm:$0xf]
    %v178 = vld [vmem:[%s1 + $0x1f4] sm:$0xf]
    %v179 = vld [vmem:[%s1 + $0x1f8] sm:$0xf]
    %v180 = vld [vmem:[%s1 + $0x1fc] sm:$0xf]
    %v181 = vld [vmem:[%s1 + $0x200] sm:$0xf]
    %v182 = vld [vmem:[%s1 + $0x204] sm:$0xf]
    %v183 = vld [vmem:[%s1 + $0x208] sm:$0xf]
    %v184 = vld [vmem:[%s1 + $0x20c] sm:$0xf]
    %v185 = vld [vmem:[%s1 + $0x210] sm:$0xf]
    %v186 = vld [vmem:[%s1 + $0x214] sm:$0xf]
    %v187 = vld [vmem:[%s1 + $0x218] sm:$0xf]
    %v188 = vld [vmem:[%s1 + $0x21c] sm:$0xf]
    %v189 = vld [vmem:[%s1 + $0x220] sm:$0xf]
    %v190 = vld [vmem:[%s1 + $0x224] sm:$0xf]
    %v191 = vld [vmem:[%s1 + $0x228] sm:$0xf]
    %v192 = vld [vmem:[%s1 + $0x22c] sm:$0xf]
    %v193 = vld [vmem:[%s1 + $0x230] sm:$0xf]
    %v194 = vld [vmem:[%s1 + $0x234] sm:$0xf]
    %v195 = vld [vmem:[%s1 + $0x238] sm:$0xf]
    %v196 = vld [vmem:[%s1 + $0x23c] sm:$0xf]
    %v197 = vld [vmem:[%s1 + $0x240] sm:$0xf]
    %v198 = vld [vmem:[%s1 + $0x244] sm:$0xf]
    %v199 = vld [vmem:[%s1 + $0x248] sm:$0xf]
    %v200 = vld [vmem:[%s1 + $0x24c] sm:$0xf]
    %v201 = vld [vmem:[%s1 + $0x250] sm:$0xf]
    %v202 = vld [vmem:[%s1 + $0x254] sm:$0xf]
    %v203 = vld [vmem:[%s1 + $0x258] sm:$0xf]
    %v204 = vld [vmem:[%s1 + $0x25c] sm:$0xf]
    %v205 = vld [vmem:[%s1 + $0x260] sm:$0xf]
    %v206 = vld [vmem:[%s1 + $0x264] sm:$0xf]
    %v207 = vld [vmem:[%s1 + $0x268] sm:$0xf]
    %v208 = vld [vmem:[%s1 + $0x26c] sm:$0xf]
    %v209 = vld [vmem:[%s1 + $0x270] sm:$0xf]
    %v210 = vld [vmem:[%s1 + $0x274] sm:$0xf]
    %v211 = vld [vmem:[%s1 + $0x278] sm:$0xf]
    %v212 = vld [vmem:[%s1 + $0x27c] sm:$0xf]
    %v213 = vld [vmem:[%s1 + $0x280] sm:$0xf]
    %v214 = vld [vmem:[%s1 + $0x284] sm:$0xf]
    %v215 = vld [vmem:[%s1 + $0x288] sm:$0xf]
    %v216 = vld [vmem:[%s1 + $0x28c] sm:$0xf]
    %v217 = vld [vmem:[%s1 + $0x290] sm:$0xf]
    %v218 = vld [vmem:[%s1 + $0x294] sm:$0xf]
    %v219 = vld [vmem:[%s1 + $0x298] sm:$0xf]
    %v220 = vld [vmem:[%s1 + $0x29c] sm:$0xf]
    %v221 = vld [vmem:[%s1 + $0x2a0] sm:$0xf]
    %v222 = vld [vmem:[%s1 + $0x2a4] sm:$0xf]
    %v223 = vld [vmem:[%s1 + $0x2a8] sm:$0xf]
    %v224 = vld [vmem:[%s1 + $0x2ac] sm:$0xf]
    %v225 = vld [vmem:[%s1 + $0x2b0] sm:$0xf]
    %v226 = vld [vmem:[%s1 + $0x2b4] sm:$0xf]
    %v227 = vld [vmem:[%s1 + $0x2b8] sm:$0xf]
    %v228 = vld [vmem:[%s1 + $0x2bc] sm:$0xf]
    %v229 = vld [vmem:[%s1 + $0x2c0] sm:$0xf]
    %v230 = vld [vmem:[%s1 + $0x2c4] sm:$0xf]
    %v231 = vld [vmem:[%s1 + $0x2c8] sm:$0xf]
    %v232 = vld [vmem:[%s1 + $0x2cc] sm:$0xf]
    %v233 = vld [vmem:[%s1 + $0x2d0] sm:$0xf]
    %v234 = vld [vmem:[%s1 + $0x2d4] sm:$0xf]
    %v235 = vld [vmem:[%s1 + $0x2d8] sm:$0xf]
    %v236 = vld [vmem:[%s1 + $0x2dc] sm:$0xf]
    %v237 = vld [vmem:[%s1 + $0x2e0] sm:$0xf]
    %v238 = vld [vmem:[%s1 + $0x2e4] sm:$0xf]
    %v239 = vld [vmem:[%s1 + $0x2e8] sm:$0xf]
    %v240 = vld [vmem:[%s1 + $0x2ec] sm:$0xf]
    %v241 = vld [vmem:[%s1 + $0x2f0] sm:$0xf]
    %v242 = vld [vmem:[%s1 + $0x2f4] sm:$0xf]
    %v243 = vld [vmem:[%s1 + $0x2f8] sm:$0xf]
    %v244 = vld [vmem:[%s1 + $0x2fc] sm:$0xf]
    %v245 = vld [vmem:[%s1 + $0x300] sm:$0xf]
    %v246 = vld [vmem:[%s1 + $0x304] sm:$0xf]
    %v247 = vld [vmem:[%s1 + $0x308] sm:$0xf]
    %v248 = vld [vmem:[%s1 + $0x30c] sm:$0xf]
    %v249 = vld [vmem:[%s1 + $0x310] sm:$0xf]
    %v250 = vld [vmem:[%s1 + $0x314] sm:$0xf]
    %v251 = vld [vmem:[%s1 + $0x318] sm:$0xf]
    %v252 = vld [vmem:[%s1 + $0x31c] sm:$0xf]
    %v281 = vunpack.c.l.b16 %v25
    %v282 = vunpack.c.h.b16 %v25
    %v283 = vunpack.c.l.b16 %v26
    %v284 = vunpack.c.h.b16 %v26
    %v285 = vunpack.c.l.b16 %v27
    %v286 = vunpack.c.h.b16 %v27
    %v287 = vunpack.c.l.b16 %v28
    %v288 = vunpack.c.h.b16 %v28
    %v289 = vunpack.c.l.b16 %v29
    %v290 = vunpack.c.h.b16 %v29
    %v291 = vunpack.c.l.b16 %v30
    %v292 = vunpack.c.h.b16 %v30
    %v293 = vunpack.c.l.b16 %v31
    %v294 = vunpack.c.l.b16 %v32
    %v295 = vunpack.c.h.b16 %v32
    %v296 = vunpack.c.l.b16 %v33
    %v297 = vunpack.c.h.b16 %v33
    %v298 = vunpack.c.l.b16 %v34
    %v299 = vunpack.c.h.b16 %v34
    %v300 = vunpack.c.l.b16 %v35
    %v301 = vunpack.c.h.b16 %v35
    %v302 = vunpack.c.l.b16 %v36
    %v303 = vunpack.c.h.b16 %v36
    %v304 = vunpack.c.l.b16 %v37
    %v305 = vunpack.c.h.b16 %v37
    %v306 = vunpack.c.l.b16 %v38
    %v307 = vunpack.c.l.b16 %v39
    %v308 = vunpack.c.h.b16 %v39
    %v309 = vunpack.c.l.b16 %v40
    %v310 = vunpack.c.h.b16 %v40
    %v311 = vunpack.c.l.b16 %v41
    %v312 = vunpack.c.h.b16 %v41
    %v313 = vunpack.c.l.b16 %v42
    %v314 = vunpack.c.h.b16 %v42
    %v315 = vunpack.c.l.b16 %v43
    %v316 = vunpack.c.h.b16 %v43
    %v317 = vunpack.c.l.b16 %v44
    %v318 = vunpack.c.h.b16 %v44
    %v319 = vunpack.c.l.b16 %v45
    %v320 = vunpack.c.l.b16 %v46
    %v321 = vunpack.c.h.b16 %v46
    %v322 = vunpack.c.l.b16 %v47
    %v323 = vunpack.c.h.b16 %v47
    %v324 = vunpack.c.l.b16 %v48
    %v325 = vunpack.c.h.b16 %v48
    %v326 = vunpack.c.l.b16 %v49
    %v327 = vunpack.c.h.b16 %v49
    %v328 = vunpack.c.l.b16 %v50
    %v329 = vunpack.c.h.b16 %v50
    %v330 = vunpack.c.l.b16 %v51
    %v331 = vunpack.c.h.b16 %v51
    %v332 = vunpack.c.l.b16 %v52
    %v333 = vpack.c.b16 %v294, %v281
    %v334 = vpack.c.b16 %v295, %v282
    %v335 = vpack.c.b16 %v296, %v283
    %v336 = vpack.c.b16 %v297, %v284
    %v337 = vpack.c.b16 %v298, %v285
    %v338 = vpack.c.b16 %v299, %v286
    %v339 = vpack.c.b16 %v300, %v287
    %v340 = vpack.c.b16 %v301, %v288
    %v341 = vpack.c.b16 %v302, %v289
    %v342 = vpack.c.b16 %v303, %v290
    %v343 = vpack.c.b16 %v304, %v291
    %v344 = vpack.c.b16 %v305, %v292
    %v345 = vpack.c.b16 %v306, %v293
    %v346 = vpack.c.b16 %v320, %v307
    %v347 = vpack.c.b16 %v321, %v308
    %v348 = vpack.c.b16 %v322, %v309
    %v349 = vpack.c.b16 %v323, %v310
    %v350 = vpack.c.b16 %v324, %v311
    %v351 = vpack.c.b16 %v325, %v312
    %v352 = vpack.c.b16 %v326, %v313
    %v353 = vpack.c.b16 %v327, %v314
    %v354 = vpack.c.b16 %v328, %v315
    %v355 = vpack.c.b16 %v329, %v316
    %v356 = vpack.c.b16 %v330, %v317
    %v357 = vpack.c.b16 %v331, %v318
    %v358 = vpack.c.b16 %v332, %v319
    %v583 = vunpack.c.l.b16 %v53
    %v584 = vunpack.c.l.b16 %v54
    %v585 = vunpack.c.l.b16 %v55
    %v586 = vunpack.c.l.b16 %v56
    %v587 = vunpack.c.l.b16 %v57
    %v588 = vunpack.c.l.b16 %v58
    %v589 = vunpack.c.l.b16 %v59
    %v590 = vunpack.c.l.b16 %v60
    %v591 = vunpack.c.l.b16 %v61
    %v592 = vunpack.c.l.b16 %v62
    %v593 = vunpack.c.l.b16 %v63
    %v594 = vunpack.c.l.b16 %v64
    %v595 = vunpack.c.l.b16 %v65
    %v596 = vunpack.c.l.b16 %v66
    %v597 = vunpack.c.l.b16 %v67
    %v598 = vunpack.c.l.b16 %v68
    %v599 = vunpack.c.l.b16 %v69
    %v600 = vunpack.c.l.b16 %v70
    %v601 = vunpack.c.l.b16 %v71
    %v602 = vunpack.c.l.b16 %v72
    %v603 = vunpack.c.l.b16 %v73
    %v604 = vunpack.c.l.b16 %v74
    %v605 = vunpack.c.l.b16 %v75
    %v606 = vunpack.c.l.b16 %v76
    %v607 = vunpack.c.l.b16 %v77
    %v608 = vunpack.c.l.b16 %v78
    %v609 = vunpack.c.l.b16 %v79
    %v610 = vunpack.c.l.b16 %v80
    %v611 = vunpack.c.l.b16 %v81
    %v612 = vunpack.c.l.b16 %v82
    %v613 = vunpack.c.l.b16 %v83
    %v614 = vunpack.c.l.b16 %v84
    %v615 = vunpack.c.l.b16 %v85
    %v616 = vunpack.c.l.b16 %v86
    %v617 = vunpack.c.l.b16 %v87
    %v618 = vunpack.c.l.b16 %v88
    %v619 = vunpack.c.l.b16 %v89
    %v620 = vunpack.c.l.b16 %v90
    %v621 = vunpack.c.l.b16 %v91
    %v622 = vunpack.c.l.b16 %v92
    %v623 = vunpack.c.l.b16 %v93
    %v624 = vunpack.c.l.b16 %v94
    %v625 = vunpack.c.l.b16 %v95
    %v626 = vunpack.c.l.b16 %v96
    %v627 = vunpack.c.l.b16 %v97
    %v628 = vunpack.c.l.b16 %v98
    %v629 = vunpack.c.l.b16 %v99
    %v630 = vunpack.c.l.b16 %v100
    %v631 = vunpack.c.l.b16 %v101
    %v632 = vunpack.c.l.b16 %v102
    %v633 = vunpack.c.l.b16 %v103
    %v634 = vunpack.c.l.b16 %v104
    %v635 = vunpack.c.l.b16 %v105
    %v636 = vunpack.c.l.b16 %v106
    %v637 = vunpack.c.l.b16 %v107
    %v638 = vunpack.c.l.b16 %v108
    %v639 = vunpack.c.l.b16 %v109
    %v640 = vunpack.c.l.b16 %v110
    %v641 = vunpack.c.l.b16 %v111
    %v642 = vunpack.c.l.b16 %v112
    %v643 = vunpack.c.l.b16 %v113
    %v644 = vunpack.c.l.b16 %v114
    %v645 = vunpack.c.l.b16 %v115
    %v646 = vunpack.c.l.b16 %v116
    %v647 = vunpack.c.l.b16 %v117
    %v648 = vunpack.c.l.b16 %v118
    %v649 = vunpack.c.l.b16 %v119
    %v650 = vunpack.c.l.b16 %v120
    %v651 = vunpack.c.l.b16 %v121
    %v652 = vunpack.c.l.b16 %v122
    %v653 = vunpack.c.l.b16 %v123
    %v654 = vunpack.c.l.b16 %v124
    %v655 = vunpack.c.l.b16 %v125
    %v656 = vunpack.c.l.b16 %v126
    %v657 = vunpack.c.l.b16 %v127
    %v658 = vunpack.c.l.b16 %v128
    %v659 = vunpack.c.l.b16 %v129
    %v660 = vunpack.c.l.b16 %v130
    %v661 = vunpack.c.l.b16 %v131
    %v662 = vunpack.c.l.b16 %v132
    %v663 = vunpack.c.l.b16 %v133
    %v664 = vunpack.c.l.b16 %v134
    %v665 = vunpack.c.l.b16 %v135
    %v666 = vunpack.c.l.b16 %v136
    %v667 = vunpack.c.l.b16 %v137
    %v668 = vunpack.c.l.b16 %v138
    %v669 = vunpack.c.l.b16 %v139
    %v670 = vunpack.c.l.b16 %v140
    %v671 = vunpack.c.l.b16 %v141
    %v672 = vunpack.c.l.b16 %v142
    %v673 = vunpack.c.l.b16 %v143
    %v674 = vunpack.c.l.b16 %v144
    %v675 = vunpack.c.l.b16 %v145
    %v676 = vunpack.c.l.b16 %v146
    %v677 = vunpack.c.l.b16 %v147
    %v678 = vunpack.c.l.b16 %v148
    %v679 = vunpack.c.l.b16 %v149
    %v680 = vunpack.c.l.b16 %v150
    %v681 = vunpack.c.l.b16 %v151
    %v682 = vunpack.c.l.b16 %v152
    %v683 = vunpack.c.l.b16 %v153
    %v684 = vunpack.c.l.b16 %v154
    %v685 = vunpack.c.l.b16 %v155
    %v686 = vunpack.c.l.b16 %v156
    %v687 = vunpack.c.l.b16 %v157
    %v688 = vunpack.c.l.b16 %v158
    %v689 = vunpack.c.l.b16 %v159
    %v690 = vunpack.c.l.b16 %v160
    %v691 = vunpack.c.l.b16 %v161
    %v692 = vunpack.c.l.b16 %v162
    %v693 = vunpack.c.l.b16 %v163
    %v694 = vunpack.c.l.b16 %v164
    %v695 = vunpack.c.l.b16 %v165
    %v696 = vunpack.c.l.b16 %v166
    %v697 = vunpack.c.l.b16 %v167
    %v698 = vunpack.c.l.b16 %v168
    %v699 = vunpack.c.l.b16 %v169
    %v700 = vunpack.c.l.b16 %v170
    %v701 = vunpack.c.l.b16 %v171
    %v702 = vunpack.c.l.b16 %v172
    %v703 = vunpack.c.l.b16 %v173
    %v704 = vunpack.c.l.b16 %v174
    %v705 = vunpack.c.l.b16 %v175
    %v706 = vunpack.c.l.b16 %v176
    %v707 = vunpack.c.l.b16 %v177
    %v708 = vunpack.c.l.b16 %v178
    %v709 = vunpack.c.l.b16 %v179
    %v710 = vunpack.c.l.b16 %v180
    %v711 = vunpack.c.l.b16 %v181
    %v712 = vunpack.c.l.b16 %v182
    %v713 = vunpack.c.l.b16 %v183
    %v714 = vunpack.c.l.b16 %v184
    %v715 = vunpack.c.l.b16 %v185
    %v716 = vunpack.c.l.b16 %v186
    %v717 = vunpack.c.l.b16 %v187
    %v718 = vunpack.c.l.b16 %v188
    %v719 = vunpack.c.l.b16 %v189
    %v720 = vunpack.c.l.b16 %v190
    %v721 = vunpack.c.l.b16 %v191
    %v722 = vunpack.c.l.b16 %v192
    %v723 = vunpack.c.l.b16 %v193
    %v724 = vunpack.c.l.b16 %v194
    %v725 = vunpack.c.l.b16 %v195
    %v726 = vunpack.c.l.b16 %v196
    %v727 = vunpack.c.l.b16 %v197
    %v728 = vunpack.c.l.b16 %v198
    %v729 = vunpack.c.l.b16 %v199
    %v730 = vunpack.c.l.b16 %v200
    %v731 = vunpack.c.l.b16 %v201
    %v732 = vunpack.c.l.b16 %v202
    %v733 = vunpack.c.l.b16 %v203
    %v734 = vunpack.c.l.b16 %v204
    %v735 = vunpack.c.l.b16 %v205
    %v736 = vunpack.c.l.b16 %v206
    %v737 = vunpack.c.l.b16 %v207
    %v738 = vunpack.c.l.b16 %v208
    %v739 = vunpack.c.l.b16 %v209
    %v740 = vunpack.c.l.b16 %v210
    %v741 = vunpack.c.l.b16 %v211
    %v742 = vunpack.c.l.b16 %v212
    %v743 = vunpack.c.l.b16 %v213
    %v744 = vunpack.c.l.b16 %v214
    %v745 = vunpack.c.l.b16 %v215
    %v746 = vunpack.c.l.b16 %v216
    %v747 = vunpack.c.l.b16 %v217
    %v748 = vunpack.c.l.b16 %v218
    %v749 = vunpack.c.l.b16 %v219
    %v750 = vunpack.c.l.b16 %v220
    %v751 = vunpack.c.l.b16 %v221
    %v752 = vunpack.c.l.b16 %v222
    %v753 = vunpack.c.l.b16 %v223
    %v754 = vunpack.c.l.b16 %v224
    %v755 = vunpack.c.l.b16 %v225
    %v756 = vunpack.c.l.b16 %v226
    %v757 = vunpack.c.l.b16 %v227
    %v758 = vunpack.c.l.b16 %v228
    %v759 = vunpack.c.l.b16 %v229
    %v760 = vunpack.c.l.b16 %v230
    %v761 = vunpack.c.l.b16 %v231
    %v762 = vunpack.c.l.b16 %v232
    %v763 = vunpack.c.l.b16 %v233
    %v764 = vunpack.c.l.b16 %v234
    %v765 = vunpack.c.l.b16 %v235
    %v766 = vunpack.c.l.b16 %v236
    %v767 = vunpack.c.l.b16 %v237
    %v768 = vunpack.c.l.b16 %v238
    %v769 = vunpack.c.l.b16 %v239
    %v770 = vunpack.c.l.b16 %v240
    %v771 = vunpack.c.l.b16 %v241
    %v772 = vunpack.c.l.b16 %v242
    %v773 = vunpack.c.l.b16 %v243
    %v774 = vunpack.c.l.b16 %v244
    %v775 = vunpack.c.l.b16 %v245
    %v776 = vunpack.c.l.b16 %v246
    %v777 = vunpack.c.l.b16 %v247
    %v778 = vunpack.c.l.b16 %v248
    %v779 = vunpack.c.l.b16 %v249
    %v780 = vunpack.c.l.b16 %v250
    %v781 = vunpack.c.l.b16 %v251
    %v782 = vunpack.c.l.b16 %v252
    %v783 = vpack.c.b16 %v584, %v583
    %v784 = vpack.c.b16 %v586, %v585
    %v785 = vpack.c.b16 %v588, %v587
    %v786 = vpack.c.b16 %v590, %v589
    %v787 = vpack.c.b16 %v592, %v591
    %v788 = vpack.c.b16 %v594, %v593
    %v789 = vpack.c.b16 %v596, %v595
    %v790 = vpack.c.b16 %v598, %v597
    %v791 = vpack.c.b16 %v600, %v599
    %v792 = vpack.c.b16 %v602, %v601
    %v793 = vpack.c.b16 %v604, %v603
    %v794 = vpack.c.b16 %v606, %v605
    %v795 = vpack.c.b16 %v608, %v607
    %v796 = vpack.c.b16 %v610, %v609
    %v797 = vpack.c.b16 %v612, %v611
    %v798 = vpack.c.b16 %v614, %v613
    %v799 = vpack.c.b16 %v616, %v615
    %v800 = vpack.c.b16 %v618, %v617
    %v801 = vpack.c.b16 %v620, %v619
    %v802 = vpack.c.b16 %v622, %v621
    %v803 = vpack.c.b16 %v624, %v623
    %v804 = vpack.c.b16 %v626, %v625
    %v805 = vpack.c.b16 %v628, %v627
    %v806 = vpack.c.b16 %v630, %v629
    %v807 = vpack.c.b16 %v632, %v631
    %v808 = vpack.c.b16 %v634, %v633
    %v809 = vpack.c.b16 %v636, %v635
    %v810 = vpack.c.b16 %v638, %v637
    %v811 = vpack.c.b16 %v640, %v639
    %v812 = vpack.c.b16 %v642, %v641
    %v813 = vpack.c.b16 %v644, %v643
    %v814 = vpack.c.b16 %v646, %v645
    %v815 = vpack.c.b16 %v648, %v647
    %v816 = vpack.c.b16 %v650, %v649
    %v817 = vpack.c.b16 %v652, %v651
    %v818 = vpack.c.b16 %v654, %v653
    %v819 = vpack.c.b16 %v656, %v655
    %v820 = vpack.c.b16 %v658, %v657
    %v821 = vpack.c.b16 %v660, %v659
    %v822 = vpack.c.b16 %v662, %v661
    %v823 = vpack.c.b16 %v664, %v663
    %v824 = vpack.c.b16 %v666, %v665
    %v825 = vpack.c.b16 %v668, %v667
    %v826 = vpack.c.b16 %v670, %v669
    %v827 = vpack.c.b16 %v672, %v671
    %v828 = vpack.c.b16 %v674, %v673
    %v829 = vpack.c.b16 %v676, %v675
    %v830 = vpack.c.b16 %v678, %v677
    %v831 = vpack.c.b16 %v680, %v679
    %v832 = vpack.c.b16 %v682, %v681
    %v833 = vpack.c.b16 %v684, %v683
    %v834 = vpack.c.b16 %v686, %v685
    %v835 = vpack.c.b16 %v688, %v687
    %v836 = vpack.c.b16 %v690, %v689
    %v837 = vpack.c.b16 %v692, %v691
    %v838 = vpack.c.b16 %v694, %v693
    %v839 = vpack.c.b16 %v696, %v695
    %v840 = vpack.c.b16 %v698, %v697
    %v841 = vpack.c.b16 %v700, %v699
    %v842 = vpack.c.b16 %v702, %v701
    %v843 = vpack.c.b16 %v704, %v703
    %v844 = vpack.c.b16 %v706, %v705
    %v845 = vpack.c.b16 %v708, %v707
    %v846 = vpack.c.b16 %v710, %v709
    %v847 = vpack.c.b16 %v712, %v711
    %v848 = vpack.c.b16 %v714, %v713
    %v849 = vpack.c.b16 %v716, %v715
    %v850 = vpack.c.b16 %v718, %v717
    %v851 = vpack.c.b16 %v720, %v719
    %v852 = vpack.c.b16 %v722, %v721
    %v853 = vpack.c.b16 %v724, %v723
    %v854 = vpack.c.b16 %v726, %v725
    %v855 = vpack.c.b16 %v728, %v727
    %v856 = vpack.c.b16 %v730, %v729
    %v857 = vpack.c.b16 %v732, %v731
    %v858 = vpack.c.b16 %v734, %v733
    %v859 = vpack.c.b16 %v736, %v735
    %v860 = vpack.c.b16 %v738, %v737
    %v861 = vpack.c.b16 %v740, %v739
    %v862 = vpack.c.b16 %v742, %v741
    %v863 = vpack.c.b16 %v744, %v743
    %v864 = vpack.c.b16 %v746, %v745
    %v865 = vpack.c.b16 %v748, %v747
    %v866 = vpack.c.b16 %v750, %v749
    %v867 = vpack.c.b16 %v752, %v751
    %v868 = vpack.c.b16 %v754, %v753
    %v869 = vpack.c.b16 %v756, %v755
    %v870 = vpack.c.b16 %v758, %v757
    %v871 = vpack.c.b16 %v760, %v759
    %v872 = vpack.c.b16 %v762, %v761
    %v873 = vpack.c.b16 %v764, %v763
    %v874 = vpack.c.b16 %v766, %v765
    %v875 = vpack.c.b16 %v768, %v767
    %v876 = vpack.c.b16 %v770, %v769
    %v877 = vpack.c.b16 %v772, %v771
    %v878 = vpack.c.b16 %v774, %v773
    %v879 = vpack.c.b16 %v776, %v775
    %v880 = vpack.c.b16 %v778, %v777
    %v881 = vpack.c.b16 %v780, %v779
    %v882 = vpack.c.b16 %v782, %v781
    %vm983 = vcmask 523264
    %v985 = vsel %vm983, %v345, 0
    %v988 = vsel %vm983, %v358, 0
    %990 = vmatpush.bf16.msra.mxu0 %v790
    %991 = vmatpush.bf16.msra.mxu0 %v789
    %992 = vmatpush.bf16.msra.mxu0 %v788
    %993 = vmatpush.bf16.msra.mxu0 %v787
    %994 = vmatpush.bf16.msra.mxu0 %v786
    %995 = vmatpush.bf16.msra.mxu0 %v785
    %996 = vmatpush.bf16.msra.mxu0 %v784
    %997 = vmatpush.bf16.msra.mxu0 %v783
    %998 = vmatmul.bf16.gmra.mxu0 %v333
    %v999 = vpop.f32.mrf.mxu0
    %v1000 = vadd.f32 0.0, %v999
    %v1001 = vpop.f32.mrf.mxu0
    %v1002 = vadd.f32 0.0, %v1001
    %1003 = vmatmul.bf16.gmra.mxu0 %v346
    %v1004 = vpop.f32.mrf.mxu0
    %v1005 = vadd.f32 0.0, %v1004
    %v1006 = vpop.f32.mrf.mxu0
    %v1007 = vadd.f32 0.0, %v1006
    %1008 = vdwg.mxu0
    %1009 = vmatpush.bf16.msra.mxu0 %v798
    %1010 = vmatpush.bf16.msra.mxu0 %v797
    %1011 = vmatpush.bf16.msra.mxu0 %v796
    %1012 = vmatpush.bf16.msra.mxu0 %v795
    %1013 = vmatpush.bf16.msra.mxu0 %v794
    %1014 = vmatpush.bf16.msra.mxu0 %v793
    %1015 = vmatpush.bf16.msra.mxu0 %v792
    %1016 = vmatpush.bf16.msra.mxu0 %v791
    %1017 = vmatmul.bf16.gmra.mxu0 %v334
    %v1018 = vpop.f32.mrf.mxu0
    %v1019 = vadd.f32 %v1000, %v1018
    %v1020 = vpop.f32.mrf.mxu0
    %v1021 = vadd.f32 %v1002, %v1020
    %1022 = vmatmul.bf16.gmra.mxu0 %v347
    %v1023 = vpop.f32.mrf.mxu0
    %v1024 = vadd.f32 %v1005, %v1023
    %v1025 = vpop.f32.mrf.mxu0
    %v1026 = vadd.f32 %v1007, %v1025
    %1027 = vdwg.mxu0
    %1028 = vmatpush.bf16.msra.mxu0 %v806
    %1029 = vmatpush.bf16.msra.mxu0 %v805
    %1030 = vmatpush.bf16.msra.mxu0 %v804
    %1031 = vmatpush.bf16.msra.mxu0 %v803
    %1032 = vmatpush.bf16.msra.mxu0 %v802
    %1033 = vmatpush.bf16.msra.mxu0 %v801
    %1034 = vmatpush.bf16.msra.mxu0 %v800
    %1035 = vmatpush.bf16.msra.mxu0 %v799
    %1036 = vmatmul.bf16.gmra.mxu0 %v335
    %v1037 = vpop.f32.mrf.mxu0
    %v1038 = vadd.f32 %v1019, %v1037
    %v1039 = vpop.f32.mrf.mxu0
    %v1040 = vadd.f32 %v1021, %v1039
    %1041 = vmatmul.bf16.gmra.mxu0 %v348
    %v1042 = vpop.f32.mrf.mxu0
    %v1043 = vadd.f32 %v1024, %v1042
    %v1044 = vpop.f32.mrf.mxu0
    %v1045 = vadd.f32 %v1026, %v1044
    %1046 = vdwg.mxu0
    %1047 = vmatpush.bf16.msra.mxu0 %v814
    %1048 = vmatpush.bf16.msra.mxu0 %v813
    %1049 = vmatpush.bf16.msra.mxu0 %v812
    %1050 = vmatpush.bf16.msra.mxu0 %v811
    %1051 = vmatpush.bf16.msra.mxu0 %v810
    %1052 = vmatpush.bf16.msra.mxu0 %v809
    %1053 = vmatpush.bf16.msra.mxu0 %v808
    %1054 = vmatpush.bf16.msra.mxu0 %v807
    %1055 = vmatmul.bf16.gmra.mxu0 %v336
    %v1056 = vpop.f32.mrf.mxu0
    %v1057 = vadd.f32 %v1038, %v1056
    %v1058 = vpop.f32.mrf.mxu0
    %v1059 = vadd.f32 %v1040, %v1058
    %1060 = vmatmul.bf16.gmra.mxu0 %v349
    %v1061 = vpop.f32.mrf.mxu0
    %v1062 = vadd.f32 %v1043, %v1061
    %v1063 = vpop.f32.mrf.mxu0
    %v1064 = vadd.f32 %v1045, %v1063
    %1065 = vdwg.mxu0
    %1066 = vmatpush.bf16.msra.mxu0 %v822
    %1067 = vmatpush.bf16.msra.mxu0 %v821
    %1068 = vmatpush.bf16.msra.mxu0 %v820
    %1069 = vmatpush.bf16.msra.mxu0 %v819
    %1070 = vmatpush.bf16.msra.mxu0 %v818
    %1071 = vmatpush.bf16.msra.mxu0 %v817
    %1072 = vmatpush.bf16.msra.mxu0 %v816
    %1073 = vmatpush.bf16.msra.mxu0 %v815
    %1074 = vmatmul.bf16.gmra.mxu0 %v337
    %v1075 = vpop.f32.mrf.mxu0
    %v1076 = vadd.f32 %v1057, %v1075
    %v1077 = vpop.f32.mrf.mxu0
    %v1078 = vadd.f32 %v1059, %v1077
    %1079 = vmatmul.bf16.gmra.mxu0 %v350
    %v1080 = vpop.f32.mrf.mxu0
    %v1081 = vadd.f32 %v1062, %v1080
    %v1082 = vpop.f32.mrf.mxu0
    %v1083 = vadd.f32 %v1064, %v1082
    %1084 = vdwg.mxu0
    %1085 = vmatpush.bf16.msra.mxu0 %v830
    %1086 = vmatpush.bf16.msra.mxu0 %v829
    %1087 = vmatpush.bf16.msra.mxu0 %v828
    %1088 = vmatpush.bf16.msra.mxu0 %v827
    %1089 = vmatpush.bf16.msra.mxu0 %v826
    %1090 = vmatpush.bf16.msra.mxu0 %v825
    %1091 = vmatpush.bf16.msra.mxu0 %v824
    %1092 = vmatpush.bf16.msra.mxu0 %v823
    %1093 = vmatmul.bf16.gmra.mxu0 %v338
    %v1094 = vpop.f32.mrf.mxu0
    %v1095 = vadd.f32 %v1076, %v1094
    %v1096 = vpop.f32.mrf.mxu0
    %v1097 = vadd.f32 %v1078, %v1096
    %1098 = vmatmul.bf16.gmra.mxu0 %v351
    %v1099 = vpop.f32.mrf.mxu0
    %v1100 = vadd.f32 %v1081, %v1099
    %v1101 = vpop.f32.mrf.mxu0
    %v1102 = vadd.f32 %v1083, %v1101
    %1103 = vdwg.mxu0
    %1104 = vmatpush.bf16.msra.mxu0 %v838
    %1105 = vmatpush.bf16.msra.mxu0 %v837
    %1106 = vmatpush.bf16.msra.mxu0 %v836
    %1107 = vmatpush.bf16.msra.mxu0 %v835
    %1108 = vmatpush.bf16.msra.mxu0 %v834
    %1109 = vmatpush.bf16.msra.mxu0 %v833
    %1110 = vmatpush.bf16.msra.mxu0 %v832
    %1111 = vmatpush.bf16.msra.mxu0 %v831
    %1112 = vmatmul.bf16.gmra.mxu0 %v339
    %v1113 = vpop.f32.mrf.mxu0
    %v1114 = vadd.f32 %v1095, %v1113
    %v1115 = vpop.f32.mrf.mxu0
    %v1116 = vadd.f32 %v1097, %v1115
    %1117 = vmatmul.bf16.gmra.mxu0 %v352
    %v1118 = vpop.f32.mrf.mxu0
    %v1119 = vadd.f32 %v1100, %v1118
    %v1120 = vpop.f32.mrf.mxu0
    %v1121 = vadd.f32 %v1102, %v1120
    %1122 = vdwg.mxu0
    %1123 = vmatpush.bf16.msra.mxu0 %v846
    %1124 = vmatpush.bf16.msra.mxu0 %v845
    %1125 = vmatpush.bf16.msra.mxu0 %v844
    %1126 = vmatpush.bf16.msra.mxu0 %v843
    %1127 = vmatpush.bf16.msra.mxu0 %v842
    %1128 = vmatpush.bf16.msra.mxu0 %v841
    %1129 = vmatpush.bf16.msra.mxu0 %v840
    %1130 = vmatpush.bf16.msra.mxu0 %v839
    %1131 = vmatmul.bf16.gmra.mxu0 %v340
    %v1132 = vpop.f32.mrf.mxu0
    %v1133 = vadd.f32 %v1114, %v1132
    %v1134 = vpop.f32.mrf.mxu0
    %v1135 = vadd.f32 %v1116, %v1134
    %1136 = vmatmul.bf16.gmra.mxu0 %v353
    %v1137 = vpop.f32.mrf.mxu0
    %v1138 = vadd.f32 %v1119, %v1137
    %v1139 = vpop.f32.mrf.mxu0
    %v1140 = vadd.f32 %v1121, %v1139
    %1141 = vdwg.mxu0
    %1142 = vmatpush.bf16.msra.mxu0 %v854
    %1143 = vmatpush.bf16.msra.mxu0 %v853
    %1144 = vmatpush.bf16.msra.mxu0 %v852
    %1145 = vmatpush.bf16.msra.mxu0 %v851
    %1146 = vmatpush.bf16.msra.mxu0 %v850
    %1147 = vmatpush.bf16.msra.mxu0 %v849
    %1148 = vmatpush.bf16.msra.mxu0 %v848
    %1149 = vmatpush.bf16.msra.mxu0 %v847
    %1150 = vmatmul.bf16.gmra.mxu0 %v341
    %v1151 = vpop.f32.mrf.mxu0
    %v1152 = vadd.f32 %v1133, %v1151
    %v1153 = vpop.f32.mrf.mxu0
    %v1154 = vadd.f32 %v1135, %v1153
    %1155 = vmatmul.bf16.gmra.mxu0 %v354
    %v1156 = vpop.f32.mrf.mxu0
    %v1157 = vadd.f32 %v1138, %v1156
    %v1158 = vpop.f32.mrf.mxu0
    %v1159 = vadd.f32 %v1140, %v1158
    %1160 = vdwg.mxu0
    %1161 = vmatpush.bf16.msra.mxu0 %v862
    %1162 = vmatpush.bf16.msra.mxu0 %v861
    %1163 = vmatpush.bf16.msra.mxu0 %v860
    %1164 = vmatpush.bf16.msra.mxu0 %v859
    %1165 = vmatpush.bf16.msra.mxu0 %v858
    %1166 = vmatpush.bf16.msra.mxu0 %v857
    %1167 = vmatpush.bf16.msra.mxu0 %v856
    %1168 = vmatpush.bf16.msra.mxu0 %v855
    %1169 = vmatmul.bf16.gmra.mxu0 %v342
    %v1170 = vpop.f32.mrf.mxu0
    %v1171 = vadd.f32 %v1152, %v1170
    %v1172 = vpop.f32.mrf.mxu0
    %v1173 = vadd.f32 %v1154, %v1172
    %1174 = vmatmul.bf16.gmra.mxu0 %v355
    %v1175 = vpop.f32.mrf.mxu0
    %v1176 = vadd.f32 %v1157, %v1175
    %v1177 = vpop.f32.mrf.mxu0
    %v1178 = vadd.f32 %v1159, %v1177
    %1179 = vdwg.mxu0
    %1180 = vmatpush.bf16.msra.mxu0 %v870
    %1181 = vmatpush.bf16.msra.mxu0 %v869
    %1182 = vmatpush.bf16.msra.mxu0 %v868
    %1183 = vmatpush.bf16.msra.mxu0 %v867
    %1184 = vmatpush.bf16.msra.mxu0 %v866
    %1185 = vmatpush.bf16.msra.mxu0 %v865
    %1186 = vmatpush.bf16.msra.mxu0 %v864
    %1187 = vmatpush.bf16.msra.mxu0 %v863
    %1188 = vmatmul.bf16.gmra.mxu0 %v343
    %v1189 = vpop.f32.mrf.mxu0
    %v1190 = vadd.f32 %v1171, %v1189
    %v1191 = vpop.f32.mrf.mxu0
    %v1192 = vadd.f32 %v1173, %v1191
    %1193 = vmatmul.bf16.gmra.mxu0 %v356
    %v1194 = vpop.f32.mrf.mxu0
    %v1195 = vadd.f32 %v1176, %v1194
    %v1196 = vpop.f32.mrf.mxu0
    %v1197 = vadd.f32 %v1178, %v1196
    %1198 = vdwg.mxu0
    %1199 = vmatpush.bf16.msra.mxu0 %v878
    %1200 = vmatpush.bf16.msra.mxu0 %v877
    %1201 = vmatpush.bf16.msra.mxu0 %v876
    %1202 = vmatpush.bf16.msra.mxu0 %v875
    %1203 = vmatpush.bf16.msra.mxu0 %v874
    %1204 = vmatpush.bf16.msra.mxu0 %v873
    %1205 = vmatpush.bf16.msra.mxu0 %v872
    %1206 = vmatpush.bf16.msra.mxu0 %v871
    %1207 = vmatmul.bf16.gmra.mxu0 %v344
    %v1208 = vpop.f32.mrf.mxu0
    %v1209 = vadd.f32 %v1190, %v1208
    %v1210 = vpop.f32.mrf.mxu0
    %v1211 = vadd.f32 %v1192, %v1210
    %1212 = vmatmul.bf16.gmra.mxu0 %v357
    %v1213 = vpop.f32.mrf.mxu0
    %v1214 = vadd.f32 %v1195, %v1213
    %v1215 = vpop.f32.mrf.mxu0
    %v1216 = vadd.f32 %v1197, %v1215
    %1217 = vdwg.mxu0
    %1218 = vmatpush.bf16.msra.mxu0 0
    %1219 = vmatpush.bf16.msra.mxu0 0
    %1220 = vmatpush.bf16.msra.mxu0 0
    %1221 = vmatpush.bf16.msra.mxu0 0
    %1222 = vmatpush.bf16.msra.mxu0 %v882
    %1223 = vmatpush.bf16.msra.mxu0 %v881
    %1224 = vmatpush.bf16.msra.mxu0 %v880
    %1225 = vmatpush.bf16.msra.mxu0 %v879
    %1226 = vmatmul.bf16.gmra.mxu0 %v985
    %v1227 = vpop.f32.mrf.mxu0
    %v1228 = vadd.f32 %v1209, %v1227
    %v1229 = vpop.f32.mrf.mxu0
    %v1230 = vadd.f32 %v1211, %v1229
    %1231 = vmatmul.bf16.gmra.mxu0 %v988
    %v1232 = vpop.f32.mrf.mxu0
    %v1233 = vadd.f32 %v1214, %v1232
    %v1234 = vpop.f32.mrf.mxu0
    %v1235 = vadd.f32 %v1216, %v1234
    %1236 = vdwg.mxu0
    %v1237 = vadd.f32 %v1228, %v1230
    %v1238 = vadd.f32 %v1237, %v1233
    %v1239 = vadd.f32 %v1238, %v1235
    %v1240 = vrot.slane %v1239, 4
    %v1241 = vadd.f32 %v1239, %v1240
    %v1242 = vrot.slane %v1241, 2
    %v1243 = vadd.f32 %v1241, %v1242
    %v1244 = vrot.slane %v1243, 1
    %v1245 = vadd.f32 %v1243, %v1244
    %v1246 = vmul.f32 %v1245, 0.03125
    %v1247 = vmul.f32 %v1228, %v1228
    %v1248 = vmul.f32 %v1230, %v1230
    %v1249 = vmul.f32 %v1233, %v1233
    %v1250 = vmul.f32 %v1235, %v1235
    %v1251 = vadd.f32 %v1247, %v1248
    %v1252 = vadd.f32 %v1251, %v1249
    %v1253 = vadd.f32 %v1252, %v1250
    %v1254 = vrot.slane %v1253, 4
    %v1255 = vadd.f32 %v1253, %v1254
    %v1256 = vrot.slane %v1255, 2
    %v1257 = vadd.f32 %v1255, %v1256
    %v1258 = vrot.slane %v1257, 1
    %v1259 = vadd.f32 %v1257, %v1258
    %v1260 = vmul.f32 %v1259, 0.03125
    %v1261 = vmul.f32 %v1246, %v1246
    %v1262 = vsub.f32 %v1260, %v1261
    %v1263 = vld [vmem:[%s2] sm:$0x1]
    %v1264 = vadd.f32 %v1262, 1e-05
    %v1265 = vrsqrt.pop %v1264
    %v1266 = vmul.f32 %v1265, %v1264
    %v1267 = vmul.f32 %v1266, %v1265
    %v1268 = vmul.f32 0.5, %v1267
    %v1269 = vsub.f32 1.5, %v1268
    %v1270 = vmul.f32 %v1265, %v1269
    %vm1271 = vweird.f32 %v1264
    %vm1272 = vweird.f32 %v1265
    %vm1273 = vmor %vm1271, %vm1272
    %v1274 = vsel %vm1273, %v1265, %v1270
    %v1275 = vmul.f32 %v1263, %v1274
    %v1276 = vld [vmem:[%s3] sm:$0x1]
    %v1277 = vmul.f32 %v1246, %v1275
    %v1278 = vsub.f32 %v1276, %v1277
    %v1280 = vperm.slane %v1275, 0
    %v1282 = vmul.f32 %v1228, %v1280
    %v1283 = vmul.f32 %v1230, %v1280
    %v1284 = vmul.f32 %v1233, %v1280
    %v1285 = vmul.f32 %v1235, %v1280
    %v1287 = vperm.slane %v1278, 0
    %v1289 = vadd.f32 %v1282, %v1287
    %v1290 = vadd.f32 %v1283, %v1287
    %v1291 = vadd.f32 %v1284, %v1287
    %v1292 = vadd.f32 %v1285, %v1287
    %v1293 = vmax.f32 %v1289, 0.0
    %v1294 = vmax.f32 %v1290, 0.0
    %v1295 = vmax.f32 %v1291, 0.0
    %v1296 = vmax.f32 %v1292, 0.0
    %v1297 = vpack.c.bf16 %v1293, %v1293
    %v1298 = vpack.c.bf16 %v1294, %v1294
    %v1299 = vpack.c.bf16 %v1295, %v1295
    %v1300 = vpack.c.bf16 %v1296, %v1296
    %v1301 = vld [vmem:[%s4] sm:$0xf]
    %v1302 = vld [vmem:[%s4 + $0x4] sm:$0xf]
    %v1303 = vld [vmem:[%s4 + $0x8] sm:$0xf]
    %v1304 = vld [vmem:[%s4 + $0xc] sm:$0xf]
    %v1305 = vld [vmem:[%s4 + $0x10] sm:$0xf]
    %v1306 = vld [vmem:[%s4 + $0x14] sm:$0xf]
    %v1307 = vld [vmem:[%s4 + $0x18] sm:$0xf]
    %v1308 = vld [vmem:[%s4 + $0x1c] sm:$0xf]
    %v1309 = vld [vmem:[%s4 + $0x20] sm:$0xf]
    %v1310 = vld [vmem:[%s4 + $0x24] sm:$0xf]
    %v1311 = vld [vmem:[%s4 + $0x28] sm:$0xf]
    %v1312 = vld [vmem:[%s4 + $0x2c] sm:$0xf]
    %v1313 = vld [vmem:[%s4 + $0x30] sm:$0xf]
    %v1314 = vld [vmem:[%s4 + $0x34] sm:$0xf]
    %v1315 = vld [vmem:[%s4 + $0x38] sm:$0xf]
    %v1316 = vld [vmem:[%s4 + $0x3c] sm:$0xf]
    %s1317 = scalar_lea.vmem %s4, 64
    %v1318 = vld [vmem:[%s1317] sm:$0xf]
    %v1319 = vld [vmem:[%s1317 + $0x4] sm:$0xf]
    %v1320 = vld [vmem:[%s1317 + $0x8] sm:$0xf]
    %v1321 = vld [vmem:[%s1317 + $0xc] sm:$0xf]
    %v1322 = vld [vmem:[%s1317 + $0x10] sm:$0xf]
    %v1323 = vld [vmem:[%s1317 + $0x14] sm:$0xf]
    %v1324 = vld [vmem:[%s1317 + $0x18] sm:$0xf]
    %v1325 = vld [vmem:[%s1317 + $0x1c] sm:$0xf]
    %v1326 = vld [vmem:[%s1317 + $0x20] sm:$0xf]
    %v1327 = vld [vmem:[%s1317 + $0x24] sm:$0xf]
    %v1328 = vld [vmem:[%s1317 + $0x28] sm:$0xf]
    %v1329 = vld [vmem:[%s1317 + $0x2c] sm:$0xf]
    %v1330 = vld [vmem:[%s1317 + $0x30] sm:$0xf]
    %v1331 = vld [vmem:[%s1317 + $0x34] sm:$0xf]
    %v1332 = vld [vmem:[%s1317 + $0x38] sm:$0xf]
    %v1333 = vld [vmem:[%s1317 + $0x3c] sm:$0xf]
    %v1335 = vunpack.c.l.b16 %v1297
    %v1336 = vpack.c.b16 %v1335, %v1335
    %v1337 = vrot.slane %v1336, 1
    %v1355 = vunpack.c.l.b16 %v1318
    %v1356 = vunpack.c.l.b16 %v1319
    %v1357 = vunpack.c.l.b16 %v1320
    %v1358 = vunpack.c.l.b16 %v1321
    %v1359 = vunpack.c.l.b16 %v1322
    %v1360 = vunpack.c.l.b16 %v1323
    %v1361 = vunpack.c.l.b16 %v1324
    %v1362 = vunpack.c.l.b16 %v1325
    %v1363 = vunpack.c.l.b16 %v1326
    %v1364 = vunpack.c.l.b16 %v1327
    %v1365 = vunpack.c.l.b16 %v1328
    %v1366 = vunpack.c.l.b16 %v1329
    %v1367 = vunpack.c.l.b16 %v1330
    %v1368 = vunpack.c.l.b16 %v1331
    %v1369 = vunpack.c.l.b16 %v1332
    %v1370 = vunpack.c.l.b16 %v1333
    %v1371 = vpack.c.b16 %v1356, %v1355
    %v1372 = vpack.c.b16 %v1358, %v1357
    %v1373 = vpack.c.b16 %v1360, %v1359
    %v1374 = vpack.c.b16 %v1362, %v1361
    %v1375 = vpack.c.b16 %v1364, %v1363
    %v1376 = vpack.c.b16 %v1366, %v1365
    %v1377 = vpack.c.b16 %v1368, %v1367
    %v1378 = vpack.c.b16 %v1370, %v1369
    %1387 = vmatpush.bf16.msra.mxu0 %v1378
    %1388 = vmatpush.bf16.msra.mxu0 %v1377
    %1389 = vmatpush.bf16.msra.mxu0 %v1376
    %1390 = vmatpush.bf16.msra.mxu0 %v1375
    %1391 = vmatpush.bf16.msra.mxu0 %v1374
    %1392 = vmatpush.bf16.msra.mxu0 %v1373
    %1393 = vmatpush.bf16.msra.mxu0 %v1372
    %1394 = vmatpush.bf16.msra.mxu0 %v1371
    %1395 = vmatmul.bf16.gmra.mxu0 %v1337
    %v1396 = vpop.f32.mrf.mxu0
    %v1397 = vadd.f32 0.0, %v1396
    %v1398 = vpop.f32.mrf.mxu0
    %1399 = vdwg.mxu0
    %v1416 = vunpack.c.l.b16 %v1301
    %v1417 = vunpack.c.l.b16 %v1302
    %v1418 = vunpack.c.l.b16 %v1303
    %v1419 = vunpack.c.l.b16 %v1304
    %v1420 = vunpack.c.l.b16 %v1305
    %v1421 = vunpack.c.l.b16 %v1306
    %v1422 = vunpack.c.l.b16 %v1307
    %v1423 = vunpack.c.l.b16 %v1308
    %v1424 = vunpack.c.l.b16 %v1309
    %v1425 = vunpack.c.l.b16 %v1310
    %v1426 = vunpack.c.l.b16 %v1311
    %v1427 = vunpack.c.l.b16 %v1312
    %v1428 = vunpack.c.l.b16 %v1313
    %v1429 = vunpack.c.l.b16 %v1314
    %v1430 = vunpack.c.l.b16 %v1315
    %v1431 = vunpack.c.l.b16 %v1316
    %v1432 = vpack.c.b16 %v1417, %v1416
    %v1433 = vpack.c.b16 %v1419, %v1418
    %v1434 = vpack.c.b16 %v1421, %v1420
    %v1435 = vpack.c.b16 %v1423, %v1422
    %v1436 = vpack.c.b16 %v1425, %v1424
    %v1437 = vpack.c.b16 %v1427, %v1426
    %v1438 = vpack.c.b16 %v1429, %v1428
    %v1439 = vpack.c.b16 %v1431, %v1430
    %1448 = vmatpush.bf16.msra.mxu0 %v1439
    %1449 = vmatpush.bf16.msra.mxu0 %v1438
    %1450 = vmatpush.bf16.msra.mxu0 %v1437
    %1451 = vmatpush.bf16.msra.mxu0 %v1436
    %1452 = vmatpush.bf16.msra.mxu0 %v1435
    %1453 = vmatpush.bf16.msra.mxu0 %v1434
    %1454 = vmatpush.bf16.msra.mxu0 %v1433
    %1455 = vmatpush.bf16.msra.mxu0 %v1432
    %1456 = vmatmul.bf16.gmra.mxu0 %v1297
    %v1457 = vpop.f32.mrf.mxu0
    %v1458 = vadd.f32 %v1397, %v1457
    %v1459 = vpop.f32.mrf.mxu0
    %1460 = vdwg.mxu0
    %s1461 = scalar_lea.vmem %s4, 128
    %v1462 = vld [vmem:[%s1461] sm:$0xf]
    %v1463 = vld [vmem:[%s1461 + $0x4] sm:$0xf]
    %v1464 = vld [vmem:[%s1461 + $0x8] sm:$0xf]
    %v1465 = vld [vmem:[%s1461 + $0xc] sm:$0xf]
    %v1466 = vld [vmem:[%s1461 + $0x10] sm:$0xf]
    %v1467 = vld [vmem:[%s1461 + $0x14] sm:$0xf]
    %v1468 = vld [vmem:[%s1461 + $0x18] sm:$0xf]
    %v1469 = vld [vmem:[%s1461 + $0x1c] sm:$0xf]
    %v1470 = vld [vmem:[%s1461 + $0x20] sm:$0xf]
    %v1471 = vld [vmem:[%s1461 + $0x24] sm:$0xf]
    %v1472 = vld [vmem:[%s1461 + $0x28] sm:$0xf]
    %v1473 = vld [vmem:[%s1461 + $0x2c] sm:$0xf]
    %v1474 = vld [vmem:[%s1461 + $0x30] sm:$0xf]
    %v1475 = vld [vmem:[%s1461 + $0x34] sm:$0xf]
    %v1476 = vld [vmem:[%s1461 + $0x38] sm:$0xf]
    %v1477 = vld [vmem:[%s1461 + $0x3c] sm:$0xf]
    %v1478 = vrot.slane %v1336, 2
    %v1496 = vunpack.c.l.b16 %v1462
    %v1497 = vunpack.c.l.b16 %v1463
    %v1498 = vunpack.c.l.b16 %v1464
    %v1499 = vunpack.c.l.b16 %v1465
    %v1500 = vunpack.c.l.b16 %v1466
    %v1501 = vunpack.c.l.b16 %v1467
    %v1502 = vunpack.c.l.b16 %v1468
    %v1503 = vunpack.c.l.b16 %v1469
    %v1504 = vunpack.c.l.b16 %v1470
    %v1505 = vunpack.c.l.b16 %v1471
    %v1506 = vunpack.c.l.b16 %v1472
    %v1507 = vunpack.c.l.b16 %v1473
    %v1508 = vunpack.c.l.b16 %v1474
    %v1509 = vunpack.c.l.b16 %v1475
    %v1510 = vunpack.c.l.b16 %v1476
    %v1511 = vunpack.c.l.b16 %v1477
    %v1512 = vpack.c.b16 %v1497, %v1496
    %v1513 = vpack.c.b16 %v1499, %v1498
    %v1514 = vpack.c.b16 %v1501, %v1500
    %v1515 = vpack.c.b16 %v1503, %v1502
    %v1516 = vpack.c.b16 %v1505, %v1504
    %v1517 = vpack.c.b16 %v1507, %v1506
    %v1518 = vpack.c.b16 %v1509, %v1508
    %v1519 = vpack.c.b16 %v1511, %v1510
    %1528 = vmatpush.bf16.msra.mxu0 %v1519
    %1529 = vmatpush.bf16.msra.mxu0 %v1518
    %1530 = vmatpush.bf16.msra.mxu0 %v1517
    %1531 = vmatpush.bf16.msra.mxu0 %v1516
    %1532 = vmatpush.bf16.msra.mxu0 %v1515
    %1533 = vmatpush.bf16.msra.mxu0 %v1514
    %1534 = vmatpush.bf16.msra.mxu0 %v1513
    %1535 = vmatpush.bf16.msra.mxu0 %v1512
    %1536 = vmatmul.bf16.gmra.mxu0 %v1478
    %v1537 = vpop.f32.mrf.mxu0
    %v1538 = vadd.f32 0.0, %v1537
    %v1539 = vpop.f32.mrf.mxu0
    %1540 = vdwg.mxu0
    %v1541 = vadd.f32 %v1458, %v1538
    %s1542 = scalar_lea.vmem %s4, 192
    %v1543 = vld [vmem:[%s1542] sm:$0xf]
    %v1544 = vld [vmem:[%s1542 + $0x4] sm:$0xf]
    %v1545 = vld [vmem:[%s1542 + $0x8] sm:$0xf]
    %v1546 = vld [vmem:[%s1542 + $0xc] sm:$0xf]
    %v1547 = vld [vmem:[%s1542 + $0x10] sm:$0xf]
    %v1548 = vld [vmem:[%s1542 + $0x14] sm:$0xf]
    %v1549 = vld [vmem:[%s1542 + $0x18] sm:$0xf]
    %v1550 = vld [vmem:[%s1542 + $0x1c] sm:$0xf]
    %v1551 = vld [vmem:[%s1542 + $0x20] sm:$0xf]
    %v1552 = vld [vmem:[%s1542 + $0x24] sm:$0xf]
    %v1553 = vld [vmem:[%s1542 + $0x28] sm:$0xf]
    %v1554 = vld [vmem:[%s1542 + $0x2c] sm:$0xf]
    %v1555 = vld [vmem:[%s1542 + $0x30] sm:$0xf]
    %v1556 = vld [vmem:[%s1542 + $0x34] sm:$0xf]
    %v1557 = vld [vmem:[%s1542 + $0x38] sm:$0xf]
    %v1558 = vld [vmem:[%s1542 + $0x3c] sm:$0xf]
    %v1559 = vrot.slane %v1336, 3
    %v1577 = vunpack.c.l.b16 %v1543
    %v1578 = vunpack.c.l.b16 %v1544
    %v1579 = vunpack.c.l.b16 %v1545
    %v1580 = vunpack.c.l.b16 %v1546
    %v1581 = vunpack.c.l.b16 %v1547
    %v1582 = vunpack.c.l.b16 %v1548
    %v1583 = vunpack.c.l.b16 %v1549
    %v1584 = vunpack.c.l.b16 %v1550
    %v1585 = vunpack.c.l.b16 %v1551
    %v1586 = vunpack.c.l.b16 %v1552
    %v1587 = vunpack.c.l.b16 %v1553
    %v1588 = vunpack.c.l.b16 %v1554
    %v1589 = vunpack.c.l.b16 %v1555
    %v1590 = vunpack.c.l.b16 %v1556
    %v1591 = vunpack.c.l.b16 %v1557
    %v1592 = vunpack.c.l.b16 %v1558
    %v1593 = vpack.c.b16 %v1578, %v1577
    %v1594 = vpack.c.b16 %v1580, %v1579
    %v1595 = vpack.c.b16 %v1582, %v1581
    %v1596 = vpack.c.b16 %v1584, %v1583
    %v1597 = vpack.c.b16 %v1586, %v1585
    %v1598 = vpack.c.b16 %v1588, %v1587
    %v1599 = vpack.c.b16 %v1590, %v1589
    %v1600 = vpack.c.b16 %v1592, %v1591
    %1609 = vmatpush.bf16.msra.mxu0 %v1600
    %1610 = vmatpush.bf16.msra.mxu0 %v1599
    %1611 = vmatpush.bf16.msra.mxu0 %v1598
    %1612 = vmatpush.bf16.msra.mxu0 %v1597
    %1613 = vmatpush.bf16.msra.mxu0 %v1596
    %1614 = vmatpush.bf16.msra.mxu0 %v1595
    %1615 = vmatpush.bf16.msra.mxu0 %v1594
    %1616 = vmatpush.bf16.msra.mxu0 %v1593
    %1617 = vmatmul.bf16.gmra.mxu0 %v1559
    %v1618 = vpop.f32.mrf.mxu0
    %v1619 = vadd.f32 0.0, %v1618
    %v1620 = vpop.f32.mrf.mxu0
    %1621 = vdwg.mxu0
    %v1622 = vadd.f32 %v1541, %v1619
    %s1623 = scalar_lea.vmem %s4, 256
    %v1624 = vld [vmem:[%s1623] sm:$0xf]
    %v1625 = vld [vmem:[%s1623 + $0x4] sm:$0xf]
    %v1626 = vld [vmem:[%s1623 + $0x8] sm:$0xf]
    %v1627 = vld [vmem:[%s1623 + $0xc] sm:$0xf]
    %v1628 = vld [vmem:[%s1623 + $0x10] sm:$0xf]
    %v1629 = vld [vmem:[%s1623 + $0x14] sm:$0xf]
    %v1630 = vld [vmem:[%s1623 + $0x18] sm:$0xf]
    %v1631 = vld [vmem:[%s1623 + $0x1c] sm:$0xf]
    %v1632 = vld [vmem:[%s1623 + $0x20] sm:$0xf]
    %v1633 = vld [vmem:[%s1623 + $0x24] sm:$0xf]
    %v1634 = vld [vmem:[%s1623 + $0x28] sm:$0xf]
    %v1635 = vld [vmem:[%s1623 + $0x2c] sm:$0xf]
    %v1636 = vld [vmem:[%s1623 + $0x30] sm:$0xf]
    %v1637 = vld [vmem:[%s1623 + $0x34] sm:$0xf]
    %v1638 = vld [vmem:[%s1623 + $0x38] sm:$0xf]
    %v1639 = vld [vmem:[%s1623 + $0x3c] sm:$0xf]
    %v1656 = vunpack.c.l.b16 %v1624
    %v1657 = vunpack.c.l.b16 %v1625
    %v1658 = vunpack.c.l.b16 %v1626
    %v1659 = vunpack.c.l.b16 %v1627
    %v1660 = vunpack.c.l.b16 %v1628
    %v1661 = vunpack.c.l.b16 %v1629
    %v1662 = vunpack.c.l.b16 %v1630
    %v1663 = vunpack.c.l.b16 %v1631
    %v1664 = vunpack.c.l.b16 %v1632
    %v1665 = vunpack.c.l.b16 %v1633
    %v1666 = vunpack.c.l.b16 %v1634
    %v1667 = vunpack.c.l.b16 %v1635
    %v1668 = vunpack.c.l.b16 %v1636
    %v1669 = vunpack.c.l.b16 %v1637
    %v1670 = vunpack.c.l.b16 %v1638
    %v1671 = vunpack.c.l.b16 %v1639
    %v1672 = vpack.c.b16 %v1657, %v1656
    %v1673 = vpack.c.b16 %v1659, %v1658
    %v1674 = vpack.c.b16 %v1661, %v1660
    %v1675 = vpack.c.b16 %v1663, %v1662
    %v1676 = vpack.c.b16 %v1665, %v1664
    %v1677 = vpack.c.b16 %v1667, %v1666
    %v1678 = vpack.c.b16 %v1669, %v1668
    %v1679 = vpack.c.b16 %v1671, %v1670
    %1688 = vmatpush.bf16.msra.mxu0 %v1679
    %1689 = vmatpush.bf16.msra.mxu0 %v1678
    %1690 = vmatpush.bf16.msra.mxu0 %v1677
    %1691 = vmatpush.bf16.msra.mxu0 %v1676
    %1692 = vmatpush.bf16.msra.mxu0 %v1675
    %1693 = vmatpush.bf16.msra.mxu0 %v1674
    %1694 = vmatpush.bf16.msra.mxu0 %v1673
    %1695 = vmatpush.bf16.msra.mxu0 %v1672
    %1696 = vmatmul.bf16.gmra.mxu0 %v1298
    %v1697 = vpop.f32.mrf.mxu0
    %v1698 = vadd.f32 0.0, %v1697
    %v1699 = vpop.f32.mrf.mxu0
    %1700 = vdwg.mxu0
    %v1701 = vadd.f32 %v1622, %v1698
    %s1702 = scalar_lea.vmem %s4, 320
    %v1703 = vld [vmem:[%s1702] sm:$0xf]
    %v1704 = vld [vmem:[%s1702 + $0x4] sm:$0xf]
    %v1705 = vld [vmem:[%s1702 + $0x8] sm:$0xf]
    %v1706 = vld [vmem:[%s1702 + $0xc] sm:$0xf]
    %v1707 = vld [vmem:[%s1702 + $0x10] sm:$0xf]
    %v1708 = vld [vmem:[%s1702 + $0x14] sm:$0xf]
    %v1709 = vld [vmem:[%s1702 + $0x18] sm:$0xf]
    %v1710 = vld [vmem:[%s1702 + $0x1c] sm:$0xf]
    %v1711 = vld [vmem:[%s1702 + $0x20] sm:$0xf]
    %v1712 = vld [vmem:[%s1702 + $0x24] sm:$0xf]
    %v1713 = vld [vmem:[%s1702 + $0x28] sm:$0xf]
    %v1714 = vld [vmem:[%s1702 + $0x2c] sm:$0xf]
    %v1715 = vld [vmem:[%s1702 + $0x30] sm:$0xf]
    %v1716 = vld [vmem:[%s1702 + $0x34] sm:$0xf]
    %v1717 = vld [vmem:[%s1702 + $0x38] sm:$0xf]
    %v1718 = vld [vmem:[%s1702 + $0x3c] sm:$0xf]
    %v1720 = vunpack.c.l.b16 %v1298
    %v1721 = vpack.c.b16 %v1720, %v1720
    %v1722 = vrot.slane %v1721, 1
    %v1740 = vunpack.c.l.b16 %v1703
    %v1741 = vunpack.c.l.b16 %v1704
    %v1742 = vunpack.c.l.b16 %v1705
    %v1743 = vunpack.c.l.b16 %v1706
    %v1744 = vunpack.c.l.b16 %v1707
    %v1745 = vunpack.c.l.b16 %v1708
    %v1746 = vunpack.c.l.b16 %v1709
    %v1747 = vunpack.c.l.b16 %v1710
    %v1748 = vunpack.c.l.b16 %v1711
    %v1749 = vunpack.c.l.b16 %v1712
    %v1750 = vunpack.c.l.b16 %v1713
    %v1751 = vunpack.c.l.b16 %v1714
    %v1752 = vunpack.c.l.b16 %v1715
    %v1753 = vunpack.c.l.b16 %v1716
    %v1754 = vunpack.c.l.b16 %v1717
    %v1755 = vunpack.c.l.b16 %v1718
    %v1756 = vpack.c.b16 %v1741, %v1740
    %v1757 = vpack.c.b16 %v1743, %v1742
    %v1758 = vpack.c.b16 %v1745, %v1744
    %v1759 = vpack.c.b16 %v1747, %v1746
    %v1760 = vpack.c.b16 %v1749, %v1748
    %v1761 = vpack.c.b16 %v1751, %v1750
    %v1762 = vpack.c.b16 %v1753, %v1752
    %v1763 = vpack.c.b16 %v1755, %v1754
    %1772 = vmatpush.bf16.msra.mxu0 %v1763
    %1773 = vmatpush.bf16.msra.mxu0 %v1762
    %1774 = vmatpush.bf16.msra.mxu0 %v1761
    %1775 = vmatpush.bf16.msra.mxu0 %v1760
    %1776 = vmatpush.bf16.msra.mxu0 %v1759
    %1777 = vmatpush.bf16.msra.mxu0 %v1758
    %1778 = vmatpush.bf16.msra.mxu0 %v1757
    %1779 = vmatpush.bf16.msra.mxu0 %v1756
    %1780 = vmatmul.bf16.gmra.mxu0 %v1722
    %v1781 = vpop.f32.mrf.mxu0
    %v1782 = vadd.f32 0.0, %v1781
    %v1783 = vpop.f32.mrf.mxu0
    %1784 = vdwg.mxu0
    %v1785 = vadd.f32 %v1701, %v1782
    %s1786 = scalar_lea.vmem %s4, 384
    %v1787 = vld [vmem:[%s1786] sm:$0xf]
    %v1788 = vld [vmem:[%s1786 + $0x4] sm:$0xf]
    %v1789 = vld [vmem:[%s1786 + $0x8] sm:$0xf]
    %v1790 = vld [vmem:[%s1786 + $0xc] sm:$0xf]
    %v1791 = vld [vmem:[%s1786 + $0x10] sm:$0xf]
    %v1792 = vld [vmem:[%s1786 + $0x14] sm:$0xf]
    %v1793 = vld [vmem:[%s1786 + $0x18] sm:$0xf]
    %v1794 = vld [vmem:[%s1786 + $0x1c] sm:$0xf]
    %v1795 = vld [vmem:[%s1786 + $0x20] sm:$0xf]
    %v1796 = vld [vmem:[%s1786 + $0x24] sm:$0xf]
    %v1797 = vld [vmem:[%s1786 + $0x28] sm:$0xf]
    %v1798 = vld [vmem:[%s1786 + $0x2c] sm:$0xf]
    %v1799 = vld [vmem:[%s1786 + $0x30] sm:$0xf]
    %v1800 = vld [vmem:[%s1786 + $0x34] sm:$0xf]
    %v1801 = vld [vmem:[%s1786 + $0x38] sm:$0xf]
    %v1802 = vld [vmem:[%s1786 + $0x3c] sm:$0xf]
    %v1803 = vrot.slane %v1721, 2
    %v1821 = vunpack.c.l.b16 %v1787
    %v1822 = vunpack.c.l.b16 %v1788
    %v1823 = vunpack.c.l.b16 %v1789
    %v1824 = vunpack.c.l.b16 %v1790
    %v1825 = vunpack.c.l.b16 %v1791
    %v1826 = vunpack.c.l.b16 %v1792
    %v1827 = vunpack.c.l.b16 %v1793
    %v1828 = vunpack.c.l.b16 %v1794
    %v1829 = vunpack.c.l.b16 %v1795
    %v1830 = vunpack.c.l.b16 %v1796
    %v1831 = vunpack.c.l.b16 %v1797
    %v1832 = vunpack.c.l.b16 %v1798
    %v1833 = vunpack.c.l.b16 %v1799
    %v1834 = vunpack.c.l.b16 %v1800
    %v1835 = vunpack.c.l.b16 %v1801
    %v1836 = vunpack.c.l.b16 %v1802
    %v1837 = vpack.c.b16 %v1822, %v1821
    %v1838 = vpack.c.b16 %v1824, %v1823
    %v1839 = vpack.c.b16 %v1826, %v1825
    %v1840 = vpack.c.b16 %v1828, %v1827
    %v1841 = vpack.c.b16 %v1830, %v1829
    %v1842 = vpack.c.b16 %v1832, %v1831
    %v1843 = vpack.c.b16 %v1834, %v1833
    %v1844 = vpack.c.b16 %v1836, %v1835
    %1853 = vmatpush.bf16.msra.mxu0 %v1844
    %1854 = vmatpush.bf16.msra.mxu0 %v1843
    %1855 = vmatpush.bf16.msra.mxu0 %v1842
    %1856 = vmatpush.bf16.msra.mxu0 %v1841
    %1857 = vmatpush.bf16.msra.mxu0 %v1840
    %1858 = vmatpush.bf16.msra.mxu0 %v1839
    %1859 = vmatpush.bf16.msra.mxu0 %v1838
    %1860 = vmatpush.bf16.msra.mxu0 %v1837
    %1861 = vmatmul.bf16.gmra.mxu0 %v1803
    %v1862 = vpop.f32.mrf.mxu0
    %v1863 = vadd.f32 0.0, %v1862
    %v1864 = vpop.f32.mrf.mxu0
    %1865 = vdwg.mxu0
    %v1866 = vadd.f32 %v1785, %v1863
    %s1867 = scalar_lea.vmem %s4, 448
    %v1868 = vld [vmem:[%s1867] sm:$0xf]
    %v1869 = vld [vmem:[%s1867 + $0x4] sm:$0xf]
    %v1870 = vld [vmem:[%s1867 + $0x8] sm:$0xf]
    %v1871 = vld [vmem:[%s1867 + $0xc] sm:$0xf]
    %v1872 = vld [vmem:[%s1867 + $0x10] sm:$0xf]
    %v1873 = vld [vmem:[%s1867 + $0x14] sm:$0xf]
    %v1874 = vld [vmem:[%s1867 + $0x18] sm:$0xf]
    %v1875 = vld [vmem:[%s1867 + $0x1c] sm:$0xf]
    %v1876 = vld [vmem:[%s1867 + $0x20] sm:$0xf]
    %v1877 = vld [vmem:[%s1867 + $0x24] sm:$0xf]
    %v1878 = vld [vmem:[%s1867 + $0x28] sm:$0xf]
    %v1879 = vld [vmem:[%s1867 + $0x2c] sm:$0xf]
    %v1880 = vld [vmem:[%s1867 + $0x30] sm:$0xf]
    %v1881 = vld [vmem:[%s1867 + $0x34] sm:$0xf]
    %v1882 = vld [vmem:[%s1867 + $0x38] sm:$0xf]
    %v1883 = vld [vmem:[%s1867 + $0x3c] sm:$0xf]
    %v1884 = vrot.slane %v1721, 3
    %v1902 = vunpack.c.l.b16 %v1868
    %v1903 = vunpack.c.l.b16 %v1869
    %v1904 = vunpack.c.l.b16 %v1870
    %v1905 = vunpack.c.l.b16 %v1871
    %v1906 = vunpack.c.l.b16 %v1872
    %v1907 = vunpack.c.l.b16 %v1873
    %v1908 = vunpack.c.l.b16 %v1874
    %v1909 = vunpack.c.l.b16 %v1875
    %v1910 = vunpack.c.l.b16 %v1876
    %v1911 = vunpack.c.l.b16 %v1877
    %v1912 = vunpack.c.l.b16 %v1878
    %v1913 = vunpack.c.l.b16 %v1879
    %v1914 = vunpack.c.l.b16 %v1880
    %v1915 = vunpack.c.l.b16 %v1881
    %v1916 = vunpack.c.l.b16 %v1882
    %v1917 = vunpack.c.l.b16 %v1883
    %v1918 = vpack.c.b16 %v1903, %v1902
    %v1919 = vpack.c.b16 %v1905, %v1904
    %v1920 = vpack.c.b16 %v1907, %v1906
    %v1921 = vpack.c.b16 %v1909, %v1908
    %v1922 = vpack.c.b16 %v1911, %v1910
    %v1923 = vpack.c.b16 %v1913, %v1912
    %v1924 = vpack.c.b16 %v1915, %v1914
    %v1925 = vpack.c.b16 %v1917, %v1916
    %1934 = vmatpush.bf16.msra.mxu0 %v1925
    %1935 = vmatpush.bf16.msra.mxu0 %v1924
    %1936 = vmatpush.bf16.msra.mxu0 %v1923
    %1937 = vmatpush.bf16.msra.mxu0 %v1922
    %1938 = vmatpush.bf16.msra.mxu0 %v1921
    %1939 = vmatpush.bf16.msra.mxu0 %v1920
    %1940 = vmatpush.bf16.msra.mxu0 %v1919
    %1941 = vmatpush.bf16.msra.mxu0 %v1918
    %1942 = vmatmul.bf16.gmra.mxu0 %v1884
    %v1943 = vpop.f32.mrf.mxu0
    %v1944 = vadd.f32 0.0, %v1943
    %v1945 = vpop.f32.mrf.mxu0
    %1946 = vdwg.mxu0
    %v1947 = vadd.f32 %v1866, %v1944
    %s1948 = scalar_lea.vmem %s4, 512
    %v1949 = vld [vmem:[%s1948] sm:$0xf]
    %v1950 = vld [vmem:[%s1948 + $0x4] sm:$0xf]
    %v1951 = vld [vmem:[%s1948 + $0x8] sm:$0xf]
    %v1952 = vld [vmem:[%s1948 + $0xc] sm:$0xf]
    %v1953 = vld [vmem:[%s1948 + $0x10] sm:$0xf]
    %v1954 = vld [vmem:[%s1948 + $0x14] sm:$0xf]
    %v1955 = vld [vmem:[%s1948 + $0x18] sm:$0xf]
    %v1956 = vld [vmem:[%s1948 + $0x1c] sm:$0xf]
    %v1957 = vld [vmem:[%s1948 + $0x20] sm:$0xf]
    %v1958 = vld [vmem:[%s1948 + $0x24] sm:$0xf]
    %v1959 = vld [vmem:[%s1948 + $0x28] sm:$0xf]
    %v1960 = vld [vmem:[%s1948 + $0x2c] sm:$0xf]
    %v1961 = vld [vmem:[%s1948 + $0x30] sm:$0xf]
    %v1962 = vld [vmem:[%s1948 + $0x34] sm:$0xf]
    %v1963 = vld [vmem:[%s1948 + $0x38] sm:$0xf]
    %v1964 = vld [vmem:[%s1948 + $0x3c] sm:$0xf]
    %v1981 = vunpack.c.l.b16 %v1949
    %v1982 = vunpack.c.l.b16 %v1950
    %v1983 = vunpack.c.l.b16 %v1951
    %v1984 = vunpack.c.l.b16 %v1952
    %v1985 = vunpack.c.l.b16 %v1953
    %v1986 = vunpack.c.l.b16 %v1954
    %v1987 = vunpack.c.l.b16 %v1955
    %v1988 = vunpack.c.l.b16 %v1956
    %v1989 = vunpack.c.l.b16 %v1957
    %v1990 = vunpack.c.l.b16 %v1958
    %v1991 = vunpack.c.l.b16 %v1959
    %v1992 = vunpack.c.l.b16 %v1960
    %v1993 = vunpack.c.l.b16 %v1961
    %v1994 = vunpack.c.l.b16 %v1962
    %v1995 = vunpack.c.l.b16 %v1963
    %v1996 = vunpack.c.l.b16 %v1964
    %v1997 = vpack.c.b16 %v1982, %v1981
    %v1998 = vpack.c.b16 %v1984, %v1983
    %v1999 = vpack.c.b16 %v1986, %v1985
    %v2000 = vpack.c.b16 %v1988, %v1987
    %v2001 = vpack.c.b16 %v1990, %v1989
    %v2002 = vpack.c.b16 %v1992, %v1991
    %v2003 = vpack.c.b16 %v1994, %v1993
    %v2004 = vpack.c.b16 %v1996, %v1995
    %2013 = vmatpush.bf16.msra.mxu0 %v2004
    %2014 = vmatpush.bf16.msra.mxu0 %v2003
    %2015 = vmatpush.bf16.msra.mxu0 %v2002
    %2016 = vmatpush.bf16.msra.mxu0 %v2001
    %2017 = vmatpush.bf16.msra.mxu0 %v2000
    %2018 = vmatpush.bf16.msra.mxu0 %v1999
    %2019 = vmatpush.bf16.msra.mxu0 %v1998
    %2020 = vmatpush.bf16.msra.mxu0 %v1997
    %2021 = vmatmul.bf16.gmra.mxu0 %v1299
    %v2022 = vpop.f32.mrf.mxu0
    %v2023 = vadd.f32 0.0, %v2022
    %v2024 = vpop.f32.mrf.mxu0
    %2025 = vdwg.mxu0
    %v2026 = vadd.f32 %v1947, %v2023
    %s2027 = scalar_lea.vmem %s4, 576
    %v2028 = vld [vmem:[%s2027] sm:$0xf]
    %v2029 = vld [vmem:[%s2027 + $0x4] sm:$0xf]
    %v2030 = vld [vmem:[%s2027 + $0x8] sm:$0xf]
    %v2031 = vld [vmem:[%s2027 + $0xc] sm:$0xf]
    %v2032 = vld [vmem:[%s2027 + $0x10] sm:$0xf]
    %v2033 = vld [vmem:[%s2027 + $0x14] sm:$0xf]
    %v2034 = vld [vmem:[%s2027 + $0x18] sm:$0xf]
    %v2035 = vld [vmem:[%s2027 + $0x1c] sm:$0xf]
    %v2036 = vld [vmem:[%s2027 + $0x20] sm:$0xf]
    %v2037 = vld [vmem:[%s2027 + $0x24] sm:$0xf]
    %v2038 = vld [vmem:[%s2027 + $0x28] sm:$0xf]
    %v2039 = vld [vmem:[%s2027 + $0x2c] sm:$0xf]
    %v2040 = vld [vmem:[%s2027 + $0x30] sm:$0xf]
    %v2041 = vld [vmem:[%s2027 + $0x34] sm:$0xf]
    %v2042 = vld [vmem:[%s2027 + $0x38] sm:$0xf]
    %v2043 = vld [vmem:[%s2027 + $0x3c] sm:$0xf]
    %v2045 = vunpack.c.l.b16 %v1299
    %v2046 = vpack.c.b16 %v2045, %v2045
    %v2047 = vrot.slane %v2046, 1
    %v2065 = vunpack.c.l.b16 %v2028
    %v2066 = vunpack.c.l.b16 %v2029
    %v2067 = vunpack.c.l.b16 %v2030
    %v2068 = vunpack.c.l.b16 %v2031
    %v2069 = vunpack.c.l.b16 %v2032
    %v2070 = vunpack.c.l.b16 %v2033
    %v2071 = vunpack.c.l.b16 %v2034
    %v2072 = vunpack.c.l.b16 %v2035
    %v2073 = vunpack.c.l.b16 %v2036
    %v2074 = vunpack.c.l.b16 %v2037
    %v2075 = vunpack.c.l.b16 %v2038
    %v2076 = vunpack.c.l.b16 %v2039
    %v2077 = vunpack.c.l.b16 %v2040
    %v2078 = vunpack.c.l.b16 %v2041
    %v2079 = vunpack.c.l.b16 %v2042
    %v2080 = vunpack.c.l.b16 %v2043
    %v2081 = vpack.c.b16 %v2066, %v2065
    %v2082 = vpack.c.b16 %v2068, %v2067
    %v2083 = vpack.c.b16 %v2070, %v2069
    %v2084 = vpack.c.b16 %v2072, %v2071
    %v2085 = vpack.c.b16 %v2074, %v2073
    %v2086 = vpack.c.b16 %v2076, %v2075
    %v2087 = vpack.c.b16 %v2078, %v2077
    %v2088 = vpack.c.b16 %v2080, %v2079
    %2097 = vmatpush.bf16.msra.mxu0 %v2088
    %2098 = vmatpush.bf16.msra.mxu0 %v2087
    %2099 = vmatpush.bf16.msra.mxu0 %v2086
    %2100 = vmatpush.bf16.msra.mxu0 %v2085
    %2101 = vmatpush.bf16.msra.mxu0 %v2084
    %2102 = vmatpush.bf16.msra.mxu0 %v2083
    %2103 = vmatpush.bf16.msra.mxu0 %v2082
    %2104 = vmatpush.bf16.msra.mxu0 %v2081
    %2105 = vmatmul.bf16.gmra.mxu0 %v2047
    %v2106 = vpop.f32.mrf.mxu0
    %v2107 = vadd.f32 0.0, %v2106
    %v2108 = vpop.f32.mrf.mxu0
    %2109 = vdwg.mxu0
    %v2110 = vadd.f32 %v2026, %v2107
    %s2111 = scalar_lea.vmem %s4, 640
    %v2112 = vld [vmem:[%s2111] sm:$0xf]
    %v2113 = vld [vmem:[%s2111 + $0x4] sm:$0xf]
    %v2114 = vld [vmem:[%s2111 + $0x8] sm:$0xf]
    %v2115 = vld [vmem:[%s2111 + $0xc] sm:$0xf]
    %v2116 = vld [vmem:[%s2111 + $0x10] sm:$0xf]
    %v2117 = vld [vmem:[%s2111 + $0x14] sm:$0xf]
    %v2118 = vld [vmem:[%s2111 + $0x18] sm:$0xf]
    %v2119 = vld [vmem:[%s2111 + $0x1c] sm:$0xf]
    %v2120 = vld [vmem:[%s2111 + $0x20] sm:$0xf]
    %v2121 = vld [vmem:[%s2111 + $0x24] sm:$0xf]
    %v2122 = vld [vmem:[%s2111 + $0x28] sm:$0xf]
    %v2123 = vld [vmem:[%s2111 + $0x2c] sm:$0xf]
    %v2124 = vld [vmem:[%s2111 + $0x30] sm:$0xf]
    %v2125 = vld [vmem:[%s2111 + $0x34] sm:$0xf]
    %v2126 = vld [vmem:[%s2111 + $0x38] sm:$0xf]
    %v2127 = vld [vmem:[%s2111 + $0x3c] sm:$0xf]
    %v2128 = vrot.slane %v2046, 2
    %v2146 = vunpack.c.l.b16 %v2112
    %v2147 = vunpack.c.l.b16 %v2113
    %v2148 = vunpack.c.l.b16 %v2114
    %v2149 = vunpack.c.l.b16 %v2115
    %v2150 = vunpack.c.l.b16 %v2116
    %v2151 = vunpack.c.l.b16 %v2117
    %v2152 = vunpack.c.l.b16 %v2118
    %v2153 = vunpack.c.l.b16 %v2119
    %v2154 = vunpack.c.l.b16 %v2120
    %v2155 = vunpack.c.l.b16 %v2121
    %v2156 = vunpack.c.l.b16 %v2122
    %v2157 = vunpack.c.l.b16 %v2123
    %v2158 = vunpack.c.l.b16 %v2124
    %v2159 = vunpack.c.l.b16 %v2125
    %v2160 = vunpack.c.l.b16 %v2126
    %v2161 = vunpack.c.l.b16 %v2127
    %v2162 = vpack.c.b16 %v2147, %v2146
    %v2163 = vpack.c.b16 %v2149, %v2148
    %v2164 = vpack.c.b16 %v2151, %v2150
    %v2165 = vpack.c.b16 %v2153, %v2152
    %v2166 = vpack.c.b16 %v2155, %v2154
    %v2167 = vpack.c.b16 %v2157, %v2156
    %v2168 = vpack.c.b16 %v2159, %v2158
    %v2169 = vpack.c.b16 %v2161, %v2160
    %2178 = vmatpush.bf16.msra.mxu0 %v2169
    %2179 = vmatpush.bf16.msra.mxu0 %v2168
    %2180 = vmatpush.bf16.msra.mxu0 %v2167
    %2181 = vmatpush.bf16.msra.mxu0 %v2166
    %2182 = vmatpush.bf16.msra.mxu0 %v2165
    %2183 = vmatpush.bf16.msra.mxu0 %v2164
    %2184 = vmatpush.bf16.msra.mxu0 %v2163
    %2185 = vmatpush.bf16.msra.mxu0 %v2162
    %2186 = vmatmul.bf16.gmra.mxu0 %v2128
    %v2187 = vpop.f32.mrf.mxu0
    %v2188 = vadd.f32 0.0, %v2187
    %v2189 = vpop.f32.mrf.mxu0
    %2190 = vdwg.mxu0
    %v2191 = vadd.f32 %v2110, %v2188
    %s2192 = scalar_lea.vmem %s4, 704
    %v2193 = vld [vmem:[%s2192] sm:$0xf]
    %v2194 = vld [vmem:[%s2192 + $0x4] sm:$0xf]
    %v2195 = vld [vmem:[%s2192 + $0x8] sm:$0xf]
    %v2196 = vld [vmem:[%s2192 + $0xc] sm:$0xf]
    %v2197 = vld [vmem:[%s2192 + $0x10] sm:$0xf]
    %v2198 = vld [vmem:[%s2192 + $0x14] sm:$0xf]
    %v2199 = vld [vmem:[%s2192 + $0x18] sm:$0xf]
    %v2200 = vld [vmem:[%s2192 + $0x1c] sm:$0xf]
    %v2201 = vld [vmem:[%s2192 + $0x20] sm:$0xf]
    %v2202 = vld [vmem:[%s2192 + $0x24] sm:$0xf]
    %v2203 = vld [vmem:[%s2192 + $0x28] sm:$0xf]
    %v2204 = vld [vmem:[%s2192 + $0x2c] sm:$0xf]
    %v2205 = vld [vmem:[%s2192 + $0x30] sm:$0xf]
    %v2206 = vld [vmem:[%s2192 + $0x34] sm:$0xf]
    %v2207 = vld [vmem:[%s2192 + $0x38] sm:$0xf]
    %v2208 = vld [vmem:[%s2192 + $0x3c] sm:$0xf]
    %v2209 = vrot.slane %v2046, 3
    %v2227 = vunpack.c.l.b16 %v2193
    %v2228 = vunpack.c.l.b16 %v2194
    %v2229 = vunpack.c.l.b16 %v2195
    %v2230 = vunpack.c.l.b16 %v2196
    %v2231 = vunpack.c.l.b16 %v2197
    %v2232 = vunpack.c.l.b16 %v2198
    %v2233 = vunpack.c.l.b16 %v2199
    %v2234 = vunpack.c.l.b16 %v2200
    %v2235 = vunpack.c.l.b16 %v2201
    %v2236 = vunpack.c.l.b16 %v2202
    %v2237 = vunpack.c.l.b16 %v2203
    %v2238 = vunpack.c.l.b16 %v2204
    %v2239 = vunpack.c.l.b16 %v2205
    %v2240 = vunpack.c.l.b16 %v2206
    %v2241 = vunpack.c.l.b16 %v2207
    %v2242 = vunpack.c.l.b16 %v2208
    %v2243 = vpack.c.b16 %v2228, %v2227
    %v2244 = vpack.c.b16 %v2230, %v2229
    %v2245 = vpack.c.b16 %v2232, %v2231
    %v2246 = vpack.c.b16 %v2234, %v2233
    %v2247 = vpack.c.b16 %v2236, %v2235
    %v2248 = vpack.c.b16 %v2238, %v2237
    %v2249 = vpack.c.b16 %v2240, %v2239
    %v2250 = vpack.c.b16 %v2242, %v2241
    %2259 = vmatpush.bf16.msra.mxu0 %v2250
    %2260 = vmatpush.bf16.msra.mxu0 %v2249
    %2261 = vmatpush.bf16.msra.mxu0 %v2248
    %2262 = vmatpush.bf16.msra.mxu0 %v2247
    %2263 = vmatpush.bf16.msra.mxu0 %v2246
    %2264 = vmatpush.bf16.msra.mxu0 %v2245
    %2265 = vmatpush.bf16.msra.mxu0 %v2244
    %2266 = vmatpush.bf16.msra.mxu0 %v2243
    %2267 = vmatmul.bf16.gmra.mxu0 %v2209
    %v2268 = vpop.f32.mrf.mxu0
    %v2269 = vadd.f32 0.0, %v2268
    %v2270 = vpop.f32.mrf.mxu0
    %2271 = vdwg.mxu0
    %v2272 = vadd.f32 %v2191, %v2269
    %s2273 = scalar_lea.vmem %s4, 768
    %v2274 = vld [vmem:[%s2273] sm:$0xf]
    %v2275 = vld [vmem:[%s2273 + $0x4] sm:$0xf]
    %v2276 = vld [vmem:[%s2273 + $0x8] sm:$0xf]
    %v2277 = vld [vmem:[%s2273 + $0xc] sm:$0xf]
    %v2278 = vld [vmem:[%s2273 + $0x10] sm:$0xf]
    %v2279 = vld [vmem:[%s2273 + $0x14] sm:$0xf]
    %v2280 = vld [vmem:[%s2273 + $0x18] sm:$0xf]
    %v2281 = vld [vmem:[%s2273 + $0x1c] sm:$0xf]
    %v2282 = vld [vmem:[%s2273 + $0x20] sm:$0xf]
    %v2283 = vld [vmem:[%s2273 + $0x24] sm:$0xf]
    %v2284 = vld [vmem:[%s2273 + $0x28] sm:$0xf]
    %v2285 = vld [vmem:[%s2273 + $0x2c] sm:$0xf]
    %v2286 = vld [vmem:[%s2273 + $0x30] sm:$0xf]
    %v2287 = vld [vmem:[%s2273 + $0x34] sm:$0xf]
    %v2288 = vld [vmem:[%s2273 + $0x38] sm:$0xf]
    %v2289 = vld [vmem:[%s2273 + $0x3c] sm:$0xf]
    %v2306 = vunpack.c.l.b16 %v2274
    %v2307 = vunpack.c.l.b16 %v2275
    %v2308 = vunpack.c.l.b16 %v2276
    %v2309 = vunpack.c.l.b16 %v2277
    %v2310 = vunpack.c.l.b16 %v2278
    %v2311 = vunpack.c.l.b16 %v2279
    %v2312 = vunpack.c.l.b16 %v2280
    %v2313 = vunpack.c.l.b16 %v2281
    %v2314 = vunpack.c.l.b16 %v2282
    %v2315 = vunpack.c.l.b16 %v2283
    %v2316 = vunpack.c.l.b16 %v2284
    %v2317 = vunpack.c.l.b16 %v2285
    %v2318 = vunpack.c.l.b16 %v2286
    %v2319 = vunpack.c.l.b16 %v2287
    %v2320 = vunpack.c.l.b16 %v2288
    %v2321 = vunpack.c.l.b16 %v2289
    %v2322 = vpack.c.b16 %v2307, %v2306
    %v2323 = vpack.c.b16 %v2309, %v2308
    %v2324 = vpack.c.b16 %v2311, %v2310
    %v2325 = vpack.c.b16 %v2313, %v2312
    %v2326 = vpack.c.b16 %v2315, %v2314
    %v2327 = vpack.c.b16 %v2317, %v2316
    %v2328 = vpack.c.b16 %v2319, %v2318
    %v2329 = vpack.c.b16 %v2321, %v2320
    %2338 = vmatpush.bf16.msra.mxu0 %v2329
    %2339 = vmatpush.bf16.msra.mxu0 %v2328
    %2340 = vmatpush.bf16.msra.mxu0 %v2327
    %2341 = vmatpush.bf16.msra.mxu0 %v2326
    %2342 = vmatpush.bf16.msra.mxu0 %v2325
    %2343 = vmatpush.bf16.msra.mxu0 %v2324
    %2344 = vmatpush.bf16.msra.mxu0 %v2323
    %2345 = vmatpush.bf16.msra.mxu0 %v2322
    %2346 = vmatmul.bf16.gmra.mxu0 %v1300
    %v2347 = vpop.f32.mrf.mxu0
    %v2348 = vadd.f32 0.0, %v2347
    %v2349 = vpop.f32.mrf.mxu0
    %2350 = vdwg.mxu0
    %v2351 = vadd.f32 %v2272, %v2348
    %s2352 = scalar_lea.vmem %s4, 832
    %v2353 = vld [vmem:[%s2352] sm:$0xf]
    %v2354 = vld [vmem:[%s2352 + $0x4] sm:$0xf]
    %v2355 = vld [vmem:[%s2352 + $0x8] sm:$0xf]
    %v2356 = vld [vmem:[%s2352 + $0xc] sm:$0xf]
    %v2357 = vld [vmem:[%s2352 + $0x10] sm:$0xf]
    %v2358 = vld [vmem:[%s2352 + $0x14] sm:$0xf]
    %v2359 = vld [vmem:[%s2352 + $0x18] sm:$0xf]
    %v2360 = vld [vmem:[%s2352 + $0x1c] sm:$0xf]
    %v2361 = vld [vmem:[%s2352 + $0x20] sm:$0xf]
    %v2362 = vld [vmem:[%s2352 + $0x24] sm:$0xf]
    %v2363 = vld [vmem:[%s2352 + $0x28] sm:$0xf]
    %v2364 = vld [vmem:[%s2352 + $0x2c] sm:$0xf]
    %v2365 = vld [vmem:[%s2352 + $0x30] sm:$0xf]
    %v2366 = vld [vmem:[%s2352 + $0x34] sm:$0xf]
    %v2367 = vld [vmem:[%s2352 + $0x38] sm:$0xf]
    %v2368 = vld [vmem:[%s2352 + $0x3c] sm:$0xf]
    %v2370 = vunpack.c.l.b16 %v1300
    %v2371 = vpack.c.b16 %v2370, %v2370
    %v2372 = vrot.slane %v2371, 1
    %v2390 = vunpack.c.l.b16 %v2353
    %v2391 = vunpack.c.l.b16 %v2354
    %v2392 = vunpack.c.l.b16 %v2355
    %v2393 = vunpack.c.l.b16 %v2356
    %v2394 = vunpack.c.l.b16 %v2357
    %v2395 = vunpack.c.l.b16 %v2358
    %v2396 = vunpack.c.l.b16 %v2359
    %v2397 = vunpack.c.l.b16 %v2360
    %v2398 = vunpack.c.l.b16 %v2361
    %v2399 = vunpack.c.l.b16 %v2362
    %v2400 = vunpack.c.l.b16 %v2363
    %v2401 = vunpack.c.l.b16 %v2364
    %v2402 = vunpack.c.l.b16 %v2365
    %v2403 = vunpack.c.l.b16 %v2366
    %v2404 = vunpack.c.l.b16 %v2367
    %v2405 = vunpack.c.l.b16 %v2368
    %v2406 = vpack.c.b16 %v2391, %v2390
    %v2407 = vpack.c.b16 %v2393, %v2392
    %v2408 = vpack.c.b16 %v2395, %v2394
    %v2409 = vpack.c.b16 %v2397, %v2396
    %v2410 = vpack.c.b16 %v2399, %v2398
    %v2411 = vpack.c.b16 %v2401, %v2400
    %v2412 = vpack.c.b16 %v2403, %v2402
    %v2413 = vpack.c.b16 %v2405, %v2404
    %2422 = vmatpush.bf16.msra.mxu0 %v2413
    %2423 = vmatpush.bf16.msra.mxu0 %v2412
    %2424 = vmatpush.bf16.msra.mxu0 %v2411
    %2425 = vmatpush.bf16.msra.mxu0 %v2410
    %2426 = vmatpush.bf16.msra.mxu0 %v2409
    %2427 = vmatpush.bf16.msra.mxu0 %v2408
    %2428 = vmatpush.bf16.msra.mxu0 %v2407
    %2429 = vmatpush.bf16.msra.mxu0 %v2406
    %2430 = vmatmul.bf16.gmra.mxu0 %v2372
    %v2431 = vpop.f32.mrf.mxu0
    %v2432 = vadd.f32 0.0, %v2431
    %v2433 = vpop.f32.mrf.mxu0
    %2434 = vdwg.mxu0
    %v2435 = vadd.f32 %v2351, %v2432
    %s2436 = scalar_lea.vmem %s4, 896
    %v2437 = vld [vmem:[%s2436] sm:$0xf]
    %v2438 = vld [vmem:[%s2436 + $0x4] sm:$0xf]
    %v2439 = vld [vmem:[%s2436 + $0x8] sm:$0xf]
    %v2440 = vld [vmem:[%s2436 + $0xc] sm:$0xf]
    %v2441 = vld [vmem:[%s2436 + $0x10] sm:$0xf]
    %v2442 = vld [vmem:[%s2436 + $0x14] sm:$0xf]
    %v2443 = vld [vmem:[%s2436 + $0x18] sm:$0xf]
    %v2444 = vld [vmem:[%s2436 + $0x1c] sm:$0xf]
    %v2445 = vld [vmem:[%s2436 + $0x20] sm:$0xf]
    %v2446 = vld [vmem:[%s2436 + $0x24] sm:$0xf]
    %v2447 = vld [vmem:[%s2436 + $0x28] sm:$0xf]
    %v2448 = vld [vmem:[%s2436 + $0x2c] sm:$0xf]
    %v2449 = vld [vmem:[%s2436 + $0x30] sm:$0xf]
    %v2450 = vld [vmem:[%s2436 + $0x34] sm:$0xf]
    %v2451 = vld [vmem:[%s2436 + $0x38] sm:$0xf]
    %v2452 = vld [vmem:[%s2436 + $0x3c] sm:$0xf]
    %v2453 = vrot.slane %v2371, 2
    %v2471 = vunpack.c.l.b16 %v2437
    %v2472 = vunpack.c.l.b16 %v2438
    %v2473 = vunpack.c.l.b16 %v2439
    %v2474 = vunpack.c.l.b16 %v2440
    %v2475 = vunpack.c.l.b16 %v2441
    %v2476 = vunpack.c.l.b16 %v2442
    %v2477 = vunpack.c.l.b16 %v2443
    %v2478 = vunpack.c.l.b16 %v2444
    %v2479 = vunpack.c.l.b16 %v2445
    %v2480 = vunpack.c.l.b16 %v2446
    %v2481 = vunpack.c.l.b16 %v2447
    %v2482 = vunpack.c.l.b16 %v2448
    %v2483 = vunpack.c.l.b16 %v2449
    %v2484 = vunpack.c.l.b16 %v2450
    %v2485 = vunpack.c.l.b16 %v2451
    %v2486 = vunpack.c.l.b16 %v2452
    %v2487 = vpack.c.b16 %v2472, %v2471
    %v2488 = vpack.c.b16 %v2474, %v2473
    %v2489 = vpack.c.b16 %v2476, %v2475
    %v2490 = vpack.c.b16 %v2478, %v2477
    %v2491 = vpack.c.b16 %v2480, %v2479
    %v2492 = vpack.c.b16 %v2482, %v2481
    %v2493 = vpack.c.b16 %v2484, %v2483
    %v2494 = vpack.c.b16 %v2486, %v2485
    %2503 = vmatpush.bf16.msra.mxu0 %v2494
    %2504 = vmatpush.bf16.msra.mxu0 %v2493
    %2505 = vmatpush.bf16.msra.mxu0 %v2492
    %2506 = vmatpush.bf16.msra.mxu0 %v2491
    %2507 = vmatpush.bf16.msra.mxu0 %v2490
    %2508 = vmatpush.bf16.msra.mxu0 %v2489
    %2509 = vmatpush.bf16.msra.mxu0 %v2488
    %2510 = vmatpush.bf16.msra.mxu0 %v2487
    %2511 = vmatmul.bf16.gmra.mxu0 %v2453
    %v2512 = vpop.f32.mrf.mxu0
    %v2513 = vadd.f32 0.0, %v2512
    %v2514 = vpop.f32.mrf.mxu0
    %2515 = vdwg.mxu0
    %v2516 = vadd.f32 %v2435, %v2513
    %s2517 = scalar_lea.vmem %s4, 960
    %v2518 = vld [vmem:[%s2517] sm:$0xf]
    %v2519 = vld [vmem:[%s2517 + $0x4] sm:$0xf]
    %v2520 = vld [vmem:[%s2517 + $0x8] sm:$0xf]
    %v2521 = vld [vmem:[%s2517 + $0xc] sm:$0xf]
    %v2522 = vld [vmem:[%s2517 + $0x10] sm:$0xf]
    %v2523 = vld [vmem:[%s2517 + $0x14] sm:$0xf]
    %v2524 = vld [vmem:[%s2517 + $0x18] sm:$0xf]
    %v2525 = vld [vmem:[%s2517 + $0x1c] sm:$0xf]
    %v2526 = vld [vmem:[%s2517 + $0x20] sm:$0xf]
    %v2527 = vld [vmem:[%s2517 + $0x24] sm:$0xf]
    %v2528 = vld [vmem:[%s2517 + $0x28] sm:$0xf]
    %v2529 = vld [vmem:[%s2517 + $0x2c] sm:$0xf]
    %v2530 = vld [vmem:[%s2517 + $0x30] sm:$0xf]
    %v2531 = vld [vmem:[%s2517 + $0x34] sm:$0xf]
    %v2532 = vld [vmem:[%s2517 + $0x38] sm:$0xf]
    %v2533 = vld [vmem:[%s2517 + $0x3c] sm:$0xf]
    %v2534 = vrot.slane %v2371, 3
    %v2552 = vunpack.c.l.b16 %v2518
    %v2553 = vunpack.c.l.b16 %v2519
    %v2554 = vunpack.c.l.b16 %v2520
    %v2555 = vunpack.c.l.b16 %v2521
    %v2556 = vunpack.c.l.b16 %v2522
    %v2557 = vunpack.c.l.b16 %v2523
    %v2558 = vunpack.c.l.b16 %v2524
    %v2559 = vunpack.c.l.b16 %v2525
    %v2560 = vunpack.c.l.b16 %v2526
    %v2561 = vunpack.c.l.b16 %v2527
    %v2562 = vunpack.c.l.b16 %v2528
    %v2563 = vunpack.c.l.b16 %v2529
    %v2564 = vunpack.c.l.b16 %v2530
    %v2565 = vunpack.c.l.b16 %v2531
    %v2566 = vunpack.c.l.b16 %v2532
    %v2567 = vunpack.c.l.b16 %v2533
    %v2568 = vpack.c.b16 %v2553, %v2552
    %v2569 = vpack.c.b16 %v2555, %v2554
    %v2570 = vpack.c.b16 %v2557, %v2556
    %v2571 = vpack.c.b16 %v2559, %v2558
    %v2572 = vpack.c.b16 %v2561, %v2560
    %v2573 = vpack.c.b16 %v2563, %v2562
    %v2574 = vpack.c.b16 %v2565, %v2564
    %v2575 = vpack.c.b16 %v2567, %v2566
    %2584 = vmatpush.bf16.msra.mxu0 %v2575
    %2585 = vmatpush.bf16.msra.mxu0 %v2574
    %2586 = vmatpush.bf16.msra.mxu0 %v2573
    %2587 = vmatpush.bf16.msra.mxu0 %v2572
    %2588 = vmatpush.bf16.msra.mxu0 %v2571
    %2589 = vmatpush.bf16.msra.mxu0 %v2570
    %2590 = vmatpush.bf16.msra.mxu0 %v2569
    %2591 = vmatpush.bf16.msra.mxu0 %v2568
    %2592 = vmatmul.bf16.gmra.mxu0 %v2534
    %v2593 = vpop.f32.mrf.mxu0
    %v2594 = vadd.f32 0.0, %v2593
    %v2595 = vpop.f32.mrf.mxu0
    %2596 = vdwg.mxu0
    %v2597 = vadd.f32 %v2516, %v2594
    %v2598 = vld [vmem:[%s5] sm:$0x1]
    %v2600 = vperm.slane %v2598, 0
    %v2602 = vadd.f32 %v2597, %v2600
    %vm2603 = vcmask 254976
    %2604 = vst.msk [vmem:[#allocation2] sm:$0x3] %vm2603, %v2602
    // Predicated region
    $region26: #{autoencoder_mnist_forward.5} parent=1 // pred_check
      _
    $region27: #{autoencoder_mnist_forward.5} parent=1 // pred_check_branch
      %2606 = sbr.rel (0) target = $region29
    $region28: #{autoencoder_mnist_forward.5} parent=1 // pred_region
      %2608 = vsyncadd [#allocation3], 0
      %s2610 = sshll.u32 [#allocation2], 4
      %s2611 = int_to_ptr.vmem [resolvable:$true] %s2610
      %s2612 = sshll.u32 %s6, 4
      %s2613 = int_to_ptr.hbm [resolvable:$true] %s2612
      %2615 = dma.vmem_to_hbm [thread:$0]  %s2611, 32, %s2613, [#allocation3]
    $region29: #{autoencoder_mnist_forward.5} parent=1 // pred_fallthru
      _
    // Predicated region
    $region30: #{autoencoder_mnist_forward.5} parent=1 // pred_check
      _
    $region31: #{autoencoder_mnist_forward.5} parent=1 // pred_check_branch
      %2617 = sbr.rel (0) target = $region33
    $region32: #{autoencoder_mnist_forward.5} parent=1 // pred_region
      %2619 = dma.done [#allocation3], 32
    $region33: #{autoencoder_mnist_forward.5} parent=1 // pred_fallthru
      _
    %2620 = vsyncpa [#allocation3], 1

</llo_original>
